<compile_context>
chip_gen: v7x
topology: tpu7x:2x2x1
jax: 0.10.0
libtpu: 0.0.40
codegen_flags: <defaults>
</compile_context>

<pallas_src>
import functools

import jax
import jax.numpy as jnp
from jax import lax
from jax.experimental import pallas as pl
from jax.experimental.pallas import tpu as pltpu

LN_EPS = 1e-5
VMEM_LIMIT = 32 * 1024 * 1024


def _round_up(x, m):
    return (x + m - 1) // m * m


def _cdiv(a, b):
    return (a + b - 1) // b


def _pick_rows(m, cap=256):
    """Row tile + grid count. Keeps the grid >= 2 and even when possible
    (v7x megacore split); rows are padded up to tm*grid by the caller."""
    m8 = _round_up(m, 8)
    half = _round_up(_cdiv(m8, 2), 8)
    tm = min(cap, max(8, half))
    grid = _cdiv(m8, tm)
    if grid > 1 and grid % 2 == 1:
        tm = max(8, _round_up(_cdiv(m8, grid + 1), 8))
        grid = _cdiv(m8, tm)
    return tm, grid


# ----------------------------------------------------------------------------
# Pallas kernels
# ----------------------------------------------------------------------------
def _encoder_kernel(x_ref, pos_ref, we_ref, be_ref, w1_ref, b1_ref,
                    w2_ref, b2_ref, *rest, apply_ln, proj_out):
    # Fused per-token encoder:
    #   tok = x @ We + be + pos
    #   y   = tok + gelu(tok @ W1 + b1) @ W2 + b2
    #   [LN epilogue]              (target path)
    #   [y @ W_in + b_in epilogue] (context path — predictor input projection)
    if proj_out:
        win_ref, bin_ref, o_ref = rest
    else:
        (o_ref,) = rest

    tok = jnp.dot(x_ref[...], we_ref[...], preferred_element_type=jnp.float32)
    tok = tok + be_ref[...] + pos_ref[...].astype(jnp.float32)

    h = jnp.dot(tok.astype(jnp.bfloat16), w1_ref[...],
                preferred_element_type=jnp.float32) + b1_ref[...]
    h = jax.nn.gelu(h, approximate=True)
    y = tok + jnp.dot(h.astype(jnp.bfloat16), w2_ref[...],
                      preferred_element_type=jnp.float32) + b2_ref[...]

    if apply_ln:  # F.layer_norm(y, (D,)) — biased var, f32 stats, no affine
        mu = jnp.mean(y, axis=-1, keepdims=True)
        var = jnp.mean((y - mu) ** 2, axis=-1, keepdims=True)
        y = (y - mu) * lax.rsqrt(var + LN_EPS)

    if proj_out:  # fused predictor input projection at full row tile
        y = jnp.dot(y.astype(jnp.bfloat16), win_ref[...],
                    preferred_element_type=jnp.float32) + bin_ref[...]

    o_ref[...] = y.astype(o_ref.dtype)


def _predictor_kernel(ctx_ref, posp_ref, mtok_ref, w1_ref, b1_ref,
                      w2_ref, b2_ref, wout_ref, bout_ref, o_ref):
    # One grid step = one enc-mask, all B images, all Mp pred masks at once.
    #   base[b] = mean_tokens(ctx[b]) + mask_token
    #   tok     = pos_p[mp, b] + base[b]                 (Mp*B*Kp, Dp) stacked
    #   y       = tok + gelu(tok@W1+b1)@W2 + b2 ; out = y @ Wout + bout
    Mp, B, Kp, Dp = posp_ref.shape
    Dout = wout_ref.shape[1]

    ctx = ctx_ref[0].astype(jnp.float32)                  # (B, Ke, Dp)
    base = jnp.mean(ctx, axis=1) + mtok_ref[...]          # (B, Dp)

    tok = posp_ref[...].astype(jnp.float32) + base[None, :, None, :]
    tok = tok.reshape(Mp * B * Kp, Dp)                    # stacked token matrix

    h = jnp.dot(tok.astype(jnp.bfloat16), w1_ref[...],
                preferred_element_type=jnp.float32) + b1_ref[...]
    h = jax.nn.gelu(h, approximate=True)
    y = tok + jnp.dot(h.astype(jnp.bfloat16), w2_ref[...],
                      preferred_element_type=jnp.float32) + b2_ref[...]
    out = jnp.dot(y.astype(jnp.bfloat16), wout_ref[...],
                  preferred_element_type=jnp.float32) + bout_ref[...]

    o_ref[...] = out.reshape(Mp, 1, B * Kp, Dout).astype(o_ref.dtype)


# ----------------------------------------------------------------------------
# pallas_call wrappers
# ----------------------------------------------------------------------------
def fused_encoder(x_rows, pos_rows, p, *, apply_ln, proj_params=None, out_dtype):
    # x_rows: (M, Pp) bf16 patch rows ; pos_rows: (M, D) bf16 per-row pos-emb.
    M, Pp = x_rows.shape
    D = p["w_embed"].shape[1]
    H = p["w1"].shape[1]
    tm, grid_m = _pick_rows(M)
    M_pad = tm * grid_m
    if M_pad > M:  # cdiv grid + row padding (no exact-divisor requirement)
        x_rows = jnp.pad(x_rows, ((0, M_pad - M), (0, 0)))
        pos_rows = jnp.pad(pos_rows, ((0, M_pad - M), (0, 0)))

    def const(*shape):
        return pl.BlockSpec(shape, lambda i, n=len(shape): (0,) * n)

    in_specs = [
        pl.BlockSpec((tm, Pp), lambda i: (i, 0)),
        pl.BlockSpec((tm, D), lambda i: (i, 0)),
        const(Pp, D), const(1, D),
        const(D, H), const(1, H),
        const(H, D), const(1, D),
    ]
    inputs = [x_rows, pos_rows,
              p["w_embed"], p["b_embed"].reshape(1, D),
              p["w1"], p["b1"].reshape(1, H),
              p["w2"], p["b2"].reshape(1, D)]

    if proj_params is not None:
        w_in, b_in = proj_params
        Dout = w_in.shape[1]
        in_specs += [const(D, Dout), const(1, Dout)]
        inputs += [w_in, b_in.reshape(1, Dout)]
    else:
        Dout = D

    kern = functools.partial(_encoder_kernel, apply_ln=apply_ln,
                             proj_out=proj_params is not None)
    out = pl.pallas_call(
        kern,
        out_shape=jax.ShapeDtypeStruct((M_pad, Dout), out_dtype),
        grid=(grid_m,),
        in_specs=in_specs,
        out_specs=pl.BlockSpec((tm, Dout), lambda i: (i, 0)),
        compiler_params=pltpu.CompilerParams(
            dimension_semantics=("parallel",),
            vmem_limit_bytes=VMEM_LIMIT),
    )(*inputs)
    return out[:M] if M_pad > M else out


def fused_predictor(ctx, pos_p, p, *, out_dtype):
    # ctx: (Me, B, Ke, Dp) bf16 (already projected by W_in in the encoder)
    # pos_p: (Mp, B, Kp, Dp) bf16
    Me, B, Ke, Dp = ctx.shape
    Mp, _, Kp, _ = pos_p.shape
    H = p["w1"].shape[1]
    Dout = p["w_out"].shape[1]

    def const(*shape):
        return pl.BlockSpec(shape, lambda g, n=len(shape): (0,) * n)

    out = pl.pallas_call(
        _predictor_kernel,
        out_shape=jax.ShapeDtypeStruct((Mp, Me, B * Kp, Dout), out_dtype),
        grid=(Me,),
        in_specs=[
            pl.BlockSpec((1, B, Ke, Dp), lambda g: (g, 0, 0, 0)),
            const(Mp, B, Kp, Dp),
            const(1, Dp),
            const(Dp, H), const(1, H),
            const(H, Dp), const(1, Dp),
            const(Dp, Dout), const(1, Dout),
        ],
        out_specs=pl.BlockSpec((Mp, 1, B * Kp, Dout), lambda g: (0, g, 0, 0)),
        compiler_params=pltpu.CompilerParams(
            dimension_semantics=("parallel",),
            vmem_limit_bytes=VMEM_LIMIT),
    )(ctx, pos_p, p["mask_token"].reshape(1, Dp).astype(jnp.float32),
      p["w1"], p["b1"].reshape(1, H),
      p["w2"], p["b2"].reshape(1, Dp),
      p["w_out"], p["b_out"].reshape(1, Dout))
    # (Mp, Me, B*Kp, Dout) -> (Mp*Me*B, Kp, Dout); ordering (mp, me, b) matches
    # repeat_interleave_batch(apply_masks(h, masks_pred), B, repeat=Me).
    return out.reshape(Mp * Me * B, Kp, Dout)


# ----------------------------------------------------------------------------
# IJEPA helpers (JAX glue — gather / batch bookkeeping only)
# ----------------------------------------------------------------------------
def patchify(imgs, p):
    # NCHW -> [B, N, C*p*p]  (C, ph, pw flattening order, as Conv2d patch embed)
    B, C, H, W = imgs.shape
    x = imgs.reshape(B, C, H // p, p, W // p, p)
    x = jnp.transpose(x, (0, 2, 4, 1, 3, 5))
    return x.reshape(B, (H // p) * (W // p), C * p * p)


def apply_masks(x, masks):
    # Concatenates masks along batch: ordering is (mask outer, image inner).
    outs = []
    for m in masks:
        idx = m[:, :, None].astype(jnp.int32)
        outs.append(jnp.take_along_axis(x, idx, axis=1))
    return jnp.concatenate(outs, axis=0)


def repeat_interleave_batch(x, B, repeat):
    n_chunks = x.shape[0] // B
    pieces = []
    for i in range(n_chunks):
        chunk = x[i * B:(i + 1) * B]
        pieces.extend([chunk] * repeat)
    return jnp.concatenate(pieces, axis=0)


# ----------------------------------------------------------------------------
# IJEPA forward (context + predictor + target), three fused-kernel calls + glue
# ----------------------------------------------------------------------------
def ijepa_forward(params, imgs, masks_pred, masks_enc, patch_size):
    B = imgs.shape[0]
    Me = len(masks_enc)
    Mp = len(masks_pred)

    ctx_p = params["context_encoder"]
    tgt_p = params["target_encoder"]
    prd_p = params["predictor"]
    D = ctx_p["w_embed"].shape[1]
    Dp = prd_p["w_in"].shape[1]
    Pp = ctx_p["w_embed"].shape[0]            # lane-padded patch dim

    patches = patchify(imgs, patch_size)      # (B, N, Pdim)
    Pdim = patches.shape[2]
    if Pp > Pdim:
        patches = jnp.pad(patches, ((0, 0), (0, 0), (0, Pp - Pdim)))
    patches = patches.astype(jnp.bfloat16)    # bf16 MXU operands

    # ---- forward_context: gather masked raw patch/pos rows, then one fused
    # kernel (embed + pos + MLP + W_in projection) produces projected context.
    m_enc = jnp.stack(masks_enc).astype(jnp.int32)            # (Me, B, Ke)
    Ke = m_enc.shape[-1]
    g_patches = apply_masks(patches, masks_enc)               # (Me*B, Ke, Pp)
    g_pos = ctx_p["pos"].astype(jnp.bfloat16)[m_enc].reshape(Me * B * Ke, D)
    ctx = fused_encoder(g_patches.reshape(Me * B * Ke, Pp), g_pos, ctx_p,
                        apply_ln=False,
                        proj_params=(prd_p["w_in"], prd_p["b_in"]),
                        out_dtype=jnp.bfloat16)
    # relies on apply_masks ordering: (enc-mask outer, image inner)
    ctx = ctx.reshape(Me, B, Ke, Dp)

    m_prd = jnp.stack(masks_pred).astype(jnp.int32)           # (Mp, B, Kp)
    Kp = m_prd.shape[-1]
    pos_p = prd_p["pred_pos"].astype(jnp.bfloat16)[m_prd]     # (Mp, B, Kp, Dp)
    z = fused_predictor(ctx, pos_p, prd_p, out_dtype=jnp.float32)

    # ---- forward_target: per-token encoder, so gather the pred-masked rows
    # FIRST and only encode Mp*B*Kp rows (LN epilogue fused).
    t_patches = apply_masks(patches, masks_pred)              # (Mp*B, Kp, Pp)
    t_pos = tgt_p["pos"].astype(jnp.bfloat16)[m_prd].reshape(Mp * B * Kp, D)
    h = fused_encoder(t_patches.reshape(Mp * B * Kp, Pp), t_pos, tgt_p,
                      apply_ln=True, out_dtype=jnp.float32)
    h = lax.stop_gradient(h).reshape(Mp * B, Kp, D)           # frozen target enc
    h = repeat_interleave_batch(h, B, repeat=Me)
    return z, h


# ----------------------------------------------------------------------------
# Deterministic parameter / input construction
# ----------------------------------------------------------------------------
def init_params(key, patch_dim, patch_dim_pad, n_tokens, d_model, d_hidden, d_pred):
    keys = jax.random.split(key, 12)
    s = 0.02

    def w(k, shape):
        return (s * jax.random.normal(k, shape, jnp.float32)).astype(jnp.bfloat16)

    def enc(k0, k1, k2, k3):
        we = s * jax.random.normal(k0, (patch_dim, d_model), jnp.float32)
        we = jnp.pad(we, ((0, patch_dim_pad - patch_dim), (0, 0)))
        return {
            "w_embed": we.astype(jnp.bfloat16),
            "b_embed": jnp.zeros((d_model,), jnp.float32),
            "pos": s * jax.random.normal(k1, (n_tokens, d_model), jnp.float32),
            "w1": w(k2, (d_model, d_hidden)),
            "b1": jnp.zeros((d_hidden,), jnp.float32),
            "w2": w(k3, (d_hidden, d_model)),
            "b2": jnp.zeros((d_model,), jnp.float32),
        }

    ctx = enc(keys[0], keys[1], keys[2], keys[3])
    # target encoder starts as an EMA-style copy; frozen via stop_gradient.
    tgt = jax.tree_util.tree_map(lambda x: x, ctx)
    prd = {
        "w_in": w(keys[4], (d_model, d_pred)),
        "b_in": jnp.zeros((d_pred,), jnp.float32),
        "pred_pos": s * jax.random.normal(keys[5], (n_tokens, d_pred), jnp.float32),
        "mask_token": s * jax.random.normal(keys[6], (d_pred,), jnp.float32),
        "w1": w(keys[7], (d_pred, d_hidden)),
        "b1": jnp.zeros((d_hidden,), jnp.float32),
        "w2": w(keys[8], (d_hidden, d_pred)),
        "b2": jnp.zeros((d_pred,), jnp.float32),
        "w_out": w(keys[9], (d_pred, d_model)),
        "b_out": jnp.zeros((d_model,), jnp.float32),
    }
    return {"context_encoder": ctx, "target_encoder": tgt, "predictor": prd}


def make_masks(key, num_masks, B, n_tokens, keep):
    masks = []
    for _ in range(num_masks):
        rows = []
        for _ in range(B):
            key, sk = jax.random.split(key)
            rows.append(jax.random.permutation(sk, n_tokens)[:keep])
        masks.append(jnp.stack(rows).astype(jnp.int32))
    return masks, key


if __name__ == "__main__":
    B, C, H, W = 2, 3, 16, 16
    patch_size = 4
    n_tokens = (H // patch_size) * (W // patch_size)     # 16
    patch_dim = C * patch_size * patch_size              # 48
    patch_dim_pad = _round_up(patch_dim, 128)            # 128 (lane-dense MXU K)
    d_model, d_hidden, d_pred = 128, 256, 128            # lane-dense feature dims
    Me, Mp = 2, 2            # number of enc / pred masks
    k_enc, k_pred = 8, 8     # tokens kept per mask (sublane-aligned)

    key = jax.random.PRNGKey(0)
    key, pk, ik = jax.random.split(key, 3)
    params = init_params(pk, patch_dim, patch_dim_pad, n_tokens,
                         d_model, d_hidden, d_pred)
    imgs = jax.random.normal(ik, (B, C, H, W), jnp.float32)
    masks_enc, key = make_masks(key, Me, B, n_tokens, k_enc)
    masks_pred, key = make_masks(key, Mp, B, n_tokens, k_pred)

    fwd = jax.jit(functools.partial(ijepa_forward, patch_size=patch_size))
    z, h = fwd(params, imgs, masks_pred, masks_enc)
    z = jax.block_until_ready(z)
    h = jax.block_until_ready(h)

    expected = (Mp * Me * B, k_pred, d_model)
    assert z.shape == expected, (z.shape, expected)
    assert h.shape == expected, (h.shape, expected)
    assert jnp.all(jnp.isfinite(z)) and jnp.all(jnp.isfinite(h))
    print("KERNEL_OK")
</pallas_src>

<mosaic_0001>
module attributes {stable_mosaic.version = 11 : i64} {
  func.func @_encoder_kernel(%arg0: i32, %arg1: memref<16x128xbf16, #tpu.memory_space<vmem>>, %arg2: memref<16x128xbf16, #tpu.memory_space<vmem>>, %arg3: memref<128x128xbf16, #tpu.memory_space<vmem>>, %arg4: memref<1x128xf32, #tpu.memory_space<vmem>>, %arg5: memref<128x256xbf16, #tpu.memory_space<vmem>>, %arg6: memref<1x256xf32, #tpu.memory_space<vmem>>, %arg7: memref<256x128xbf16, #tpu.memory_space<vmem>>, %arg8: memref<1x128xf32, #tpu.memory_space<vmem>>, %arg9: memref<16x128xf32, #tpu.memory_space<vmem>>) attributes {dimension_semantics = [#tpu.dimension_semantics<parallel>], iteration_bounds = array<i64: 2>, scalar_prefetch = 0 : i64, scratch_operands = 0 : i64, tpu.core_type = #tpu.core_type<tc>, window_params = [{transform_indices = @transform_0, window_bounds = array<i64: 16, 128>}, {transform_indices = @transform_1, window_bounds = array<i64: 16, 128>}, {pipeline_mode = #tpu.pipeline_mode<synchronous>, transform_indices = @transform_2, window_bounds = array<i64: 128, 128>}, {pipeline_mode = #tpu.pipeline_mode<synchronous>, transform_indices = @transform_3, window_bounds = array<i64: 1, 128>}, {pipeline_mode = #tpu.pipeline_mode<synchronous>, transform_indices = @transform_4, window_bounds = array<i64: 128, 256>}, {pipeline_mode = #tpu.pipeline_mode<synchronous>, transform_indices = @transform_5, window_bounds = array<i64: 1, 256>}, {pipeline_mode = #tpu.pipeline_mode<synchronous>, transform_indices = @transform_6, window_bounds = array<i64: 256, 128>}, {pipeline_mode = #tpu.pipeline_mode<synchronous>, transform_indices = @transform_7, window_bounds = array<i64: 1, 128>}, {transform_indices = @transform_8, window_bounds = array<i64: 16, 128>}]} {
    %c0 = arith.constant 0 : index
    %c0_0 = arith.constant 0 : index
    %0 = vector.load %arg1[%c0, %c0_0] : memref<16x128xbf16, #tpu.memory_space<vmem>>, vector<16x128xbf16>
    %c0_1 = arith.constant 0 : index
    %c0_2 = arith.constant 0 : index
    %1 = vector.load %arg3[%c0_1, %c0_2] : memref<128x128xbf16, #tpu.memory_space<vmem>>, vector<128x128xbf16>
    %cst = arith.constant dense<0.000000e+00> : vector<16x128xf32>
    %2 = tpu.matmul %0, %1, %cst {dimension_numbers = #tpu.dot_dimension_numbers<[1], [0], [0], [1], [0, 0, 1, 1], [], []>} : vector<16x128xbf16>, vector<128x128xbf16>, vector<16x128xf32> -> vector<16x128xf32>
    %c0_3 = arith.constant 0 : index
    %c0_4 = arith.constant 0 : index
    %3 = vector.load %arg4[%c0_3, %c0_4] : memref<1x128xf32, #tpu.memory_space<vmem>>, vector<1x128xf32>
    %4 = vector.broadcast %3 : vector<1x128xf32> to vector<16x128xf32>
    %5 = arith.addf %2, %4 : vector<16x128xf32>
    %c0_5 = arith.constant 0 : index
    %c0_6 = arith.constant 0 : index
    %6 = vector.load %arg2[%c0_5, %c0_6] : memref<16x128xbf16, #tpu.memory_space<vmem>>, vector<16x128xbf16>
    %7 = arith.extf %6 : vector<16x128xbf16> to vector<16x128xf32>
    %8 = arith.addf %5, %7 : vector<16x128xf32>
    %9 = arith.truncf %8 : vector<16x128xf32> to vector<16x128xbf16>
    %c0_7 = arith.constant 0 : index
    %c0_8 = arith.constant 0 : index
    %10 = vector.load %arg5[%c0_7, %c0_8] : memref<128x256xbf16, #tpu.memory_space<vmem>>, vector<128x256xbf16>
    %cst_9 = arith.constant dense<0.000000e+00> : vector<16x256xf32>
    %11 = tpu.matmul %9, %10, %cst_9 {dimension_numbers = #tpu.dot_dimension_numbers<[1], [0], [0], [1], [0, 0, 1, 1], [], []>} : vector<16x128xbf16>, vector<128x256xbf16>, vector<16x256xf32> -> vector<16x256xf32>
    %c0_10 = arith.constant 0 : index
    %c0_11 = arith.constant 0 : index
    %12 = vector.load %arg6[%c0_10, %c0_11] : memref<1x256xf32, #tpu.memory_space<vmem>>, vector<1x256xf32>
    %13 = vector.broadcast %12 : vector<1x256xf32> to vector<16x256xf32>
    %14 = arith.addf %11, %13 : vector<16x256xf32>
    %15 = arith.mulf %14, %14 : vector<16x256xf32>
    %16 = arith.mulf %14, %15 : vector<16x256xf32>
    %cst_12 = arith.constant 4.471500e-02 : f32
    %17 = vector.broadcast %cst_12 : f32 to vector<16x256xf32>
    %18 = arith.mulf %17, %16 : vector<16x256xf32>
    %19 = arith.addf %14, %18 : vector<16x256xf32>
    %cst_13 = arith.constant 0.797884583 : f32
    %20 = vector.broadcast %cst_13 : f32 to vector<16x256xf32>
    %21 = arith.mulf %20, %19 : vector<16x256xf32>
    %22 = math.tanh %21 : vector<16x256xf32>
    %cst_14 = arith.constant 1.000000e+00 : f32
    %23 = vector.broadcast %cst_14 : f32 to vector<16x256xf32>
    %24 = arith.addf %23, %22 : vector<16x256xf32>
    %cst_15 = arith.constant 5.000000e-01 : f32
    %25 = vector.broadcast %cst_15 : f32 to vector<16x256xf32>
    %26 = arith.mulf %25, %24 : vector<16x256xf32>
    %27 = arith.mulf %14, %26 : vector<16x256xf32>
    %28 = arith.truncf %27 : vector<16x256xf32> to vector<16x256xbf16>
    %c0_16 = arith.constant 0 : index
    %c0_17 = arith.constant 0 : index
    %29 = vector.load %arg7[%c0_16, %c0_17] : memref<256x128xbf16, #tpu.memory_space<vmem>>, vector<256x128xbf16>
    %cst_18 = arith.constant dense<0.000000e+00> : vector<16x128xf32>
    %30 = tpu.matmul %28, %29, %cst_18 {dimension_numbers = #tpu.dot_dimension_numbers<[1], [0], [0], [1], [0, 0, 1, 1], [], []>} : vector<16x256xbf16>, vector<256x128xbf16>, vector<16x128xf32> -> vector<16x128xf32>
    %31 = arith.addf %8, %30 : vector<16x128xf32>
    %c0_19 = arith.constant 0 : index
    %c0_20 = arith.constant 0 : index
    %32 = vector.load %arg8[%c0_19, %c0_20] : memref<1x128xf32, #tpu.memory_space<vmem>>, vector<1x128xf32>
    %33 = vector.broadcast %32 : vector<1x128xf32> to vector<16x128xf32>
    %34 = arith.addf %31, %33 : vector<16x128xf32>
    %cst_21 = arith.constant dense<0.000000e+00> : vector<16xf32>
    %35 = vector.multi_reduction <add>, %34, %cst_21 [1] : vector<16x128xf32> to vector<16xf32>
    %36 = vector.shape_cast %35 : vector<16xf32> to vector<16x1xf32>
    %cst_22 = arith.constant 1.280000e+02 : f32
    %37 = vector.broadcast %cst_22 : f32 to vector<16x1xf32>
    %38 = arith.divf %36, %37 : vector<16x1xf32>
    %39 = vector.broadcast %38 : vector<16x1xf32> to vector<16x128xf32>
    %40 = arith.subf %34, %39 : vector<16x128xf32>
    %41 = arith.mulf %40, %40 : vector<16x128xf32>
    %cst_23 = arith.constant dense<0.000000e+00> : vector<16xf32>
    %42 = vector.multi_reduction <add>, %41, %cst_23 [1] : vector<16x128xf32> to vector<16xf32>
    %43 = vector.shape_cast %42 : vector<16xf32> to vector<16x1xf32>
    %cst_24 = arith.constant 1.280000e+02 : f32
    %44 = vector.broadcast %cst_24 : f32 to vector<16x1xf32>
    %45 = arith.divf %43, %44 : vector<16x1xf32>
    %46 = vector.broadcast %38 : vector<16x1xf32> to vector<16x128xf32>
    %47 = arith.subf %34, %46 : vector<16x128xf32>
    %cst_25 = arith.constant 9.99999974E-6 : f32
    %48 = vector.broadcast %cst_25 : f32 to vector<16x1xf32>
    %49 = arith.addf %45, %48 : vector<16x1xf32>
    %50 = math.rsqrt %49 : vector<16x1xf32>
    %51 = vector.broadcast %50 : vector<16x1xf32> to vector<16x128xf32>
    %52 = arith.mulf %47, %51 : vector<16x128xf32>
    %c0_26 = arith.constant 0 : index
    %c0_27 = arith.constant 0 : index
    %53 = vector.load %arg9[%c0_26, %c0_27] : memref<16x128xf32, #tpu.memory_space<vmem>>, vector<16x128xf32>
    tpu.vector_store %arg9[%c0_26, %c0_27], %52 {strides = array<i32>} : memref<16x128xf32, #tpu.memory_space<vmem>>, vector<16x128xf32>,
    return
  }
  func.func @transform_0(%arg0: i32) -> (i32, i32) {
    %c0_i32 = arith.constant 0 : i32
    %c0_i32_0 = arith.constant 0 : i32
    return %arg0, %c0_i32 : i32, i32
  }
  func.func @transform_1(%arg0: i32) -> (i32, i32) {
    %c0_i32 = arith.constant 0 : i32
    %c0_i32_0 = arith.constant 0 : i32
    return %arg0, %c0_i32 : i32, i32
  }
  func.func @transform_2(%arg0: i32) -> (i32, i32) {
    %c0_i32 = arith.constant 0 : i32
    %c0_i32_0 = arith.constant 0 : i32
    %c0_i32_1 = arith.constant 0 : i32
    return %c0_i32, %c0_i32_0 : i32, i32
  }
  func.func @transform_3(%arg0: i32) -> (i32, i32) {
    %c0_i32 = arith.constant 0 : i32
    %c0_i32_0 = arith.constant 0 : i32
    %c0_i32_1 = arith.constant 0 : i32
    return %c0_i32, %c0_i32_0 : i32, i32
  }
  func.func @transform_4(%arg0: i32) -> (i32, i32) {
    %c0_i32 = arith.constant 0 : i32
    %c0_i32_0 = arith.constant 0 : i32
    %c0_i32_1 = arith.constant 0 : i32
    return %c0_i32, %c0_i32_0 : i32, i32
  }
  func.func @transform_5(%arg0: i32) -> (i32, i32) {
    %c0_i32 = arith.constant 0 : i32
    %c0_i32_0 = arith.constant 0 : i32
    %c0_i32_1 = arith.constant 0 : i32
    return %c0_i32, %c0_i32_0 : i32, i32
  }
  func.func @transform_6(%arg0: i32) -> (i32, i32) {
    %c0_i32 = arith.constant 0 : i32
    %c0_i32_0 = arith.constant 0 : i32
    %c0_i32_1 = arith.constant 0 : i32
    return %c0_i32, %c0_i32_0 : i32, i32
  }
  func.func @transform_7(%arg0: i32) -> (i32, i32) {
    %c0_i32 = arith.constant 0 : i32
    %c0_i32_0 = arith.constant 0 : i32
    %c0_i32_1 = arith.constant 0 : i32
    return %c0_i32, %c0_i32_0 : i32, i32
  }
  func.func @transform_8(%arg0: i32) -> (i32, i32) {
    %c0_i32 = arith.constant 0 : i32
    %c0_i32_0 = arith.constant 0 : i32
    return %arg0, %c0_i32 : i32, i32
  }
}

module attributes {stable_mosaic.version = 11 : i64} {
  func.func @_encoder_kernel(%arg0: i32, %arg1: memref<16x128xbf16, #tpu.memory_space<vmem>>, %arg2: memref<16x128xbf16, #tpu.memory_space<vmem>>, %arg3: memref<128x128xbf16, #tpu.memory_space<vmem>>, %arg4: memref<1x128xf32, #tpu.memory_space<vmem>>, %arg5: memref<128x256xbf16, #tpu.memory_space<vmem>>, %arg6: memref<1x256xf32, #tpu.memory_space<vmem>>, %arg7: memref<256x128xbf16, #tpu.memory_space<vmem>>, %arg8: memref<1x128xf32, #tpu.memory_space<vmem>>, %arg9: memref<128x128xbf16, #tpu.memory_space<vmem>>, %arg10: memref<1x128xf32, #tpu.memory_space<vmem>>, %arg11: memref<16x128xbf16, #tpu.memory_space<vmem>>) attributes {dimension_semantics = [#tpu.dimension_semantics<parallel>], iteration_bounds = array<i64: 2>, scalar_prefetch = 0 : i64, scratch_operands = 0 : i64, tpu.core_type = #tpu.core_type<tc>, window_params = [{transform_indices = @transform_0, window_bounds = array<i64: 16, 128>}, {transform_indices = @transform_1, window_bounds = array<i64: 16, 128>}, {pipeline_mode = #tpu.pipeline_mode<synchronous>, transform_indices = @transform_2, window_bounds = array<i64: 128, 128>}, {pipeline_mode = #tpu.pipeline_mode<synchronous>, transform_indices = @transform_3, window_bounds = array<i64: 1, 128>}, {pipeline_mode = #tpu.pipeline_mode<synchronous>, transform_indices = @transform_4, window_bounds = array<i64: 128, 256>}, {pipeline_mode = #tpu.pipeline_mode<synchronous>, transform_indices = @transform_5, window_bounds = array<i64: 1, 256>}, {pipeline_mode = #tpu.pipeline_mode<synchronous>, transform_indices = @transform_6, window_bounds = array<i64: 256, 128>}, {pipeline_mode = #tpu.pipeline_mode<synchronous>, transform_indices = @transform_7, window_bounds = array<i64: 1, 128>}, {pipeline_mode = #tpu.pipeline_mode<synchronous>, transform_indices = @transform_8, window_bounds = array<i64: 128, 128>}, {pipeline_mode = #tpu.pipeline_mode<synchronous>, transform_indices = @transform_9, window_bounds = array<i64: 1, 128>}, {transform_indices = @transform_10, window_bounds = array<i64: 16, 128>}]} {
    %c0 = arith.constant 0 : index
    %c0_0 = arith.constant 0 : index
    %0 = vector.load %arg1[%c0, %c0_0] : memref<16x128xbf16, #tpu.memory_space<vmem>>, vector<16x128xbf16>
    %c0_1 = arith.constant 0 : index
    %c0_2 = arith.constant 0 : index
    %1 = vector.load %arg3[%c0_1, %c0_2] : memref<128x128xbf16, #tpu.memory_space<vmem>>, vector<128x128xbf16>
    %cst = arith.constant dense<0.000000e+00> : vector<16x128xf32>
    %2 = tpu.matmul %0, %1, %cst {dimension_numbers = #tpu.dot_dimension_numbers<[1], [0], [0], [1], [0, 0, 1, 1], [], []>} : vector<16x128xbf16>, vector<128x128xbf16>, vector<16x128xf32> -> vector<16x128xf32>
    %c0_3 = arith.constant 0 : index
    %c0_4 = arith.constant 0 : index
    %3 = vector.load %arg4[%c0_3, %c0_4] : memref<1x128xf32, #tpu.memory_space<vmem>>, vector<1x128xf32>
    %4 = vector.broadcast %3 : vector<1x128xf32> to vector<16x128xf32>
    %5 = arith.addf %2, %4 : vector<16x128xf32>
    %c0_5 = arith.constant 0 : index
    %c0_6 = arith.constant 0 : index
    %6 = vector.load %arg2[%c0_5, %c0_6] : memref<16x128xbf16, #tpu.memory_space<vmem>>, vector<16x128xbf16>
    %7 = arith.extf %6 : vector<16x128xbf16> to vector<16x128xf32>
    %8 = arith.addf %5, %7 : vector<16x128xf32>
    %9 = arith.truncf %8 : vector<16x128xf32> to vector<16x128xbf16>
    %c0_7 = arith.constant 0 : index
    %c0_8 = arith.constant 0 : index
    %10 = vector.load %arg5[%c0_7, %c0_8] : memref<128x256xbf16, #tpu.memory_space<vmem>>, vector<128x256xbf16>
    %cst_9 = arith.constant dense<0.000000e+00> : vector<16x256xf32>
    %11 = tpu.matmul %9, %10, %cst_9 {dimension_numbers = #tpu.dot_dimension_numbers<[1], [0], [0], [1], [0, 0, 1, 1], [], []>} : vector<16x128xbf16>, vector<128x256xbf16>, vector<16x256xf32> -> vector<16x256xf32>
    %c0_10 = arith.constant 0 : index
    %c0_11 = arith.constant 0 : index
    %12 = vector.load %arg6[%c0_10, %c0_11] : memref<1x256xf32, #tpu.memory_space<vmem>>, vector<1x256xf32>
    %13 = vector.broadcast %12 : vector<1x256xf32> to vector<16x256xf32>
    %14 = arith.addf %11, %13 : vector<16x256xf32>
    %15 = arith.mulf %14, %14 : vector<16x256xf32>
    %16 = arith.mulf %14, %15 : vector<16x256xf32>
    %cst_12 = arith.constant 4.471500e-02 : f32
    %17 = vector.broadcast %cst_12 : f32 to vector<16x256xf32>
    %18 = arith.mulf %17, %16 : vector<16x256xf32>
    %19 = arith.addf %14, %18 : vector<16x256xf32>
    %cst_13 = arith.constant 0.797884583 : f32
    %20 = vector.broadcast %cst_13 : f32 to vector<16x256xf32>
    %21 = arith.mulf %20, %19 : vector<16x256xf32>
    %22 = math.tanh %21 : vector<16x256xf32>
    %cst_14 = arith.constant 1.000000e+00 : f32
    %23 = vector.broadcast %cst_14 : f32 to vector<16x256xf32>
    %24 = arith.addf %23, %22 : vector<16x256xf32>
    %cst_15 = arith.constant 5.000000e-01 : f32
    %25 = vector.broadcast %cst_15 : f32 to vector<16x256xf32>
    %26 = arith.mulf %25, %24 : vector<16x256xf32>
    %27 = arith.mulf %14, %26 : vector<16x256xf32>
    %28 = arith.truncf %27 : vector<16x256xf32> to vector<16x256xbf16>
    %c0_16 = arith.constant 0 : index
    %c0_17 = arith.constant 0 : index
    %29 = vector.load %arg7[%c0_16, %c0_17] : memref<256x128xbf16, #tpu.memory_space<vmem>>, vector<256x128xbf16>
    %cst_18 = arith.constant dense<0.000000e+00> : vector<16x128xf32>
    %30 = tpu.matmul %28, %29, %cst_18 {dimension_numbers = #tpu.dot_dimension_numbers<[1], [0], [0], [1], [0, 0, 1, 1], [], []>} : vector<16x256xbf16>, vector<256x128xbf16>, vector<16x128xf32> -> vector<16x128xf32>
    %31 = arith.addf %8, %30 : vector<16x128xf32>
    %c0_19 = arith.constant 0 : index
    %c0_20 = arith.constant 0 : index
    %32 = vector.load %arg8[%c0_19, %c0_20] : memref<1x128xf32, #tpu.memory_space<vmem>>, vector<1x128xf32>
    %33 = vector.broadcast %32 : vector<1x128xf32> to vector<16x128xf32>
    %34 = arith.addf %31, %33 : vector<16x128xf32>
    %35 = arith.truncf %34 : vector<16x128xf32> to vector<16x128xbf16>
    %c0_21 = arith.constant 0 : index
    %c0_22 = arith.constant 0 : index
    %36 = vector.load %arg9[%c0_21, %c0_22] : memref<128x128xbf16, #tpu.memory_space<vmem>>, vector<128x128xbf16>
    %cst_23 = arith.constant dense<0.000000e+00> : vector<16x128xf32>
    %37 = tpu.matmul %35, %36, %cst_23 {dimension_numbers = #tpu.dot_dimension_numbers<[1], [0], [0], [1], [0, 0, 1, 1], [], []>} : vector<16x128xbf16>, vector<128x128xbf16>, vector<16x128xf32> -> vector<16x128xf32>
    %c0_24 = arith.constant 0 : index
    %c0_25 = arith.constant 0 : index
    %38 = vector.load %arg10[%c0_24, %c0_25] : memref<1x128xf32, #tpu.memory_space<vmem>>, vector<1x128xf32>
    %39 = vector.broadcast %38 : vector<1x128xf32> to vector<16x128xf32>
    %40 = arith.addf %37, %39 : vector<16x128xf32>
    %41 = arith.truncf %40 : vector<16x128xf32> to vector<16x128xbf16>
    %c0_26 = arith.constant 0 : index
    %c0_27 = arith.constant 0 : index
    %42 = vector.load %arg11[%c0_26, %c0_27] : memref<16x128xbf16, #tpu.memory_space<vmem>>, vector<16x128xbf16>
    tpu.vector_store %arg11[%c0_26, %c0_27], %41 {strides = array<i32>} : memref<16x128xbf16, #tpu.memory_space<vmem>>, vector<16x128xbf16>,
    return
  }
  func.func @transform_0(%arg0: i32) -> (i32, i32) {
    %c0_i32 = arith.constant 0 : i32
    %c0_i32_0 = arith.constant 0 : i32
    return %arg0, %c0_i32 : i32, i32
  }
  func.func @transform_1(%arg0: i32) -> (i32, i32) {
    %c0_i32 = arith.constant 0 : i32
    %c0_i32_0 = arith.constant 0 : i32
    return %arg0, %c0_i32 : i32, i32
  }
  func.func @transform_2(%arg0: i32) -> (i32, i32) {
    %c0_i32 = arith.constant 0 : i32
    %c0_i32_0 = arith.constant 0 : i32
    %c0_i32_1 = arith.constant 0 : i32
    return %c0_i32, %c0_i32_0 : i32, i32
  }
  func.func @transform_3(%arg0: i32) -> (i32, i32) {
    %c0_i32 = arith.constant 0 : i32
    %c0_i32_0 = arith.constant 0 : i32
    %c0_i32_1 = arith.constant 0 : i32
    return %c0_i32, %c0_i32_0 : i32, i32
  }
  func.func @transform_4(%arg0: i32) -> (i32, i32) {
    %c0_i32 = arith.constant 0 : i32
    %c0_i32_0 = arith.constant 0 : i32
    %c0_i32_1 = arith.constant 0 : i32
    return %c0_i32, %c0_i32_0 : i32, i32
  }
  func.func @transform_5(%arg0: i32) -> (i32, i32) {
    %c0_i32 = arith.constant 0 : i32
    %c0_i32_0 = arith.constant 0 : i32
    %c0_i32_1 = arith.constant 0 : i32
    return %c0_i32, %c0_i32_0 : i32, i32
  }
  func.func @transform_6(%arg0: i32) -> (i32, i32) {
    %c0_i32 = arith.constant 0 : i32
    %c0_i32_0 = arith.constant 0 : i32
    %c0_i32_1 = arith.constant 0 : i32
    return %c0_i32, %c0_i32_0 : i32, i32
  }
  func.func @transform_7(%arg0: i32) -> (i32, i32) {
    %c0_i32 = arith.constant 0 : i32
    %c0_i32_0 = arith.constant 0 : i32
    %c0_i32_1 = arith.constant 0 : i32
    return %c0_i32, %c0_i32_0 : i32, i32
  }
  func.func @transform_8(%arg0: i32) -> (i32, i32) {
    %c0_i32 = arith.constant 0 : i32
    %c0_i32_0 = arith.constant 0 : i32
    %c0_i32_1 = arith.constant 0 : i32
    return %c0_i32, %c0_i32_0 : i32, i32
  }
  func.func @transform_9(%arg0: i32) -> (i32, i32) {
    %c0_i32 = arith.constant 0 : i32
    %c0_i32_0 = arith.constant 0 : i32
    %c0_i32_1 = arith.constant 0 : i32
    return %c0_i32, %c0_i32_0 : i32, i32
  }
  func.func @transform_10(%arg0: i32) -> (i32, i32) {
    %c0_i32 = arith.constant 0 : i32
    %c0_i32_0 = arith.constant 0 : i32
    return %arg0, %c0_i32 : i32, i32
  }
}

module attributes {stable_mosaic.version = 11 : i64} {
  func.func @_predictor_kernel(%arg0: i32, %arg1: memref<1x2x8x128xbf16, #tpu.memory_space<vmem>>, %arg2: memref<2x2x8x128xbf16, #tpu.memory_space<vmem>>, %arg3: memref<1x128xf32, #tpu.memory_space<vmem>>, %arg4: memref<128x256xbf16, #tpu.memory_space<vmem>>, %arg5: memref<1x256xf32, #tpu.memory_space<vmem>>, %arg6: memref<256x128xbf16, #tpu.memory_space<vmem>>, %arg7: memref<1x128xf32, #tpu.memory_space<vmem>>, %arg8: memref<128x128xbf16, #tpu.memory_space<vmem>>, %arg9: memref<1x128xf32, #tpu.memory_space<vmem>>, %arg10: memref<2x1x16x128xf32, #tpu.memory_space<vmem>>) attributes {dimension_semantics = [#tpu.dimension_semantics<parallel>], iteration_bounds = array<i64: 2>, scalar_prefetch = 0 : i64, scratch_operands = 0 : i64, tpu.core_type = #tpu.core_type<tc>, window_params = [{transform_indices = @transform_0, window_bounds = array<i64: 1, 2, 8, 128>}, {pipeline_mode = #tpu.pipeline_mode<synchronous>, transform_indices = @transform_1, window_bounds = array<i64: 2, 2, 8, 128>}, {pipeline_mode = #tpu.pipeline_mode<synchronous>, transform_indices = @transform_2, window_bounds = array<i64: 1, 128>}, {pipeline_mode = #tpu.pipeline_mode<synchronous>, transform_indices = @transform_3, window_bounds = array<i64: 128, 256>}, {pipeline_mode = #tpu.pipeline_mode<synchronous>, transform_indices = @transform_4, window_bounds = array<i64: 1, 256>}, {pipeline_mode = #tpu.pipeline_mode<synchronous>, transform_indices = @transform_5, window_bounds = array<i64: 256, 128>}, {pipeline_mode = #tpu.pipeline_mode<synchronous>, transform_indices = @transform_6, window_bounds = array<i64: 1, 128>}, {pipeline_mode = #tpu.pipeline_mode<synchronous>, transform_indices = @transform_7, window_bounds = array<i64: 128, 128>}, {pipeline_mode = #tpu.pipeline_mode<synchronous>, transform_indices = @transform_8, window_bounds = array<i64: 1, 128>}, {transform_indices = @transform_9, window_bounds = array<i64: 2, 1, 16, 128>}]} {
    %c0 = arith.constant 0 : index
    %c0_0 = arith.constant 0 : index
    %c0_1 = arith.constant 0 : index
    %c0_2 = arith.constant 0 : index
    %0 = vector.load %arg1[%c0, %c0_0, %c0_1, %c0_2] : memref<1x2x8x128xbf16, #tpu.memory_space<vmem>>, vector<1x2x8x128xbf16>
    %1 = vector.shape_cast %0 : vector<1x2x8x128xbf16> to vector<2x8x128xbf16>
    %2 = arith.extf %1 : vector<2x8x128xbf16> to vector<2x8x128xf32>
    %cst = arith.constant dense<0.000000e+00> : vector<2x128xf32>
    %3 = vector.multi_reduction <add>, %2, %cst [1] : vector<2x8x128xf32> to vector<2x128xf32>
    %cst_3 = arith.constant 8.000000e+00 : f32
    %4 = vector.broadcast %cst_3 : f32 to vector<2x128xf32>
    %5 = arith.divf %3, %4 : vector<2x128xf32>
    %c0_4 = arith.constant 0 : index
    %c0_5 = arith.constant 0 : index
    %6 = vector.load %arg3[%c0_4, %c0_5] : memref<1x128xf32, #tpu.memory_space<vmem>>, vector<1x128xf32>
    %7 = vector.broadcast %6 : vector<1x128xf32> to vector<2x128xf32>
    %8 = arith.addf %5, %7 : vector<2x128xf32>
    %c0_6 = arith.constant 0 : index
    %c0_7 = arith.constant 0 : index
    %c0_8 = arith.constant 0 : index
    %c0_9 = arith.constant 0 : index
    %9 = vector.load %arg2[%c0_6, %c0_7, %c0_8, %c0_9] : memref<2x2x8x128xbf16, #tpu.memory_space<vmem>>, vector<2x2x8x128xbf16>
    %10 = arith.extf %9 : vector<2x2x8x128xbf16> to vector<2x2x8x128xf32>
    %11 = vector.shape_cast %8 : vector<2x128xf32> to vector<1x2x1x128xf32>
    %12 = vector.broadcast %11 : vector<1x2x1x128xf32> to vector<2x2x8x128xf32>
    %13 = arith.addf %10, %12 : vector<2x2x8x128xf32>
    %14 = vector.shape_cast %13 : vector<2x2x8x128xf32> to vector<32x128xf32>
    %15 = arith.truncf %14 : vector<32x128xf32> to vector<32x128xbf16>
    %c0_10 = arith.constant 0 : index
    %c0_11 = arith.constant 0 : index
    %16 = vector.load %arg4[%c0_10, %c0_11] : memref<128x256xbf16, #tpu.memory_space<vmem>>, vector<128x256xbf16>
    %cst_12 = arith.constant dense<0.000000e+00> : vector<32x256xf32>
    %17 = tpu.matmul %15, %16, %cst_12 {dimension_numbers = #tpu.dot_dimension_numbers<[1], [0], [0], [1], [0, 0, 1, 1], [], []>} : vector<32x128xbf16>, vector<128x256xbf16>, vector<32x256xf32> -> vector<32x256xf32>
    %c0_13 = arith.constant 0 : index
    %c0_14 = arith.constant 0 : index
    %18 = vector.load %arg5[%c0_13, %c0_14] : memref<1x256xf32, #tpu.memory_space<vmem>>, vector<1x256xf32>
    %19 = vector.broadcast %18 : vector<1x256xf32> to vector<32x256xf32>
    %20 = arith.addf %17, %19 : vector<32x256xf32>
    %21 = arith.mulf %20, %20 : vector<32x256xf32>
    %22 = arith.mulf %20, %21 : vector<32x256xf32>
    %cst_15 = arith.constant 4.471500e-02 : f32
    %23 = vector.broadcast %cst_15 : f32 to vector<32x256xf32>
    %24 = arith.mulf %23, %22 : vector<32x256xf32>
    %25 = arith.addf %20, %24 : vector<32x256xf32>
    %cst_16 = arith.constant 0.797884583 : f32
    %26 = vector.broadcast %cst_16 : f32 to vector<32x256xf32>
    %27 = arith.mulf %26, %25 : vector<32x256xf32>
    %28 = math.tanh %27 : vector<32x256xf32>
    %cst_17 = arith.constant 1.000000e+00 : f32
    %29 = vector.broadcast %cst_17 : f32 to vector<32x256xf32>
    %30 = arith.addf %29, %28 : vector<32x256xf32>
    %cst_18 = arith.constant 5.000000e-01 : f32
    %31 = vector.broadcast %cst_18 : f32 to vector<32x256xf32>
    %32 = arith.mulf %31, %30 : vector<32x256xf32>
    %33 = arith.mulf %20, %32 : vector<32x256xf32>
    %34 = arith.truncf %33 : vector<32x256xf32> to vector<32x256xbf16>
    %c0_19 = arith.constant 0 : index
    %c0_20 = arith.constant 0 : index
    %35 = vector.load %arg6[%c0_19, %c0_20] : memref<256x128xbf16, #tpu.memory_space<vmem>>, vector<256x128xbf16>
    %cst_21 = arith.constant dense<0.000000e+00> : vector<32x128xf32>
    %36 = tpu.matmul %34, %35, %cst_21 {dimension_numbers = #tpu.dot_dimension_numbers<[1], [0], [0], [1], [0, 0, 1, 1], [], []>} : vector<32x256xbf16>, vector<256x128xbf16>, vector<32x128xf32> -> vector<32x128xf32>
    %37 = arith.addf %14, %36 : vector<32x128xf32>
    %c0_22 = arith.constant 0 : index
    %c0_23 = arith.constant 0 : index
    %38 = vector.load %arg7[%c0_22, %c0_23] : memref<1x128xf32, #tpu.memory_space<vmem>>, vector<1x128xf32>
    %39 = vector.broadcast %38 : vector<1x128xf32> to vector<32x128xf32>
    %40 = arith.addf %37, %39 : vector<32x128xf32>
    %41 = arith.truncf %40 : vector<32x128xf32> to vector<32x128xbf16>
    %c0_24 = arith.constant 0 : index
    %c0_25 = arith.constant 0 : index
    %42 = vector.load %arg8[%c0_24, %c0_25] : memref<128x128xbf16, #tpu.memory_space<vmem>>, vector<128x128xbf16>
    %cst_26 = arith.constant dense<0.000000e+00> : vector<32x128xf32>
    %43 = tpu.matmul %41, %42, %cst_26 {dimension_numbers = #tpu.dot_dimension_numbers<[1], [0], [0], [1], [0, 0, 1, 1], [], []>} : vector<32x128xbf16>, vector<128x128xbf16>, vector<32x128xf32> -> vector<32x128xf32>
    %c0_27 = arith.constant 0 : index
    %c0_28 = arith.constant 0 : index
    %44 = vector.load %arg9[%c0_27, %c0_28] : memref<1x128xf32, #tpu.memory_space<vmem>>, vector<1x128xf32>
    %45 = vector.broadcast %44 : vector<1x128xf32> to vector<32x128xf32>
    %46 = arith.addf %43, %45 : vector<32x128xf32>
    %47 = vector.shape_cast %46 : vector<32x128xf32> to vector<2x1x16x128xf32>
    %c0_29 = arith.constant 0 : index
    %c0_30 = arith.constant 0 : index
    %c0_31 = arith.constant 0 : index
    %c0_32 = arith.constant 0 : index
    %48 = vector.load %arg10[%c0_29, %c0_30, %c0_31, %c0_32] : memref<2x1x16x128xf32, #tpu.memory_space<vmem>>, vector<2x1x16x128xf32>
    tpu.vector_store %arg10[%c0_29, %c0_30, %c0_31, %c0_32], %47 {strides = array<i32>} : memref<2x1x16x128xf32, #tpu.memory_space<vmem>>, vector<2x1x16x128xf32>,
    return
  }
  func.func @transform_0(%arg0: i32) -> (i32, i32, i32, i32) {
    %c0_i32 = arith.constant 0 : i32
    %c0_i32_0 = arith.constant 0 : i32
    %c0_i32_1 = arith.constant 0 : i32
    %c0_i32_2 = arith.constant 0 : i32
    return %arg0, %c0_i32, %c0_i32_0, %c0_i32_1 : i32, i32, i32, i32
  }
  func.func @transform_1(%arg0: i32) -> (i32, i32, i32, i32) {
    %c0_i32 = arith.constant 0 : i32
    %c0_i32_0 = arith.constant 0 : i32
    %c0_i32_1 = arith.constant 0 : i32
    %c0_i32_2 = arith.constant 0 : i32
    %c0_i32_3 = arith.constant 0 : i32
    return %c0_i32, %c0_i32_0, %c0_i32_1, %c0_i32_2 : i32, i32, i32, i32
  }
  func.func @transform_2(%arg0: i32) -> (i32, i32) {
    %c0_i32 = arith.constant 0 : i32
    %c0_i32_0 = arith.constant 0 : i32
    %c0_i32_1 = arith.constant 0 : i32
    return %c0_i32, %c0_i32_0 : i32, i32
  }
  func.func @transform_3(%arg0: i32) -> (i32, i32) {
    %c0_i32 = arith.constant 0 : i32
    %c0_i32_0 = arith.constant 0 : i32
    %c0_i32_1 = arith.constant 0 : i32
    return %c0_i32, %c0_i32_0 : i32, i32
  }
  func.func @transform_4(%arg0: i32) -> (i32, i32) {
    %c0_i32 = arith.constant 0 : i32
    %c0_i32_0 = arith.constant 0 : i32
    %c0_i32_1 = arith.constant 0 : i32
    return %c0_i32, %c0_i32_0 : i32, i32
  }
  func.func @transform_5(%arg0: i32) -> (i32, i32) {
    %c0_i32 = arith.constant 0 : i32
    %c0_i32_0 = arith.constant 0 : i32
    %c0_i32_1 = arith.constant 0 : i32
    return %c0_i32, %c0_i32_0 : i32, i32
  }
  func.func @transform_6(%arg0: i32) -> (i32, i32) {
    %c0_i32 = arith.constant 0 : i32
    %c0_i32_0 = arith.constant 0 : i32
    %c0_i32_1 = arith.constant 0 : i32
    return %c0_i32, %c0_i32_0 : i32, i32
  }
  func.func @transform_7(%arg0: i32) -> (i32, i32) {
    %c0_i32 = arith.constant 0 : i32
    %c0_i32_0 = arith.constant 0 : i32
    %c0_i32_1 = arith.constant 0 : i32
    return %c0_i32, %c0_i32_0 : i32, i32
  }
  func.func @transform_8(%arg0: i32) -> (i32, i32) {
    %c0_i32 = arith.constant 0 : i32
    %c0_i32_0 = arith.constant 0 : i32
    %c0_i32_1 = arith.constant 0 : i32
    return %c0_i32, %c0_i32_0 : i32, i32
  }
  func.func @transform_9(%arg0: i32) -> (i32, i32, i32, i32) {
    %c0_i32 = arith.constant 0 : i32
    %c0_i32_0 = arith.constant 0 : i32
    %c0_i32_1 = arith.constant 0 : i32
    %c0_i32_2 = arith.constant 0 : i32
    return %c0_i32, %arg0, %c0_i32_0, %c0_i32_1 : i32, i32, i32, i32
  }
}

</mosaic_0001>

<llo_original>
// kernel: ijepa_forward.4
$region0: #{ijepa_forward.4}
  #allocation0 [shape = 'u32[]', space=smem, size = 0x4, offset = 0x4, fixed_abs, tag = 'smem constant byte address 0x4 - core index']
  #allocation1 [shape = 'u32[144,128]{1,0:T(1,128)}', space=vmem, size = 0x12000, scoped, tag = 'internal scratch']
  #allocation4 [shape = 's32[]', space=sflag, size = 0x4, offset = 0, fixed_abs, tag = 'sflag constant byte address 0x0 - dummy sync flag']
  %s0 = inlined_call_operand.vmem [shape: bf16[2,2,8,128], index: 0, kind: input, shape index: {}]
  %s1 = inlined_call_operand.vmem [shape: bf16[2,2,8,128], index: 1, kind: input, shape index: {}]
  %s2 = inlined_call_operand.vmem [shape: f32[1,128], index: 2, kind: input, shape index: {}]
  %s3 = inlined_call_operand.vmem [shape: bf16[128,256], index: 3, kind: input, shape index: {}]
  %s4 = inlined_call_operand.vmem [shape: f32[1,256], index: 4, kind: input, shape index: {}]
  %s5 = inlined_call_operand.vmem [shape: bf16[256,128], index: 5, kind: input, shape index: {}]
  %s6 = inlined_call_operand.vmem [shape: f32[1,128], index: 6, kind: input, shape index: {}]
  %s7 = inlined_call_operand.vmem [shape: bf16[128,128], index: 7, kind: input, shape index: {}]
  %s8 = inlined_call_operand.vmem [shape: f32[1,128], index: 8, kind: input, shape index: {}]
  %s9 = inlined_call_operand.hbm [shape: f32[2,2,16,128], index: 9, kind: output, shape index: {}]
  %s10 = sld [smem:[#allocation0]]
  $region69: #{ijepa_forward.4} parent=0
    _
  %s12 = ssub.s32 1, %s10
  %s13 = scalar_select 0, %s12, %s10
  $region1: #{ijepa_forward.4} parent=0
    #allocation2 [shape = 'u8[32768]{0}', space=vmem, size = 0x8000, scoped, tag = 'output window, operand 0']
    #allocation3 [shape = 's32[2]{0}', space=sflag, size = 0x8, scoped, tag = 'scoped memory for ijepa_forward.4']
    %14 = vsyncpa [#allocation3], 0
    %s15 = scalar_lea.sflag [#allocation3], 1
    %16 = vsyncpa %s15, 0
    loop: start=0, step=1, limit=4
    $region2: #{ijepa_forward.4} parent=1 // loop_pre_header
      _
    $region3: #{ijepa_forward.4} parent=1 // loop_header
      %s18 = sphi 0, %s22
      %p19 = scmp.ge.s32.totalorder %s18, 4
      %s28 = sphi 0, %s30
      %s31 = sphi 0, %s28
      %s32 = sphi 0, %s31
      %s48 = sphi 0, %s32
      %s52 = sphi 0, %s52
      %s54 = sphi 0, %s52
      %s55 = sphi 0, %s54
      %s69 = sphi 0, %s55
      %s73 = sphi 0, %s73
      %s75 = sphi 0, %s73
      %s76 = sphi 0, %s75
      %s90 = sphi 0, %s76
      %s94 = sphi 0, %s94
      %s96 = sphi 0, %s94
      %s97 = sphi 0, %s96
      %s111 = sphi 0, %s97
      %s115 = sphi 0, %s115
      %s117 = sphi 0, %s115
      %s118 = sphi 0, %s117
      %s132 = sphi 0, %s118
      %s136 = sphi 0, %s136
      %s138 = sphi 0, %s136
      %s139 = sphi 0, %s138
      %s153 = sphi 0, %s139
      %s157 = sphi 0, %s157
      %s159 = sphi 0, %s157
      %s160 = sphi 0, %s159
      %s174 = sphi 0, %s160
      %s178 = sphi 0, %s178
      %s180 = sphi 0, %s178
      %s181 = sphi 0, %s180
      %s195 = sphi 0, %s181
      %s199 = sphi 0, %s199
      %s201 = sphi 0, %s199
      %s202 = sphi 0, %s201
      %s216 = sphi 0, %s202
      %s222 = sphi 0, %s224
      %s225 = sphi 0, %s222
      %s226 = sphi 0, %s225
      %s242 = sphi 0, %s226
    $region4: #{ijepa_forward.4} parent=1 // loop_header_branch
      %21 = sbr.rel (%p19) target = $region8
    $region5: #{ijepa_forward.4} parent=1 // loop_body
      %s23 = ssub.s32 %s18, 1
      %s24 = ssub.s32 %s18, 2
      %s25 = sadd.s32 %s18, 1
      %s26 = ssub.s32 %s18, %s25
      %p27 = scmp.eq.s32.totalorder %s26, 0
      %s29 = sadd.s32 %s28, 1
      %s30 = scalar_select %p27, %s28, %s29
      %p33 = pneg %p27
      %p34 = scmp.eq.s32.totalorder %s18, 1
      %p35 = por %p33, %p34
      %p36 = scmp.ne.s32.totalorder %s28, %s31
      %p37 = scmp.eq.s32.totalorder %s18, 0
      %p38 = por %p36, %p37
      %p39 = scmp.ne.s32.totalorder %s28, %s31
      %p40 = scmp.eq.s32.totalorder %s23, 1
      %p41 = por %p39, %p40
      %p42 = scmp.ne.s32.totalorder %s31, %s32
      %p43 = scmp.eq.s32.totalorder %s23, 0
      %p44 = por %p42, %p43
      %p45 = scmp.ne.s32.totalorder %s31, %s32
      %p46 = scmp.eq.s32.totalorder %s24, 1
      %p47 = por %p45, %p46
      %p49 = scmp.ne.s32.totalorder %s32, %s48
      %p50 = scmp.eq.s32.totalorder %s24, 0
      %p51 = por %p49, %p50
      %s53 = sadd.s32 %s52, 1
      %p56 = scmp.eq.s32.totalorder %s18, 1
      %p57 = scmp.ne.s32.totalorder %s52, %s54
      %p58 = scmp.eq.s32.totalorder %s18, 0
      %p59 = por %p57, %p58
      %p60 = scmp.ne.s32.totalorder %s52, %s54
      %p61 = scmp.eq.s32.totalorder %s23, 1
      %p62 = por %p60, %p61
      %p63 = scmp.ne.s32.totalorder %s54, %s55
      %p64 = scmp.eq.s32.totalorder %s23, 0
      %p65 = por %p63, %p64
      %p66 = scmp.ne.s32.totalorder %s54, %s55
      %p67 = scmp.eq.s32.totalorder %s24, 1
      %p68 = por %p66, %p67
      %p70 = scmp.ne.s32.totalorder %s55, %s69
      %p71 = scmp.eq.s32.totalorder %s24, 0
      %p72 = por %p70, %p71
      %s74 = sadd.s32 %s73, 1
      %p77 = scmp.eq.s32.totalorder %s18, 1
      %p78 = scmp.ne.s32.totalorder %s73, %s75
      %p79 = scmp.eq.s32.totalorder %s18, 0
      %p80 = por %p78, %p79
      %p81 = scmp.ne.s32.totalorder %s73, %s75
      %p82 = scmp.eq.s32.totalorder %s23, 1
      %p83 = por %p81, %p82
      %p84 = scmp.ne.s32.totalorder %s75, %s76
      %p85 = scmp.eq.s32.totalorder %s23, 0
      %p86 = por %p84, %p85
      %p87 = scmp.ne.s32.totalorder %s75, %s76
      %p88 = scmp.eq.s32.totalorder %s24, 1
      %p89 = por %p87, %p88
      %p91 = scmp.ne.s32.totalorder %s76, %s90
      %p92 = scmp.eq.s32.totalorder %s24, 0
      %p93 = por %p91, %p92
      %s95 = sadd.s32 %s94, 1
      %p98 = scmp.eq.s32.totalorder %s18, 1
      %p99 = scmp.ne.s32.totalorder %s94, %s96
      %p100 = scmp.eq.s32.totalorder %s18, 0
      %p101 = por %p99, %p100
      %p102 = scmp.ne.s32.totalorder %s94, %s96
      %p103 = scmp.eq.s32.totalorder %s23, 1
      %p104 = por %p102, %p103
      %p105 = scmp.ne.s32.totalorder %s96, %s97
      %p106 = scmp.eq.s32.totalorder %s23, 0
      %p107 = por %p105, %p106
      %p108 = scmp.ne.s32.totalorder %s96, %s97
      %p109 = scmp.eq.s32.totalorder %s24, 1
      %p110 = por %p108, %p109
      %p112 = scmp.ne.s32.totalorder %s97, %s111
      %p113 = scmp.eq.s32.totalorder %s24, 0
      %p114 = por %p112, %p113
      %s116 = sadd.s32 %s115, 1
      %p119 = scmp.eq.s32.totalorder %s18, 1
      %p120 = scmp.ne.s32.totalorder %s115, %s117
      %p121 = scmp.eq.s32.totalorder %s18, 0
      %p122 = por %p120, %p121
      %p123 = scmp.ne.s32.totalorder %s115, %s117
      %p124 = scmp.eq.s32.totalorder %s23, 1
      %p125 = por %p123, %p124
      %p126 = scmp.ne.s32.totalorder %s117, %s118
      %p127 = scmp.eq.s32.totalorder %s23, 0
      %p128 = por %p126, %p127
      %p129 = scmp.ne.s32.totalorder %s117, %s118
      %p130 = scmp.eq.s32.totalorder %s24, 1
      %p131 = por %p129, %p130
      %p133 = scmp.ne.s32.totalorder %s118, %s132
      %p134 = scmp.eq.s32.totalorder %s24, 0
      %p135 = por %p133, %p134
      %s137 = sadd.s32 %s136, 1
      %p140 = scmp.eq.s32.totalorder %s18, 1
      %p141 = scmp.ne.s32.totalorder %s136, %s138
      %p142 = scmp.eq.s32.totalorder %s18, 0
      %p143 = por %p141, %p142
      %p144 = scmp.ne.s32.totalorder %s136, %s138
      %p145 = scmp.eq.s32.totalorder %s23, 1
      %p146 = por %p144, %p145
      %p147 = scmp.ne.s32.totalorder %s138, %s139
      %p148 = scmp.eq.s32.totalorder %s23, 0
      %p149 = por %p147, %p148
      %p150 = scmp.ne.s32.totalorder %s138, %s139
      %p151 = scmp.eq.s32.totalorder %s24, 1
      %p152 = por %p150, %p151
      %p154 = scmp.ne.s32.totalorder %s139, %s153
      %p155 = scmp.eq.s32.totalorder %s24, 0
      %p156 = por %p154, %p155
      %s158 = sadd.s32 %s157, 1
      %p161 = scmp.eq.s32.totalorder %s18, 1
      %p162 = scmp.ne.s32.totalorder %s157, %s159
      %p163 = scmp.eq.s32.totalorder %s18, 0
      %p164 = por %p162, %p163
      %p165 = scmp.ne.s32.totalorder %s157, %s159
      %p166 = scmp.eq.s32.totalorder %s23, 1
      %p167 = por %p165, %p166
      %p168 = scmp.ne.s32.totalorder %s159, %s160
      %p169 = scmp.eq.s32.totalorder %s23, 0
      %p170 = por %p168, %p169
      %p171 = scmp.ne.s32.totalorder %s159, %s160
      %p172 = scmp.eq.s32.totalorder %s24, 1
      %p173 = por %p171, %p172
      %p175 = scmp.ne.s32.totalorder %s160, %s174
      %p176 = scmp.eq.s32.totalorder %s24, 0
      %p177 = por %p175, %p176
      %s179 = sadd.s32 %s178, 1
      %p182 = scmp.eq.s32.totalorder %s18, 1
      %p183 = scmp.ne.s32.totalorder %s178, %s180
      %p184 = scmp.eq.s32.totalorder %s18, 0
      %p185 = por %p183, %p184
      %p186 = scmp.ne.s32.totalorder %s178, %s180
      %p187 = scmp.eq.s32.totalorder %s23, 1
      %p188 = por %p186, %p187
      %p189 = scmp.ne.s32.totalorder %s180, %s181
      %p190 = scmp.eq.s32.totalorder %s23, 0
      %p191 = por %p189, %p190
      %p192 = scmp.ne.s32.totalorder %s180, %s181
      %p193 = scmp.eq.s32.totalorder %s24, 1
      %p194 = por %p192, %p193
      %p196 = scmp.ne.s32.totalorder %s181, %s195
      %p197 = scmp.eq.s32.totalorder %s24, 0
      %p198 = por %p196, %p197
      %s200 = sadd.s32 %s199, 1
      %p203 = scmp.eq.s32.totalorder %s18, 1
      %p204 = scmp.ne.s32.totalorder %s199, %s201
      %p205 = scmp.eq.s32.totalorder %s18, 0
      %p206 = por %p204, %p205
      %p207 = scmp.ne.s32.totalorder %s199, %s201
      %p208 = scmp.eq.s32.totalorder %s23, 1
      %p209 = por %p207, %p208
      %p210 = scmp.ne.s32.totalorder %s201, %s202
      %p211 = scmp.eq.s32.totalorder %s23, 0
      %p212 = por %p210, %p211
      %p213 = scmp.ne.s32.totalorder %s201, %s202
      %p214 = scmp.eq.s32.totalorder %s24, 1
      %p215 = por %p213, %p214
      %p217 = scmp.ne.s32.totalorder %s202, %s216
      %p218 = scmp.eq.s32.totalorder %s24, 0
      %p219 = por %p217, %p218
      %s220 = ssub.s32 %s18, %s25
      %p221 = scmp.eq.s32.totalorder %s220, 0
      %s223 = sadd.s32 %s222, 1
      %s224 = scalar_select %p221, %s222, %s223
      %p227 = pneg %p221
      %p228 = scmp.eq.s32.totalorder %s18, 1
      %p229 = por %p227, %p228
      %p230 = scmp.ne.s32.totalorder %s222, %s225
      %p231 = scmp.eq.s32.totalorder %s18, 0
      %p232 = por %p230, %p231
      %p233 = scmp.ne.s32.totalorder %s222, %s225
      %p234 = scmp.eq.s32.totalorder %s23, 1
      %p235 = por %p233, %p234
      %p236 = scmp.ne.s32.totalorder %s225, %s226
      %p237 = scmp.eq.s32.totalorder %s23, 0
      %p238 = por %p236, %p237
      %p239 = scmp.ne.s32.totalorder %s225, %s226
      %p240 = scmp.eq.s32.totalorder %s24, 1
      %p241 = por %p239, %p240
      %p243 = scmp.ne.s32.totalorder %s226, %s242
      %p244 = scmp.eq.s32.totalorder %s24, 0
      %p245 = por %p243, %p244
      %p246 = scmp.le.s32.totalorder 1, %s18
      %p247 = scmp.lt.s32.totalorder %s18, 3
      %p248 = pnand %p246, %p247
      %p249 = pneg %p248
      // Predicated region
      $region9: #{ijepa_forward.4} parent=5 // pred_check
        _
      $region10: #{ijepa_forward.4} parent=5 // pred_check_branch
        %251 = sbr.rel (%p248) target = $region12
      $region11: #{ijepa_forward.4} parent=5 // pred_region
        %s252 = ssub.s32 %s18, 1
        // Predicated region
        $region13: #{ijepa_forward.4} parent=11 // pred_check
          %p253 = pneg %p65
        $region14: #{ijepa_forward.4} parent=11 // pred_check_branch
          %255 = sbr.rel (%p253) target = $region16
        $region15: #{ijepa_forward.4} parent=11 // pred_region
          _
        $region16: #{ijepa_forward.4} parent=11 // pred_fallthru
          _
        // Predicated region
        $region17: #{ijepa_forward.4} parent=11 // pred_check
          %p256 = pneg %p86
        $region18: #{ijepa_forward.4} parent=11 // pred_check_branch
          %258 = sbr.rel (%p256) target = $region20
        $region19: #{ijepa_forward.4} parent=11 // pred_region
          _
        $region20: #{ijepa_forward.4} parent=11 // pred_fallthru
          _
        // Predicated region
        $region21: #{ijepa_forward.4} parent=11 // pred_check
          %p259 = pneg %p107
        $region22: #{ijepa_forward.4} parent=11 // pred_check_branch
          %261 = sbr.rel (%p259) target = $region24
        $region23: #{ijepa_forward.4} parent=11 // pred_region
          _
        $region24: #{ijepa_forward.4} parent=11 // pred_fallthru
          _
        // Predicated region
        $region25: #{ijepa_forward.4} parent=11 // pred_check
          %p262 = pneg %p128
        $region26: #{ijepa_forward.4} parent=11 // pred_check_branch
          %264 = sbr.rel (%p262) target = $region28
        $region27: #{ijepa_forward.4} parent=11 // pred_region
          _
        $region28: #{ijepa_forward.4} parent=11 // pred_fallthru
          _
        // Predicated region
        $region29: #{ijepa_forward.4} parent=11 // pred_check
          %p265 = pneg %p149
        $region30: #{ijepa_forward.4} parent=11 // pred_check_branch
          %267 = sbr.rel (%p265) target = $region32
        $region31: #{ijepa_forward.4} parent=11 // pred_region
          _
        $region32: #{ijepa_forward.4} parent=11 // pred_fallthru
          _
        // Predicated region
        $region33: #{ijepa_forward.4} parent=11 // pred_check
          %p268 = pneg %p170
        $region34: #{ijepa_forward.4} parent=11 // pred_check_branch
          %270 = sbr.rel (%p268) target = $region36
        $region35: #{ijepa_forward.4} parent=11 // pred_region
          _
        $region36: #{ijepa_forward.4} parent=11 // pred_fallthru
          _
        // Predicated region
        $region37: #{ijepa_forward.4} parent=11 // pred_check
          %p271 = pneg %p191
        $region38: #{ijepa_forward.4} parent=11 // pred_check_branch
          %273 = sbr.rel (%p271) target = $region40
        $region39: #{ijepa_forward.4} parent=11 // pred_region
          _
        $region40: #{ijepa_forward.4} parent=11 // pred_fallthru
          _
        // Predicated region
        $region41: #{ijepa_forward.4} parent=11 // pred_check
          %p274 = pneg %p212
        $region42: #{ijepa_forward.4} parent=11 // pred_check_branch
          %276 = sbr.rel (%p274) target = $region44
        $region43: #{ijepa_forward.4} parent=11 // pred_region
          _
        $region44: #{ijepa_forward.4} parent=11 // pred_fallthru
          _
      $region12: #{ijepa_forward.4} parent=5 // pred_fallthru
        _
      %p277 = scmp.lt.s32.totalorder %s18, 2
      // Predicated region
      $region45: #{ijepa_forward.4} parent=5 // pred_check
        %p278 = pneg %p277
      $region46: #{ijepa_forward.4} parent=5 // pred_check_branch
        %280 = sbr.rel (%p278) target = $region48
      $region47: #{ijepa_forward.4} parent=5 // pred_region
        // Predicated region
        $region49: #{ijepa_forward.4} parent=47 // pred_check
          %p281 = pneg %p38
        $region50: #{ijepa_forward.4} parent=47 // pred_check_branch
          %283 = sbr.rel (%p281) target = $region52
        $region51: #{ijepa_forward.4} parent=47 // pred_region
          %p284 = scmp.lt.s32.totalorder %s18, 1
          %s285 = scalar_select %p284, %s18, 1
          %s286 = smul.addr %s285, 2
          %s287 = smul.addr %s286, 4
          %s288 = scalar_lea.vmem %s0, %s287
        $region52: #{ijepa_forward.4} parent=47 // pred_fallthru
          _
      $region48: #{ijepa_forward.4} parent=5 // pred_fallthru
        _
      %p289 = scmp.le.s32.totalorder 1, %s18
      %p290 = scmp.lt.s32.totalorder %s18, 3
      %p291 = pnand %p289, %p290
      %p292 = pneg %p291
      // Predicated region
      $region53: #{ijepa_forward.4} parent=5 // pred_check
        _
      $region54: #{ijepa_forward.4} parent=5 // pred_check_branch
        %294 = sbr.rel (%p291) target = $region56
      $region55: #{ijepa_forward.4} parent=5 // pred_region
        %s295 = ssub.s32 %s18, 1
        %p296 = scmp.lt.s32.totalorder %s23, 1
        %s297 = scalar_select %p296, %s23, 1
        %s298 = smul.addr %s297, 2
        %s299 = smul.addr %s298, 4
        %s300 = scalar_lea.vmem %s0, %s299
        %p301 = pneg %p44
        %p302 = pneg %p41
        %p303 = pneg %p65
        %p304 = pneg %p62
        %p305 = pneg %p86
        %p306 = pneg %p83
        %p307 = pneg %p107
        %p308 = pneg %p104
        %p309 = pneg %p128
        %p310 = pneg %p125
        %p311 = pneg %p149
        %p312 = pneg %p146
        %p313 = pneg %p170
        %p314 = pneg %p167
        %p315 = pneg %p191
        %p316 = pneg %p188
        %p317 = pneg %p212
        %p318 = pneg %p209
        %p319 = pneg %p238
        %p320 = pneg %p235
        %s321 = sand.u32 %s225, 1
        %s322 = scalar_lea.sflag [#allocation3], %s321
        %s323 = sand.u32 %s225, 1
        %s324 = smul.addr %s323, 32
        %s325 = scalar_lea.vmem [#allocation2], %s324
        %p326 = scmp.lt.s32.totalorder %s23, 1
        %s327 = scalar_select %p326, %s23, 1
        %s328 = smul.addr %s327, 2
        %s329 = smul.addr %s328, 4
        %s330 = scalar_lea.vmem %s0, %s329
        %v332 = vld [vmem:[%s330] sm:$0xf]
        %v333 = vld [vmem:[%s330 + $0x4] sm:$0xf]
        %v334 = vunpack.c.l.bf16 %v332
        %v335 = vunpack.c.l.bf16 %v333
        %v336 = vrot.slane %v334, 4
        %v337 = vadd.f32 %v334, %v336
        %v338 = vrot.slane %v337, 2
        %v339 = vadd.f32 %v337, %v338
        %v340 = vrot.slane %v339, 1
        %v341 = vadd.f32 %v339, %v340
        %v342 = vrot.slane %v335, 4
        %v343 = vadd.f32 %v335, %v342
        %v344 = vrot.slane %v343, 2
        %v345 = vadd.f32 %v343, %v344
        %v346 = vrot.slane %v345, 1
        %v347 = vadd.f32 %v345, %v346
        %v348 = vrcp.pop 8.0
        %v349 = vmul.f32 %v341, %v348
        %v350 = vmul.f32 %v347, %v348
        %v351 = vld [vmem:[%s2] sm:$0x1]
        %v353 = vlaneseq
        %v354 = vshrl.u32 %v353, 7
        %v355 = vsub.s32 0, %v354
        %v356 = vrot.slane %v351, %v355
        %v358 = vadd.f32 %v349, %v356
        %v359 = vadd.f32 %v350, %v356
        %v360 = vld [vmem:[%s1] sm:$0xf]
        %v361 = vld [vmem:[%s1 + $0x4] sm:$0xf]
        %v362 = vld [vmem:[%s1 + $0x8] sm:$0xf]
        %v363 = vld [vmem:[%s1 + $0xc] sm:$0xf]
        %v364 = vunpack.c.l.bf16 %v360
        %v365 = vunpack.c.l.bf16 %v361
        %v366 = vunpack.c.l.bf16 %v362
        %v367 = vunpack.c.l.bf16 %v363
        %v368 = vlaneseq
        %v369 = vshrl.u32 %v368, 7
        %v370 = vsub.s32 0, %v369
        %v371 = vrot.slane %v358, %v370
        %v372 = vlaneseq
        %v373 = vshrl.u32 %v372, 7
        %v374 = vsub.s32 0, %v373
        %v375 = vrot.slane %v359, %v374
        %v376 = vadd.f32 %v364, %v371
        %v377 = vadd.f32 %v365, %v375
        %v378 = vadd.f32 %v366, %v371
        %v379 = vadd.f32 %v367, %v375
        %v380 = vpack.c.bf16 %v377, %v376
        %v381 = vpack.c.bf16 %v379, %v378
        %v382 = vld [vmem:[%s3] sm:$0xff]
        %v383 = vld [vmem:[%s3 + $0x8] sm:$0xff]
        %v384 = vld [vmem:[%s3 + $0x10] sm:$0xff]
        %v385 = vld [vmem:[%s3 + $0x18] sm:$0xff]
        %v386 = vld [vmem:[%s3 + $0x20] sm:$0xff]
        %v387 = vld [vmem:[%s3 + $0x28] sm:$0xff]
        %v388 = vld [vmem:[%s3 + $0x30] sm:$0xff]
        %v389 = vld [vmem:[%s3 + $0x38] sm:$0xff]
        %v390 = vld [vmem:[%s3 + $0x40] sm:$0xff]
        %v391 = vld [vmem:[%s3 + $0x48] sm:$0xff]
        %v392 = vld [vmem:[%s3 + $0x50] sm:$0xff]
        %v393 = vld [vmem:[%s3 + $0x58] sm:$0xff]
        %v394 = vld [vmem:[%s3 + $0x60] sm:$0xff]
        %v395 = vld [vmem:[%s3 + $0x68] sm:$0xff]
        %v396 = vld [vmem:[%s3 + $0x70] sm:$0xff]
        %v397 = vld [vmem:[%s3 + $0x78] sm:$0xff]
        %v398 = vld [vmem:[%s4] sm:$0x3]
        %v400 = vlaneseq
        %v401 = vshrl.u32 %v400, 7
        %v402 = vsub.s32 0, %v401
        %v403 = vrot.slane %v398, %v402
        %v404 = vlaneseq
        %v405 = vshrl.u32 %v404, 7
        %v406 = vsub.s32 1, %v405
        %v407 = vrot.slane %v398, %v406
        %v426 = vunpack.c.l.b16 %v382
        %v427 = vunpack.c.h.b16 %v382
        %v428 = vunpack.c.l.b16 %v383
        %v429 = vunpack.c.h.b16 %v383
        %v430 = vunpack.c.l.b16 %v384
        %v431 = vunpack.c.h.b16 %v384
        %v432 = vunpack.c.l.b16 %v385
        %v433 = vunpack.c.h.b16 %v385
        %v434 = vunpack.c.l.b16 %v386
        %v435 = vunpack.c.h.b16 %v386
        %v436 = vunpack.c.l.b16 %v387
        %v437 = vunpack.c.h.b16 %v387
        %v438 = vunpack.c.l.b16 %v388
        %v439 = vunpack.c.h.b16 %v388
        %v440 = vunpack.c.l.b16 %v389
        %v441 = vunpack.c.h.b16 %v389
        %v442 = vunpack.c.l.b16 %v390
        %v443 = vunpack.c.h.b16 %v390
        %v444 = vunpack.c.l.b16 %v391
        %v445 = vunpack.c.h.b16 %v391
        %v446 = vunpack.c.l.b16 %v392
        %v447 = vunpack.c.h.b16 %v392
        %v448 = vunpack.c.l.b16 %v393
        %v449 = vunpack.c.h.b16 %v393
        %v450 = vunpack.c.l.b16 %v394
        %v451 = vunpack.c.h.b16 %v394
        %v452 = vunpack.c.l.b16 %v395
        %v453 = vunpack.c.h.b16 %v395
        %v454 = vunpack.c.l.b16 %v396
        %v455 = vunpack.c.h.b16 %v396
        %v456 = vunpack.c.l.b16 %v397
        %v457 = vunpack.c.h.b16 %v397
        %v458 = vpack.c.b16 %v428, %v426
        %v459 = vpack.c.b16 %v429, %v427
        %v460 = vpack.c.b16 %v432, %v430
        %v461 = vpack.c.b16 %v433, %v431
        %v462 = vpack.c.b16 %v436, %v434
        %v463 = vpack.c.b16 %v437, %v435
        %v464 = vpack.c.b16 %v440, %v438
        %v465 = vpack.c.b16 %v441, %v439
        %v466 = vpack.c.b16 %v444, %v442
        %v467 = vpack.c.b16 %v445, %v443
        %v468 = vpack.c.b16 %v448, %v446
        %v469 = vpack.c.b16 %v449, %v447
        %v470 = vpack.c.b16 %v452, %v450
        %v471 = vpack.c.b16 %v453, %v451
        %v472 = vpack.c.b16 %v456, %v454
        %v473 = vpack.c.b16 %v457, %v455
        %490 = vmatprep.subr.bf16.mxu0 %v459
        %491 = vmatpush1.bf16.msra.mxu0 %v458
        %492 = vmatprep.subr.bf16.mxu0 %v461
        %493 = vmatpush1.bf16.msra.mxu0 %v460
        %494 = vmatprep.subr.bf16.mxu0 %v463
        %495 = vmatpush1.bf16.msra.mxu0 %v462
        %496 = vmatprep.subr.bf16.mxu0 %v465
        %497 = vmatpush1.bf16.msra.mxu0 %v464
        %498 = vmatprep.subr.bf16.mxu0 %v467
        %499 = vmatpush1.bf16.msra.mxu0 %v466
        %500 = vmatprep.subr.bf16.mxu0 %v469
        %501 = vmatpush1.bf16.msra.mxu0 %v468
        %502 = vmatprep.subr.bf16.mxu0 %v471
        %503 = vmatpush1.bf16.msra.mxu0 %v470
        %504 = vmatprep.subr.bf16.mxu0 %v473
        %505 = vmatpush1.bf16.msra.mxu0 %v472
        %506 = vmatprep.subr.bf16.mxu0 0
        %507 = vmatpush1.bf16.msra.mxu0 0
        %508 = vmatprep.subr.bf16.mxu0 0
        %509 = vmatpush1.bf16.msra.mxu0 0
        %510 = vmatprep.subr.bf16.mxu0 0
        %511 = vmatpush1.bf16.msra.mxu0 0
        %512 = vmatprep.subr.bf16.mxu0 0
        %513 = vmatpush1.bf16.msra.mxu0 0
        %514 = vmatprep.subr.bf16.mxu0 0
        %515 = vmatpush1.bf16.msra.mxu0 0
        %516 = vmatprep.subr.bf16.mxu0 0
        %517 = vmatpush1.bf16.msra.mxu0 0
        %518 = vmatprep.subr.bf16.mxu0 0
        %519 = vmatpush1.bf16.msra.mxu0 0
        %520 = vmatprep.subr.bf16.mxu0 0
        %521 = vmatpush1.bf16.msra.mxu0 0
        %522 = vmatprep.mubr.bf16.mxu0 0
        %523 = vmatmul.mubr.bf16.gmra.mrb[0].mxu0 %v380
        %v524 = vpop.f32.mrb[0].mxu0
        %v525 = vadd.f32 %v403, %v524
        %v526 = vpop.f32.mrb[0].mxu0
        %v527 = vadd.f32 %v407, %v526
        %v528 = vpop.f32.mrb[0].mxu0
        %v529 = vadd.f32 %v403, %v528
        %v530 = vpop.f32.mrb[0].mxu0
        %v531 = vadd.f32 %v407, %v530
        %532 = vmatprep.mubr.bf16.mxu0 0
        %533 = vmatmul.mubr.bf16.gmra.mrb[0].mxu0 %v381
        %v534 = vpop.f32.mrb[0].mxu0
        %v535 = vadd.f32 %v403, %v534
        %v536 = vpop.f32.mrb[0].mxu0
        %v537 = vadd.f32 %v407, %v536
        %v538 = vpop.f32.mrb[0].mxu0
        %v539 = vadd.f32 %v403, %v538
        %v540 = vpop.f32.mrb[0].mxu0
        %v541 = vadd.f32 %v407, %v540
        %542 = vdwg.mxu0
        %v543 = vmul.f32 %v525, %v525
        %v544 = vmul.f32 %v527, %v527
        %v545 = vmul.f32 %v529, %v529
        %v546 = vmul.f32 %v531, %v531
        %v547 = vmul.f32 %v535, %v535
        %v548 = vmul.f32 %v537, %v537
        %v549 = vmul.f32 %v539, %v539
        %v550 = vmul.f32 %v541, %v541
        %v551 = vmul.f32 %v525, %v543
        %v552 = vmul.f32 %v527, %v544
        %v553 = vmul.f32 %v529, %v545
        %v554 = vmul.f32 %v531, %v546
        %v555 = vmul.f32 %v535, %v547
        %v556 = vmul.f32 %v537, %v548
        %v557 = vmul.f32 %v539, %v549
        %v558 = vmul.f32 %v541, %v550
        %v559 = vmul.f32 %v551, 0.044715
        %v560 = vmul.f32 %v552, 0.044715
        %v561 = vmul.f32 %v553, 0.044715
        %v562 = vmul.f32 %v554, 0.044715
        %v563 = vmul.f32 %v555, 0.044715
        %v564 = vmul.f32 %v556, 0.044715
        %v565 = vmul.f32 %v557, 0.044715
        %v566 = vmul.f32 %v558, 0.044715
        %v567 = vadd.f32 %v525, %v559
        %v568 = vadd.f32 %v527, %v560
        %v569 = vadd.f32 %v529, %v561
        %v570 = vadd.f32 %v531, %v562
        %v571 = vadd.f32 %v535, %v563
        %v572 = vadd.f32 %v537, %v564
        %v573 = vadd.f32 %v539, %v565
        %v574 = vadd.f32 %v541, %v566
        %v575 = vmul.f32 %v567, 0.7978846
        %v576 = vmul.f32 %v568, 0.7978846
        %v577 = vmul.f32 %v569, 0.7978846
        %v578 = vmul.f32 %v570, 0.7978846
        %v579 = vmul.f32 %v571, 0.7978846
        %v580 = vmul.f32 %v572, 0.7978846
        %v581 = vmul.f32 %v573, 0.7978846
        %v582 = vmul.f32 %v574, 0.7978846
        %v583 = vtanh.pop %v575
        %v584 = vtanh.pop %v576
        %v585 = vtanh.pop %v577
        %v586 = vtanh.pop %v578
        %v587 = vtanh.pop %v579
        %v588 = vtanh.pop %v580
        %v589 = vtanh.pop %v581
        %v590 = vtanh.pop %v582
        %v591 = vadd.f32 %v583, 1.0
        %v592 = vadd.f32 %v584, 1.0
        %v593 = vadd.f32 %v585, 1.0
        %v594 = vadd.f32 %v586, 1.0
        %v595 = vadd.f32 %v587, 1.0
        %v596 = vadd.f32 %v588, 1.0
        %v597 = vadd.f32 %v589, 1.0
        %v598 = vadd.f32 %v590, 1.0
        %v599 = vmul.f32 %v591, 0.5
        %v600 = vmul.f32 %v592, 0.5
        %v601 = vmul.f32 %v593, 0.5
        %v602 = vmul.f32 %v594, 0.5
        %v603 = vmul.f32 %v595, 0.5
        %v604 = vmul.f32 %v596, 0.5
        %v605 = vmul.f32 %v597, 0.5
        %v606 = vmul.f32 %v598, 0.5
        %v607 = vmul.f32 %v525, %v599
        %v608 = vmul.f32 %v527, %v600
        %v609 = vmul.f32 %v529, %v601
        %v610 = vmul.f32 %v531, %v602
        %v611 = vmul.f32 %v535, %v603
        %v612 = vmul.f32 %v537, %v604
        %v613 = vmul.f32 %v539, %v605
        %v614 = vmul.f32 %v541, %v606
        %v615 = vpack.c.bf16 %v609, %v607
        %v616 = vpack.c.bf16 %v610, %v608
        %v617 = vpack.c.bf16 %v613, %v611
        %v618 = vpack.c.bf16 %v614, %v612
        %v619 = vld [vmem:[%s5] sm:$0xf]
        %v620 = vld [vmem:[%s5 + $0x4] sm:$0xf]
        %v621 = vld [vmem:[%s5 + $0x8] sm:$0xf]
        %v622 = vld [vmem:[%s5 + $0xc] sm:$0xf]
        %v623 = vld [vmem:[%s5 + $0x10] sm:$0xf]
        %v624 = vld [vmem:[%s5 + $0x14] sm:$0xf]
        %v625 = vld [vmem:[%s5 + $0x18] sm:$0xf]
        %v626 = vld [vmem:[%s5 + $0x1c] sm:$0xf]
        %v627 = vld [vmem:[%s5 + $0x20] sm:$0xf]
        %v628 = vld [vmem:[%s5 + $0x24] sm:$0xf]
        %v629 = vld [vmem:[%s5 + $0x28] sm:$0xf]
        %v630 = vld [vmem:[%s5 + $0x2c] sm:$0xf]
        %v631 = vld [vmem:[%s5 + $0x30] sm:$0xf]
        %v632 = vld [vmem:[%s5 + $0x34] sm:$0xf]
        %v633 = vld [vmem:[%s5 + $0x38] sm:$0xf]
        %v634 = vld [vmem:[%s5 + $0x3c] sm:$0xf]
        %v635 = vld [vmem:[%s5 + $0x40] sm:$0xf]
        %v636 = vld [vmem:[%s5 + $0x44] sm:$0xf]
        %v637 = vld [vmem:[%s5 + $0x48] sm:$0xf]
        %v638 = vld [vmem:[%s5 + $0x4c] sm:$0xf]
        %v639 = vld [vmem:[%s5 + $0x50] sm:$0xf]
        %v640 = vld [vmem:[%s5 + $0x54] sm:$0xf]
        %v641 = vld [vmem:[%s5 + $0x58] sm:$0xf]
        %v642 = vld [vmem:[%s5 + $0x5c] sm:$0xf]
        %v643 = vld [vmem:[%s5 + $0x60] sm:$0xf]
        %v644 = vld [vmem:[%s5 + $0x64] sm:$0xf]
        %v645 = vld [vmem:[%s5 + $0x68] sm:$0xf]
        %v646 = vld [vmem:[%s5 + $0x6c] sm:$0xf]
        %v647 = vld [vmem:[%s5 + $0x70] sm:$0xf]
        %v648 = vld [vmem:[%s5 + $0x74] sm:$0xf]
        %v649 = vld [vmem:[%s5 + $0x78] sm:$0xf]
        %v650 = vld [vmem:[%s5 + $0x7c] sm:$0xf]
        %v683 = vunpack.c.l.b16 %v619
        %v684 = vunpack.c.l.b16 %v620
        %v685 = vunpack.c.l.b16 %v621
        %v686 = vunpack.c.l.b16 %v622
        %v687 = vunpack.c.l.b16 %v623
        %v688 = vunpack.c.l.b16 %v624
        %v689 = vunpack.c.l.b16 %v625
        %v690 = vunpack.c.l.b16 %v626
        %v691 = vunpack.c.l.b16 %v627
        %v692 = vunpack.c.l.b16 %v628
        %v693 = vunpack.c.l.b16 %v629
        %v694 = vunpack.c.l.b16 %v630
        %v695 = vunpack.c.l.b16 %v631
        %v696 = vunpack.c.l.b16 %v632
        %v697 = vunpack.c.l.b16 %v633
        %v698 = vunpack.c.l.b16 %v634
        %v699 = vunpack.c.l.b16 %v635
        %v700 = vunpack.c.l.b16 %v636
        %v701 = vunpack.c.l.b16 %v637
        %v702 = vunpack.c.l.b16 %v638
        %v703 = vunpack.c.l.b16 %v639
        %v704 = vunpack.c.l.b16 %v640
        %v705 = vunpack.c.l.b16 %v641
        %v706 = vunpack.c.l.b16 %v642
        %v707 = vunpack.c.l.b16 %v643
        %v708 = vunpack.c.l.b16 %v644
        %v709 = vunpack.c.l.b16 %v645
        %v710 = vunpack.c.l.b16 %v646
        %v711 = vunpack.c.l.b16 %v647
        %v712 = vunpack.c.l.b16 %v648
        %v713 = vunpack.c.l.b16 %v649
        %v714 = vunpack.c.l.b16 %v650
        %v715 = vpack.c.b16 %v684, %v683
        %v716 = vpack.c.b16 %v686, %v685
        %v717 = vpack.c.b16 %v688, %v687
        %v718 = vpack.c.b16 %v690, %v689
        %v719 = vpack.c.b16 %v692, %v691
        %v720 = vpack.c.b16 %v694, %v693
        %v721 = vpack.c.b16 %v696, %v695
        %v722 = vpack.c.b16 %v698, %v697
        %v723 = vpack.c.b16 %v700, %v699
        %v724 = vpack.c.b16 %v702, %v701
        %v725 = vpack.c.b16 %v704, %v703
        %v726 = vpack.c.b16 %v706, %v705
        %v727 = vpack.c.b16 %v708, %v707
        %v728 = vpack.c.b16 %v710, %v709
        %v729 = vpack.c.b16 %v712, %v711
        %v730 = vpack.c.b16 %v714, %v713
        %747 = vmatprep.subr.bf16.mxu0 0
        %748 = vmatpush1.bf16.msra.mxu0 %v715
        %749 = vmatprep.subr.bf16.mxu0 0
        %750 = vmatpush1.bf16.msra.mxu0 %v716
        %751 = vmatprep.subr.bf16.mxu0 0
        %752 = vmatpush1.bf16.msra.mxu0 %v717
        %753 = vmatprep.subr.bf16.mxu0 0
        %754 = vmatpush1.bf16.msra.mxu0 %v718
        %755 = vmatprep.subr.bf16.mxu0 0
        %756 = vmatpush1.bf16.msra.mxu0 %v719
        %757 = vmatprep.subr.bf16.mxu0 0
        %758 = vmatpush1.bf16.msra.mxu0 %v720
        %759 = vmatprep.subr.bf16.mxu0 0
        %760 = vmatpush1.bf16.msra.mxu0 %v721
        %761 = vmatprep.subr.bf16.mxu0 0
        %762 = vmatpush1.bf16.msra.mxu0 %v722
        %763 = vmatprep.subr.bf16.mxu0 0
        %764 = vmatpush1.bf16.msra.mxu0 %v723
        %765 = vmatprep.subr.bf16.mxu0 0
        %766 = vmatpush1.bf16.msra.mxu0 %v724
        %767 = vmatprep.subr.bf16.mxu0 0
        %768 = vmatpush1.bf16.msra.mxu0 %v725
        %769 = vmatprep.subr.bf16.mxu0 0
        %770 = vmatpush1.bf16.msra.mxu0 %v726
        %771 = vmatprep.subr.bf16.mxu0 0
        %772 = vmatpush1.bf16.msra.mxu0 %v727
        %773 = vmatprep.subr.bf16.mxu0 0
        %774 = vmatpush1.bf16.msra.mxu0 %v728
        %775 = vmatprep.subr.bf16.mxu0 0
        %776 = vmatpush1.bf16.msra.mxu0 %v729
        %777 = vmatprep.subr.bf16.mxu0 0
        %778 = vmatpush1.bf16.msra.mxu0 %v730
        %779 = vmatprep.mubr.bf16.mxu0 %v616
        %780 = vmatmul.mubr.bf16.gmra.mrb[0].mxu0 %v615
        %v781 = vpop.f32.mrb[0].mxu0
        %v782 = vadd.f32 0.0, %v781
        %v783 = vpop.f32.mrb[0].mxu0
        %v784 = vpop.f32.mrb[0].mxu0
        %v785 = vadd.f32 0.0, %v784
        %v786 = vpop.f32.mrb[0].mxu0
        %787 = vmatprep.mubr.bf16.mxu0 %v618
        %788 = vmatmul.mubr.bf16.gmra.mrb[0].mxu0 %v617
        %v789 = vpop.f32.mrb[0].mxu0
        %v790 = vadd.f32 0.0, %v789
        %v791 = vpop.f32.mrb[0].mxu0
        %v792 = vpop.f32.mrb[0].mxu0
        %v793 = vadd.f32 0.0, %v792
        %v794 = vpop.f32.mrb[0].mxu0
        %795 = vdwg.mxu0
        %v796 = vadd.f32 %v376, %v782
        %v797 = vadd.f32 %v377, %v785
        %v798 = vadd.f32 %v378, %v790
        %v799 = vadd.f32 %v379, %v793
        %v800 = vld [vmem:[%s6] sm:$0x1]
        %v802 = vlaneseq
        %v803 = vshrl.u32 %v802, 7
        %v804 = vsub.s32 0, %v803
        %v805 = vrot.slane %v800, %v804
        %v807 = vadd.f32 %v796, %v805
        %v808 = vadd.f32 %v797, %v805
        %v809 = vadd.f32 %v798, %v805
        %v810 = vadd.f32 %v799, %v805
        %v811 = vpack.c.bf16 %v808, %v807
        %v812 = vpack.c.bf16 %v810, %v809
        %v813 = vld [vmem:[%s7] sm:$0xf]
        %v814 = vld [vmem:[%s7 + $0x4] sm:$0xf]
        %v815 = vld [vmem:[%s7 + $0x8] sm:$0xf]
        %v816 = vld [vmem:[%s7 + $0xc] sm:$0xf]
        %v817 = vld [vmem:[%s7 + $0x10] sm:$0xf]
        %v818 = vld [vmem:[%s7 + $0x14] sm:$0xf]
        %v819 = vld [vmem:[%s7 + $0x18] sm:$0xf]
        %v820 = vld [vmem:[%s7 + $0x1c] sm:$0xf]
        %v821 = vld [vmem:[%s7 + $0x20] sm:$0xf]
        %v822 = vld [vmem:[%s7 + $0x24] sm:$0xf]
        %v823 = vld [vmem:[%s7 + $0x28] sm:$0xf]
        %v824 = vld [vmem:[%s7 + $0x2c] sm:$0xf]
        %v825 = vld [vmem:[%s7 + $0x30] sm:$0xf]
        %v826 = vld [vmem:[%s7 + $0x34] sm:$0xf]
        %v827 = vld [vmem:[%s7 + $0x38] sm:$0xf]
        %v828 = vld [vmem:[%s7 + $0x3c] sm:$0xf]
        %v829 = vld [vmem:[%s8] sm:$0x1]
        %v831 = vlaneseq
        %v832 = vshrl.u32 %v831, 7
        %v833 = vsub.s32 0, %v832
        %v834 = vrot.slane %v829, %v833
        %v852 = vunpack.c.l.b16 %v813
        %v853 = vunpack.c.l.b16 %v814
        %v854 = vunpack.c.l.b16 %v815
        %v855 = vunpack.c.l.b16 %v816
        %v856 = vunpack.c.l.b16 %v817
        %v857 = vunpack.c.l.b16 %v818
        %v858 = vunpack.c.l.b16 %v819
        %v859 = vunpack.c.l.b16 %v820
        %v860 = vunpack.c.l.b16 %v821
        %v861 = vunpack.c.l.b16 %v822
        %v862 = vunpack.c.l.b16 %v823
        %v863 = vunpack.c.l.b16 %v824
        %v864 = vunpack.c.l.b16 %v825
        %v865 = vunpack.c.l.b16 %v826
        %v866 = vunpack.c.l.b16 %v827
        %v867 = vunpack.c.l.b16 %v828
        %v868 = vpack.c.b16 %v853, %v852
        %v869 = vpack.c.b16 %v855, %v854
        %v870 = vpack.c.b16 %v857, %v856
        %v871 = vpack.c.b16 %v859, %v858
        %v872 = vpack.c.b16 %v861, %v860
        %v873 = vpack.c.b16 %v863, %v862
        %v874 = vpack.c.b16 %v865, %v864
        %v875 = vpack.c.b16 %v867, %v866
        %884 = vmatprep.subr.bf16.mxu0 0
        %885 = vmatpush1.bf16.msra.mxu0 %v868
        %886 = vmatprep.subr.bf16.mxu0 0
        %887 = vmatpush1.bf16.msra.mxu0 %v869
        %888 = vmatprep.subr.bf16.mxu0 0
        %889 = vmatpush1.bf16.msra.mxu0 %v870
        %890 = vmatprep.subr.bf16.mxu0 0
        %891 = vmatpush1.bf16.msra.mxu0 %v871
        %892 = vmatprep.subr.bf16.mxu0 0
        %893 = vmatpush1.bf16.msra.mxu0 %v872
        %894 = vmatprep.subr.bf16.mxu0 0
        %895 = vmatpush1.bf16.msra.mxu0 %v873
        %896 = vmatprep.subr.bf16.mxu0 0
        %897 = vmatpush1.bf16.msra.mxu0 %v874
        %898 = vmatprep.subr.bf16.mxu0 0
        %899 = vmatpush1.bf16.msra.mxu0 %v875
        %900 = vmatprep.subr.bf16.mxu0 0
        %901 = vmatpush1.bf16.msra.mxu0 0
        %902 = vmatprep.subr.bf16.mxu0 0
        %903 = vmatpush1.bf16.msra.mxu0 0
        %904 = vmatprep.subr.bf16.mxu0 0
        %905 = vmatpush1.bf16.msra.mxu0 0
        %906 = vmatprep.subr.bf16.mxu0 0
        %907 = vmatpush1.bf16.msra.mxu0 0
        %908 = vmatprep.subr.bf16.mxu0 0
        %909 = vmatpush1.bf16.msra.mxu0 0
        %910 = vmatprep.subr.bf16.mxu0 0
        %911 = vmatpush1.bf16.msra.mxu0 0
        %912 = vmatprep.subr.bf16.mxu0 0
        %913 = vmatpush1.bf16.msra.mxu0 0
        %914 = vmatprep.subr.bf16.mxu0 0
        %915 = vmatpush1.bf16.msra.mxu0 0
        %916 = vmatprep.mubr.bf16.mxu0 0
        %917 = vmatmul.mubr.bf16.gmra.mrb[0].mxu0 %v811
        %v918 = vpop.f32.mrb[0].mxu0
        %v919 = vadd.f32 %v834, %v918
        %v920 = vpop.f32.mrb[0].mxu0
        %v921 = vpop.f32.mrb[0].mxu0
        %v922 = vadd.f32 %v834, %v921
        %v923 = vpop.f32.mrb[0].mxu0
        %924 = vmatprep.mubr.bf16.mxu0 0
        %925 = vmatmul.mubr.bf16.gmra.mrb[0].mxu0 %v812
        %v926 = vpop.f32.mrb[0].mxu0
        %v927 = vadd.f32 %v834, %v926
        %v928 = vpop.f32.mrb[0].mxu0
        %v929 = vpop.f32.mrb[0].mxu0
        %v930 = vadd.f32 %v834, %v929
        %v931 = vpop.f32.mrb[0].mxu0
        %932 = vdwg.mxu0
        %933 = vst [vmem:[%s325] sm:$0xff] %v919
        %934 = vst [vmem:[%s325 + $0x8] sm:$0xff] %v922
        %935 = vst [vmem:[%s325 + $0x10] sm:$0xff] %v927
        %936 = vst [vmem:[%s325 + $0x18] sm:$0xff] %v930
        %s937 = sand.u32 %s225, 1
        %s938 = scalar_lea.sflag [#allocation3], %s937
        %s939 = sand.u32 %s225, 1
        %s940 = smul.addr %s939, 32
        %s941 = scalar_lea.vmem [#allocation2], %s940
        // Predicated region
        $region57: #{ijepa_forward.4} parent=55 // pred_check
          %p942 = pneg %p235
        $region58: #{ijepa_forward.4} parent=55 // pred_check_branch
          %944 = sbr.rel (%p942) target = $region60
        $region59: #{ijepa_forward.4} parent=55 // pred_region
          #allocation5 [shape = 'u32[6]{0}', space=smem, size = 0x18, scoped, tag = 'DMA stride descriptor']
          %s946 = ssub.s32 512, 512
          %947 = vsyncadd %s938, %s946
          %s948 = smul.addr %s23, 2
          %s949 = smul.addr %s948, 128
          %s950 = scalar_lea.hbm %s9, %s949
          %s952 = sshll.u32 1, 14
          %s953 = sxor.u32 4294967295, %s952
          %s956 = sshll.u32 7, 18
          %s957 = sxor.u32 4294967295, %s956
          %s958 = sand.u32 0, %s957
          %s960 = sor.u32 %s958, 0
          %s962 = sshll.u32 3, 24
          %s963 = sxor.u32 4294967295, %s962
          %s964 = sand.u32 %s960, %s963
          %s966 = sor.u32 %s964, 0
          %s967 = sshll.u32 %s941, 4
          %s968 = int_to_ptr.vmem [resolvable:$true] %s967
          %974 = sst [smem:[#allocation5]] 256
          %s975 = scalar_lea.smem [#allocation5], 1
          %976 = sst [smem:[%s975]] 512
          %s977 = scalar_lea.smem [#allocation5], 2
          %978 = sst [smem:[%s977]] 2
          %s979 = scalar_lea.smem [#allocation5], 3
          %980 = sst [smem:[%s979]] 128
          %s981 = scalar_lea.smem [#allocation5], 4
          %982 = sst [smem:[%s981]] 128
          %s983 = scalar_lea.smem [#allocation5], 5
          %984 = sst [smem:[%s983]] 8
          %986 = dma.general %s968, 512, %s950, %s938, [#allocation4], [#allocation5], %s966, 0
        $region60: #{ijepa_forward.4} parent=55 // pred_fallthru
          _
      $region56: #{ijepa_forward.4} parent=5 // pred_fallthru
        _
      %p987 = scmp.le.s32.totalorder 2, %s18
      // Predicated region
      $region61: #{ijepa_forward.4} parent=5 // pred_check
        %p988 = pneg %p987
      $region62: #{ijepa_forward.4} parent=5 // pred_check_branch
        %990 = sbr.rel (%p988) target = $region64
      $region63: #{ijepa_forward.4} parent=5 // pred_region
        %s991 = ssub.s32 %s18, 2
        // Predicated region
        $region65: #{ijepa_forward.4} parent=63 // pred_check
          %p992 = pneg %p241
        $region66: #{ijepa_forward.4} parent=63 // pred_check_branch
          %994 = sbr.rel (%p992) target = $region68
        $region67: #{ijepa_forward.4} parent=63 // pred_region
          %s995 = sand.u32 %s226, 1
          %s996 = scalar_lea.sflag [#allocation3], %s995
          %s997 = sand.u32 %s226, 1
          %s998 = smul.addr %s997, 32
          %s999 = scalar_lea.vmem [#allocation2], %s998
          %1000 = dma.done %s996, 512
        $region68: #{ijepa_forward.4} parent=63 // pred_fallthru
          _
      $region64: #{ijepa_forward.4} parent=5 // pred_fallthru
        _
    $region6: #{ijepa_forward.4} parent=1 // loop_footer
      %s22 = sadd.s32 1, %s18
    $region7: #{ijepa_forward.4} parent=1 // loop_footer_branch
      %17 = sbr.rel target = $region3
    $region8: #{ijepa_forward.4} parent=1 // loop_exit
      _
    %1001 = vsyncpa [#allocation3], 1
    %s1002 = scalar_lea.sflag [#allocation3], 1
    %1003 = vsyncpa %s1002, 1

// kernel: ijepa_forward.3
$region0: #{ijepa_forward.3}
  #allocation0 [shape = 'u32[]', space=smem, size = 0x4, offset = 0x4, fixed_abs, tag = 'smem constant byte address 0x4 - core index']
  #allocation1 [shape = 'u32[144,128]{1,0:T(1,128)}', space=vmem, size = 0x12000, scoped, tag = 'internal scratch']
  %s0 = inlined_call_operand.vmem [shape: bf16[32,128], index: 0, kind: input, shape index: {}]
  %s1 = inlined_call_operand.vmem [shape: bf16[32,128], index: 1, kind: input, shape index: {}]
  %s2 = inlined_call_operand.vmem [shape: bf16[128,128], index: 2, kind: input, shape index: {}]
  %s3 = inlined_call_operand.vmem [shape: f32[1,128], index: 3, kind: input, shape index: {}]
  %s4 = inlined_call_operand.vmem [shape: bf16[128,256], index: 4, kind: input, shape index: {}]
  %s5 = inlined_call_operand.vmem [shape: f32[1,256], index: 5, kind: input, shape index: {}]
  %s6 = inlined_call_operand.vmem [shape: bf16[256,128], index: 6, kind: input, shape index: {}]
  %s7 = inlined_call_operand.vmem [shape: f32[1,128], index: 7, kind: input, shape index: {}]
  %s8 = inlined_call_operand.vmem [shape: bf16[128,128], index: 8, kind: input, shape index: {}]
  %s9 = inlined_call_operand.vmem [shape: f32[1,128], index: 9, kind: input, shape index: {}]
  %s10 = inlined_call_operand.vmem [shape: bf16[32,128], index: 10, kind: output, shape index: {}]
  %s11 = sld [smem:[#allocation0]]
  $region73: #{ijepa_forward.3} parent=0
    _
  %s13 = ssub.s32 1, %s11
  %s14 = scalar_select 0, %s13, %s11
  loop: start=0, step=1, limit=4
  $region2: #{ijepa_forward.3} parent=0 // loop_pre_header
    _
  $region3: #{ijepa_forward.3} parent=0 // loop_header
    %s16 = sphi 0, %s20
    %p17 = scmp.ge.s32.totalorder %s16, 4
    %s26 = sphi 0, %s28
    %s29 = sphi 0, %s26
    %s30 = sphi 0, %s29
    %s46 = sphi 0, %s30
    %s52 = sphi 0, %s54
    %s55 = sphi 0, %s52
    %s56 = sphi 0, %s55
    %s72 = sphi 0, %s56
    %s76 = sphi 0, %s76
    %s78 = sphi 0, %s76
    %s79 = sphi 0, %s78
    %s93 = sphi 0, %s79
    %s97 = sphi 0, %s97
    %s99 = sphi 0, %s97
    %s100 = sphi 0, %s99
    %s114 = sphi 0, %s100
    %s118 = sphi 0, %s118
    %s120 = sphi 0, %s118
    %s121 = sphi 0, %s120
    %s135 = sphi 0, %s121
    %s139 = sphi 0, %s139
    %s141 = sphi 0, %s139
    %s142 = sphi 0, %s141
    %s156 = sphi 0, %s142
    %s160 = sphi 0, %s160
    %s162 = sphi 0, %s160
    %s163 = sphi 0, %s162
    %s177 = sphi 0, %s163
    %s181 = sphi 0, %s181
    %s183 = sphi 0, %s181
    %s184 = sphi 0, %s183
    %s198 = sphi 0, %s184
    %s202 = sphi 0, %s202
    %s204 = sphi 0, %s202
    %s205 = sphi 0, %s204
    %s219 = sphi 0, %s205
    %s223 = sphi 0, %s223
    %s225 = sphi 0, %s223
    %s226 = sphi 0, %s225
    %s240 = sphi 0, %s226
    %s246 = sphi 0, %s248
    %s249 = sphi 0, %s246
    %s250 = sphi 0, %s249
    %s266 = sphi 0, %s250
  $region4: #{ijepa_forward.3} parent=0 // loop_header_branch
    %19 = sbr.rel (%p17) target = $region8
  $region5: #{ijepa_forward.3} parent=0 // loop_body
    %s21 = ssub.s32 %s16, 1
    %s22 = ssub.s32 %s16, 2
    %s23 = sadd.s32 %s16, 1
    %s24 = ssub.s32 %s16, %s23
    %p25 = scmp.eq.s32.totalorder %s24, 0
    %s27 = sadd.s32 %s26, 1
    %s28 = scalar_select %p25, %s26, %s27
    %p31 = pneg %p25
    %p32 = scmp.eq.s32.totalorder %s16, 1
    %p33 = por %p31, %p32
    %p34 = scmp.ne.s32.totalorder %s26, %s29
    %p35 = scmp.eq.s32.totalorder %s16, 0
    %p36 = por %p34, %p35
    %p37 = scmp.ne.s32.totalorder %s26, %s29
    %p38 = scmp.eq.s32.totalorder %s21, 1
    %p39 = por %p37, %p38
    %p40 = scmp.ne.s32.totalorder %s29, %s30
    %p41 = scmp.eq.s32.totalorder %s21, 0
    %p42 = por %p40, %p41
    %p43 = scmp.ne.s32.totalorder %s29, %s30
    %p44 = scmp.eq.s32.totalorder %s22, 1
    %p45 = por %p43, %p44
    %p47 = scmp.ne.s32.totalorder %s30, %s46
    %p48 = scmp.eq.s32.totalorder %s22, 0
    %p49 = por %p47, %p48
    %s50 = ssub.s32 %s16, %s23
    %p51 = scmp.eq.s32.totalorder %s50, 0
    %s53 = sadd.s32 %s52, 1
    %s54 = scalar_select %p51, %s52, %s53
    %p57 = pneg %p51
    %p58 = scmp.eq.s32.totalorder %s16, 1
    %p59 = por %p57, %p58
    %p60 = scmp.ne.s32.totalorder %s52, %s55
    %p61 = scmp.eq.s32.totalorder %s16, 0
    %p62 = por %p60, %p61
    %p63 = scmp.ne.s32.totalorder %s52, %s55
    %p64 = scmp.eq.s32.totalorder %s21, 1
    %p65 = por %p63, %p64
    %p66 = scmp.ne.s32.totalorder %s55, %s56
    %p67 = scmp.eq.s32.totalorder %s21, 0
    %p68 = por %p66, %p67
    %p69 = scmp.ne.s32.totalorder %s55, %s56
    %p70 = scmp.eq.s32.totalorder %s22, 1
    %p71 = por %p69, %p70
    %p73 = scmp.ne.s32.totalorder %s56, %s72
    %p74 = scmp.eq.s32.totalorder %s22, 0
    %p75 = por %p73, %p74
    %s77 = sadd.s32 %s76, 1
    %p80 = scmp.eq.s32.totalorder %s16, 1
    %p81 = scmp.ne.s32.totalorder %s76, %s78
    %p82 = scmp.eq.s32.totalorder %s16, 0
    %p83 = por %p81, %p82
    %p84 = scmp.ne.s32.totalorder %s76, %s78
    %p85 = scmp.eq.s32.totalorder %s21, 1
    %p86 = por %p84, %p85
    %p87 = scmp.ne.s32.totalorder %s78, %s79
    %p88 = scmp.eq.s32.totalorder %s21, 0
    %p89 = por %p87, %p88
    %p90 = scmp.ne.s32.totalorder %s78, %s79
    %p91 = scmp.eq.s32.totalorder %s22, 1
    %p92 = por %p90, %p91
    %p94 = scmp.ne.s32.totalorder %s79, %s93
    %p95 = scmp.eq.s32.totalorder %s22, 0
    %p96 = por %p94, %p95
    %s98 = sadd.s32 %s97, 1
    %p101 = scmp.eq.s32.totalorder %s16, 1
    %p102 = scmp.ne.s32.totalorder %s97, %s99
    %p103 = scmp.eq.s32.totalorder %s16, 0
    %p104 = por %p102, %p103
    %p105 = scmp.ne.s32.totalorder %s97, %s99
    %p106 = scmp.eq.s32.totalorder %s21, 1
    %p107 = por %p105, %p106
    %p108 = scmp.ne.s32.totalorder %s99, %s100
    %p109 = scmp.eq.s32.totalorder %s21, 0
    %p110 = por %p108, %p109
    %p111 = scmp.ne.s32.totalorder %s99, %s100
    %p112 = scmp.eq.s32.totalorder %s22, 1
    %p113 = por %p111, %p112
    %p115 = scmp.ne.s32.totalorder %s100, %s114
    %p116 = scmp.eq.s32.totalorder %s22, 0
    %p117 = por %p115, %p116
    %s119 = sadd.s32 %s118, 1
    %p122 = scmp.eq.s32.totalorder %s16, 1
    %p123 = scmp.ne.s32.totalorder %s118, %s120
    %p124 = scmp.eq.s32.totalorder %s16, 0
    %p125 = por %p123, %p124
    %p126 = scmp.ne.s32.totalorder %s118, %s120
    %p127 = scmp.eq.s32.totalorder %s21, 1
    %p128 = por %p126, %p127
    %p129 = scmp.ne.s32.totalorder %s120, %s121
    %p130 = scmp.eq.s32.totalorder %s21, 0
    %p131 = por %p129, %p130
    %p132 = scmp.ne.s32.totalorder %s120, %s121
    %p133 = scmp.eq.s32.totalorder %s22, 1
    %p134 = por %p132, %p133
    %p136 = scmp.ne.s32.totalorder %s121, %s135
    %p137 = scmp.eq.s32.totalorder %s22, 0
    %p138 = por %p136, %p137
    %s140 = sadd.s32 %s139, 1
    %p143 = scmp.eq.s32.totalorder %s16, 1
    %p144 = scmp.ne.s32.totalorder %s139, %s141
    %p145 = scmp.eq.s32.totalorder %s16, 0
    %p146 = por %p144, %p145
    %p147 = scmp.ne.s32.totalorder %s139, %s141
    %p148 = scmp.eq.s32.totalorder %s21, 1
    %p149 = por %p147, %p148
    %p150 = scmp.ne.s32.totalorder %s141, %s142
    %p151 = scmp.eq.s32.totalorder %s21, 0
    %p152 = por %p150, %p151
    %p153 = scmp.ne.s32.totalorder %s141, %s142
    %p154 = scmp.eq.s32.totalorder %s22, 1
    %p155 = por %p153, %p154
    %p157 = scmp.ne.s32.totalorder %s142, %s156
    %p158 = scmp.eq.s32.totalorder %s22, 0
    %p159 = por %p157, %p158
    %s161 = sadd.s32 %s160, 1
    %p164 = scmp.eq.s32.totalorder %s16, 1
    %p165 = scmp.ne.s32.totalorder %s160, %s162
    %p166 = scmp.eq.s32.totalorder %s16, 0
    %p167 = por %p165, %p166
    %p168 = scmp.ne.s32.totalorder %s160, %s162
    %p169 = scmp.eq.s32.totalorder %s21, 1
    %p170 = por %p168, %p169
    %p171 = scmp.ne.s32.totalorder %s162, %s163
    %p172 = scmp.eq.s32.totalorder %s21, 0
    %p173 = por %p171, %p172
    %p174 = scmp.ne.s32.totalorder %s162, %s163
    %p175 = scmp.eq.s32.totalorder %s22, 1
    %p176 = por %p174, %p175
    %p178 = scmp.ne.s32.totalorder %s163, %s177
    %p179 = scmp.eq.s32.totalorder %s22, 0
    %p180 = por %p178, %p179
    %s182 = sadd.s32 %s181, 1
    %p185 = scmp.eq.s32.totalorder %s16, 1
    %p186 = scmp.ne.s32.totalorder %s181, %s183
    %p187 = scmp.eq.s32.totalorder %s16, 0
    %p188 = por %p186, %p187
    %p189 = scmp.ne.s32.totalorder %s181, %s183
    %p190 = scmp.eq.s32.totalorder %s21, 1
    %p191 = por %p189, %p190
    %p192 = scmp.ne.s32.totalorder %s183, %s184
    %p193 = scmp.eq.s32.totalorder %s21, 0
    %p194 = por %p192, %p193
    %p195 = scmp.ne.s32.totalorder %s183, %s184
    %p196 = scmp.eq.s32.totalorder %s22, 1
    %p197 = por %p195, %p196
    %p199 = scmp.ne.s32.totalorder %s184, %s198
    %p200 = scmp.eq.s32.totalorder %s22, 0
    %p201 = por %p199, %p200
    %s203 = sadd.s32 %s202, 1
    %p206 = scmp.eq.s32.totalorder %s16, 1
    %p207 = scmp.ne.s32.totalorder %s202, %s204
    %p208 = scmp.eq.s32.totalorder %s16, 0
    %p209 = por %p207, %p208
    %p210 = scmp.ne.s32.totalorder %s202, %s204
    %p211 = scmp.eq.s32.totalorder %s21, 1
    %p212 = por %p210, %p211
    %p213 = scmp.ne.s32.totalorder %s204, %s205
    %p214 = scmp.eq.s32.totalorder %s21, 0
    %p215 = por %p213, %p214
    %p216 = scmp.ne.s32.totalorder %s204, %s205
    %p217 = scmp.eq.s32.totalorder %s22, 1
    %p218 = por %p216, %p217
    %p220 = scmp.ne.s32.totalorder %s205, %s219
    %p221 = scmp.eq.s32.totalorder %s22, 0
    %p222 = por %p220, %p221
    %s224 = sadd.s32 %s223, 1
    %p227 = scmp.eq.s32.totalorder %s16, 1
    %p228 = scmp.ne.s32.totalorder %s223, %s225
    %p229 = scmp.eq.s32.totalorder %s16, 0
    %p230 = por %p228, %p229
    %p231 = scmp.ne.s32.totalorder %s223, %s225
    %p232 = scmp.eq.s32.totalorder %s21, 1
    %p233 = por %p231, %p232
    %p234 = scmp.ne.s32.totalorder %s225, %s226
    %p235 = scmp.eq.s32.totalorder %s21, 0
    %p236 = por %p234, %p235
    %p237 = scmp.ne.s32.totalorder %s225, %s226
    %p238 = scmp.eq.s32.totalorder %s22, 1
    %p239 = por %p237, %p238
    %p241 = scmp.ne.s32.totalorder %s226, %s240
    %p242 = scmp.eq.s32.totalorder %s22, 0
    %p243 = por %p241, %p242
    %s244 = ssub.s32 %s16, %s23
    %p245 = scmp.eq.s32.totalorder %s244, 0
    %s247 = sadd.s32 %s246, 1
    %s248 = scalar_select %p245, %s246, %s247
    %p251 = pneg %p245
    %p252 = scmp.eq.s32.totalorder %s16, 1
    %p253 = por %p251, %p252
    %p254 = scmp.ne.s32.totalorder %s246, %s249
    %p255 = scmp.eq.s32.totalorder %s16, 0
    %p256 = por %p254, %p255
    %p257 = scmp.ne.s32.totalorder %s246, %s249
    %p258 = scmp.eq.s32.totalorder %s21, 1
    %p259 = por %p257, %p258
    %p260 = scmp.ne.s32.totalorder %s249, %s250
    %p261 = scmp.eq.s32.totalorder %s21, 0
    %p262 = por %p260, %p261
    %p263 = scmp.ne.s32.totalorder %s249, %s250
    %p264 = scmp.eq.s32.totalorder %s22, 1
    %p265 = por %p263, %p264
    %p267 = scmp.ne.s32.totalorder %s250, %s266
    %p268 = scmp.eq.s32.totalorder %s22, 0
    %p269 = por %p267, %p268
    %p270 = scmp.le.s32.totalorder 1, %s16
    %p271 = scmp.lt.s32.totalorder %s16, 3
    %p272 = pnand %p270, %p271
    %p273 = pneg %p272
    // Predicated region
    $region9: #{ijepa_forward.3} parent=5 // pred_check
      _
    $region10: #{ijepa_forward.3} parent=5 // pred_check_branch
      %275 = sbr.rel (%p272) target = $region12
    $region11: #{ijepa_forward.3} parent=5 // pred_region
      %s276 = ssub.s32 %s16, 1
      // Predicated region
      $region13: #{ijepa_forward.3} parent=11 // pred_check
        %p277 = pneg %p89
      $region14: #{ijepa_forward.3} parent=11 // pred_check_branch
        %279 = sbr.rel (%p277) target = $region16
      $region15: #{ijepa_forward.3} parent=11 // pred_region
        _
      $region16: #{ijepa_forward.3} parent=11 // pred_fallthru
        _
      // Predicated region
      $region17: #{ijepa_forward.3} parent=11 // pred_check
        %p280 = pneg %p110
      $region18: #{ijepa_forward.3} parent=11 // pred_check_branch
        %282 = sbr.rel (%p280) target = $region20
      $region19: #{ijepa_forward.3} parent=11 // pred_region
        _
      $region20: #{ijepa_forward.3} parent=11 // pred_fallthru
        _
      // Predicated region
      $region21: #{ijepa_forward.3} parent=11 // pred_check
        %p283 = pneg %p131
      $region22: #{ijepa_forward.3} parent=11 // pred_check_branch
        %285 = sbr.rel (%p283) target = $region24
      $region23: #{ijepa_forward.3} parent=11 // pred_region
        _
      $region24: #{ijepa_forward.3} parent=11 // pred_fallthru
        _
      // Predicated region
      $region25: #{ijepa_forward.3} parent=11 // pred_check
        %p286 = pneg %p152
      $region26: #{ijepa_forward.3} parent=11 // pred_check_branch
        %288 = sbr.rel (%p286) target = $region28
      $region27: #{ijepa_forward.3} parent=11 // pred_region
        _
      $region28: #{ijepa_forward.3} parent=11 // pred_fallthru
        _
      // Predicated region
      $region29: #{ijepa_forward.3} parent=11 // pred_check
        %p289 = pneg %p173
      $region30: #{ijepa_forward.3} parent=11 // pred_check_branch
        %291 = sbr.rel (%p289) target = $region32
      $region31: #{ijepa_forward.3} parent=11 // pred_region
        _
      $region32: #{ijepa_forward.3} parent=11 // pred_fallthru
        _
      // Predicated region
      $region33: #{ijepa_forward.3} parent=11 // pred_check
        %p292 = pneg %p194
      $region34: #{ijepa_forward.3} parent=11 // pred_check_branch
        %294 = sbr.rel (%p292) target = $region36
      $region35: #{ijepa_forward.3} parent=11 // pred_region
        _
      $region36: #{ijepa_forward.3} parent=11 // pred_fallthru
        _
      // Predicated region
      $region37: #{ijepa_forward.3} parent=11 // pred_check
        %p295 = pneg %p215
      $region38: #{ijepa_forward.3} parent=11 // pred_check_branch
        %297 = sbr.rel (%p295) target = $region40
      $region39: #{ijepa_forward.3} parent=11 // pred_region
        _
      $region40: #{ijepa_forward.3} parent=11 // pred_fallthru
        _
      // Predicated region
      $region41: #{ijepa_forward.3} parent=11 // pred_check
        %p298 = pneg %p236
      $region42: #{ijepa_forward.3} parent=11 // pred_check_branch
        %300 = sbr.rel (%p298) target = $region44
      $region43: #{ijepa_forward.3} parent=11 // pred_region
        _
      $region44: #{ijepa_forward.3} parent=11 // pred_fallthru
        _
    $region12: #{ijepa_forward.3} parent=5 // pred_fallthru
      _
    %p301 = scmp.lt.s32.totalorder %s16, 2
    // Predicated region
    $region45: #{ijepa_forward.3} parent=5 // pred_check
      %p302 = pneg %p301
    $region46: #{ijepa_forward.3} parent=5 // pred_check_branch
      %304 = sbr.rel (%p302) target = $region48
    $region47: #{ijepa_forward.3} parent=5 // pred_region
      // Predicated region
      $region49: #{ijepa_forward.3} parent=47 // pred_check
        %p305 = pneg %p36
      $region50: #{ijepa_forward.3} parent=47 // pred_check_branch
        %307 = sbr.rel (%p305) target = $region52
      $region51: #{ijepa_forward.3} parent=47 // pred_region
        %s308 = smul.u32 2, %s16
        %p309 = scmp.lt.s32.totalorder %s308, 3
        %s310 = scalar_select %p309, %s308, 3
        %s311 = smul.addr %s310, 4
        %s312 = scalar_lea.vmem %s0, %s311
        %s313 = smul.u32 2, %s16
      $region52: #{ijepa_forward.3} parent=47 // pred_fallthru
        _
      // Predicated region
      $region53: #{ijepa_forward.3} parent=47 // pred_check
        %p314 = pneg %p62
      $region54: #{ijepa_forward.3} parent=47 // pred_check_branch
        %316 = sbr.rel (%p314) target = $region56
      $region55: #{ijepa_forward.3} parent=47 // pred_region
        %s317 = smul.u32 2, %s16
        %p318 = scmp.lt.s32.totalorder %s317, 3
        %s319 = scalar_select %p318, %s317, 3
        %s320 = smul.addr %s319, 4
        %s321 = scalar_lea.vmem %s1, %s320
        %s322 = smul.u32 2, %s16
      $region56: #{ijepa_forward.3} parent=47 // pred_fallthru
        _
    $region48: #{ijepa_forward.3} parent=5 // pred_fallthru
      _
    %p323 = scmp.le.s32.totalorder 1, %s16
    %p324 = scmp.lt.s32.totalorder %s16, 3
    %p325 = pnand %p323, %p324
    %p326 = pneg %p325
    // Predicated region
    $region57: #{ijepa_forward.3} parent=5 // pred_check
      _
    $region58: #{ijepa_forward.3} parent=5 // pred_check_branch
      %328 = sbr.rel (%p325) target = $region60
    $region59: #{ijepa_forward.3} parent=5 // pred_region
      %s329 = ssub.s32 %s16, 1
      %s330 = smul.u32 2, %s21
      %p331 = scmp.lt.s32.totalorder %s330, 3
      %s332 = scalar_select %p331, %s330, 3
      %s333 = smul.addr %s332, 4
      %s334 = scalar_lea.vmem %s0, %s333
      %p335 = pneg %p42
      %p336 = pneg %p39
      %s337 = smul.u32 2, %s21
      %p338 = scmp.lt.s32.totalorder %s337, 3
      %s339 = scalar_select %p338, %s337, 3
      %s340 = smul.addr %s339, 4
      %s341 = scalar_lea.vmem %s1, %s340
      %p342 = pneg %p68
      %p343 = pneg %p65
      %p344 = pneg %p89
      %p345 = pneg %p86
      %p346 = pneg %p110
      %p347 = pneg %p107
      %p348 = pneg %p131
      %p349 = pneg %p128
      %p350 = pneg %p152
      %p351 = pneg %p149
      %p352 = pneg %p173
      %p353 = pneg %p170
      %p354 = pneg %p194
      %p355 = pneg %p191
      %p356 = pneg %p215
      %p357 = pneg %p212
      %p358 = pneg %p236
      %p359 = pneg %p233
      %p360 = pneg %p262
      %p361 = pneg %p259
      %s362 = smul.u32 2, %s21
      %p363 = scmp.lt.s32.totalorder %s362, 3
      %s364 = scalar_select %p363, %s362, 3
      %s365 = smul.addr %s364, 4
      %s366 = scalar_lea.vmem %s10, %s365
      %s367 = smul.u32 2, %s21
      %p368 = scmp.lt.s32.totalorder %s367, 3
      %s369 = scalar_select %p368, %s367, 3
      %s370 = smul.addr %s369, 4
      %s371 = scalar_lea.vmem %s0, %s370
      %s372 = smul.u32 2, %s21
      %s373 = smul.u32 2, %s21
      %p374 = scmp.lt.s32.totalorder %s373, 3
      %s375 = scalar_select %p374, %s373, 3
      %s376 = smul.addr %s375, 4
      %s377 = scalar_lea.vmem %s1, %s376
      %s378 = smul.u32 2, %s21
      %s379 = smul.u32 2, %s21
      %p380 = scmp.lt.s32.totalorder %s379, 3
      %s381 = scalar_select %p380, %s379, 3
      %s382 = smul.addr %s381, 4
      %s383 = scalar_lea.vmem %s10, %s382
      %s384 = smul.u32 2, %s21
      %v386 = vld [vmem:[%s371] sm:$0xf]
      %v387 = vld [vmem:[%s371 + $0x4] sm:$0xf]
      %v388 = vld [vmem:[%s2] sm:$0xf]
      %v389 = vld [vmem:[%s2 + $0x4] sm:$0xf]
      %v390 = vld [vmem:[%s2 + $0x8] sm:$0xf]
      %v391 = vld [vmem:[%s2 + $0xc] sm:$0xf]
      %v392 = vld [vmem:[%s2 + $0x10] sm:$0xf]
      %v393 = vld [vmem:[%s2 + $0x14] sm:$0xf]
      %v394 = vld [vmem:[%s2 + $0x18] sm:$0xf]
      %v395 = vld [vmem:[%s2 + $0x1c] sm:$0xf]
      %v396 = vld [vmem:[%s2 + $0x20] sm:$0xf]
      %v397 = vld [vmem:[%s2 + $0x24] sm:$0xf]
      %v398 = vld [vmem:[%s2 + $0x28] sm:$0xf]
      %v399 = vld [vmem:[%s2 + $0x2c] sm:$0xf]
      %v400 = vld [vmem:[%s2 + $0x30] sm:$0xf]
      %v401 = vld [vmem:[%s2 + $0x34] sm:$0xf]
      %v402 = vld [vmem:[%s2 + $0x38] sm:$0xf]
      %v403 = vld [vmem:[%s2 + $0x3c] sm:$0xf]
      %v404 = vld [vmem:[%s3] sm:$0x1]
      %v406 = vlaneseq
      %v407 = vshrl.u32 %v406, 7
      %v408 = vsub.s32 0, %v407
      %v409 = vrot.slane %v404, %v408
      %v413 = vunpack.c.l.b16 %v386
      %v414 = vunpack.c.l.b16 %v387
      %v415 = vpack.c.b16 %v414, %v413
      %v433 = vunpack.c.l.b16 %v388
      %v434 = vunpack.c.l.b16 %v389
      %v435 = vunpack.c.l.b16 %v390
      %v436 = vunpack.c.l.b16 %v391
      %v437 = vunpack.c.l.b16 %v392
      %v438 = vunpack.c.l.b16 %v393
      %v439 = vunpack.c.l.b16 %v394
      %v440 = vunpack.c.l.b16 %v395
      %v441 = vunpack.c.l.b16 %v396
      %v442 = vunpack.c.l.b16 %v397
      %v443 = vunpack.c.l.b16 %v398
      %v444 = vunpack.c.l.b16 %v399
      %v445 = vunpack.c.l.b16 %v400
      %v446 = vunpack.c.l.b16 %v401
      %v447 = vunpack.c.l.b16 %v402
      %v448 = vunpack.c.l.b16 %v403
      %v449 = vpack.c.b16 %v434, %v433
      %v450 = vpack.c.b16 %v436, %v435
      %v451 = vpack.c.b16 %v438, %v437
      %v452 = vpack.c.b16 %v440, %v439
      %v453 = vpack.c.b16 %v442, %v441
      %v454 = vpack.c.b16 %v444, %v443
      %v455 = vpack.c.b16 %v446, %v445
      %v456 = vpack.c.b16 %v448, %v447
      %465 = vmatprep.subr.bf16.mxu0 0
      %466 = vmatpush1.bf16.msra.mxu0 %v449
      %467 = vmatprep.subr.bf16.mxu0 0
      %468 = vmatpush1.bf16.msra.mxu0 %v450
      %469 = vmatprep.subr.bf16.mxu0 0
      %470 = vmatpush1.bf16.msra.mxu0 %v451
      %471 = vmatprep.subr.bf16.mxu0 0
      %472 = vmatpush1.bf16.msra.mxu0 %v452
      %473 = vmatprep.subr.bf16.mxu0 0
      %474 = vmatpush1.bf16.msra.mxu0 %v453
      %475 = vmatprep.subr.bf16.mxu0 0
      %476 = vmatpush1.bf16.msra.mxu0 %v454
      %477 = vmatprep.subr.bf16.mxu0 0
      %478 = vmatpush1.bf16.msra.mxu0 %v455
      %479 = vmatprep.subr.bf16.mxu0 0
      %480 = vmatpush1.bf16.msra.mxu0 %v456
      %481 = vmatprep.subr.bf16.mxu0 0
      %482 = vmatpush1.bf16.msra.mxu0 0
      %483 = vmatprep.subr.bf16.mxu0 0
      %484 = vmatpush1.bf16.msra.mxu0 0
      %485 = vmatprep.subr.bf16.mxu0 0
      %486 = vmatpush1.bf16.msra.mxu0 0
      %487 = vmatprep.subr.bf16.mxu0 0
      %488 = vmatpush1.bf16.msra.mxu0 0
      %489 = vmatprep.subr.bf16.mxu0 0
      %490 = vmatpush1.bf16.msra.mxu0 0
      %491 = vmatprep.subr.bf16.mxu0 0
      %492 = vmatpush1.bf16.msra.mxu0 0
      %493 = vmatprep.subr.bf16.mxu0 0
      %494 = vmatpush1.bf16.msra.mxu0 0
      %495 = vmatprep.subr.bf16.mxu0 0
      %496 = vmatpush1.bf16.msra.mxu0 0
      %497 = vmatprep.mubr.bf16.mxu0 0
      %498 = vmatmul.mubr.bf16.gmra.mrb[0].mxu0 %v415
      %v499 = vpop.f32.mrb[0].mxu0
      %v500 = vadd.f32 %v409, %v499
      %v501 = vpop.f32.mrb[0].mxu0
      %v502 = vpop.f32.mrb[0].mxu0
      %v503 = vadd.f32 %v409, %v502
      %v504 = vpop.f32.mrb[0].mxu0
      %505 = vdwg.mxu0
      %v506 = vld [vmem:[%s377] sm:$0xf]
      %v507 = vld [vmem:[%s377 + $0x4] sm:$0xf]
      %v508 = vunpack.c.l.bf16 %v506
      %v509 = vunpack.c.l.bf16 %v507
      %v510 = vadd.f32 %v500, %v508
      %v511 = vadd.f32 %v503, %v509
      %v512 = vpack.c.bf16 %v511, %v510
      %v513 = vld [vmem:[%s4] sm:$0xff]
      %v514 = vld [vmem:[%s4 + $0x8] sm:$0xff]
      %v515 = vld [vmem:[%s4 + $0x10] sm:$0xff]
      %v516 = vld [vmem:[%s4 + $0x18] sm:$0xff]
      %v517 = vld [vmem:[%s4 + $0x20] sm:$0xff]
      %v518 = vld [vmem:[%s4 + $0x28] sm:$0xff]
      %v519 = vld [vmem:[%s4 + $0x30] sm:$0xff]
      %v520 = vld [vmem:[%s4 + $0x38] sm:$0xff]
      %v521 = vld [vmem:[%s4 + $0x40] sm:$0xff]
      %v522 = vld [vmem:[%s4 + $0x48] sm:$0xff]
      %v523 = vld [vmem:[%s4 + $0x50] sm:$0xff]
      %v524 = vld [vmem:[%s4 + $0x58] sm:$0xff]
      %v525 = vld [vmem:[%s4 + $0x60] sm:$0xff]
      %v526 = vld [vmem:[%s4 + $0x68] sm:$0xff]
      %v527 = vld [vmem:[%s4 + $0x70] sm:$0xff]
      %v528 = vld [vmem:[%s4 + $0x78] sm:$0xff]
      %v529 = vld [vmem:[%s5] sm:$0x3]
      %v531 = vlaneseq
      %v532 = vshrl.u32 %v531, 7
      %v533 = vsub.s32 0, %v532
      %v534 = vrot.slane %v529, %v533
      %v535 = vlaneseq
      %v536 = vshrl.u32 %v535, 7
      %v537 = vsub.s32 1, %v536
      %v538 = vrot.slane %v529, %v537
      %v557 = vunpack.c.l.b16 %v513
      %v558 = vunpack.c.h.b16 %v513
      %v559 = vunpack.c.l.b16 %v514
      %v560 = vunpack.c.h.b16 %v514
      %v561 = vunpack.c.l.b16 %v515
      %v562 = vunpack.c.h.b16 %v515
      %v563 = vunpack.c.l.b16 %v516
      %v564 = vunpack.c.h.b16 %v516
      %v565 = vunpack.c.l.b16 %v517
      %v566 = vunpack.c.h.b16 %v517
      %v567 = vunpack.c.l.b16 %v518
      %v568 = vunpack.c.h.b16 %v518
      %v569 = vunpack.c.l.b16 %v519
      %v570 = vunpack.c.h.b16 %v519
      %v571 = vunpack.c.l.b16 %v520
      %v572 = vunpack.c.h.b16 %v520
      %v573 = vunpack.c.l.b16 %v521
      %v574 = vunpack.c.h.b16 %v521
      %v575 = vunpack.c.l.b16 %v522
      %v576 = vunpack.c.h.b16 %v522
      %v577 = vunpack.c.l.b16 %v523
      %v578 = vunpack.c.h.b16 %v523
      %v579 = vunpack.c.l.b16 %v524
      %v580 = vunpack.c.h.b16 %v524
      %v581 = vunpack.c.l.b16 %v525
      %v582 = vunpack.c.h.b16 %v525
      %v583 = vunpack.c.l.b16 %v526
      %v584 = vunpack.c.h.b16 %v526
      %v585 = vunpack.c.l.b16 %v527
      %v586 = vunpack.c.h.b16 %v527
      %v587 = vunpack.c.l.b16 %v528
      %v588 = vunpack.c.h.b16 %v528
      %v589 = vpack.c.b16 %v559, %v557
      %v590 = vpack.c.b16 %v560, %v558
      %v591 = vpack.c.b16 %v563, %v561
      %v592 = vpack.c.b16 %v564, %v562
      %v593 = vpack.c.b16 %v567, %v565
      %v594 = vpack.c.b16 %v568, %v566
      %v595 = vpack.c.b16 %v571, %v569
      %v596 = vpack.c.b16 %v572, %v570
      %v597 = vpack.c.b16 %v575, %v573
      %v598 = vpack.c.b16 %v576, %v574
      %v599 = vpack.c.b16 %v579, %v577
      %v600 = vpack.c.b16 %v580, %v578
      %v601 = vpack.c.b16 %v583, %v581
      %v602 = vpack.c.b16 %v584, %v582
      %v603 = vpack.c.b16 %v587, %v585
      %v604 = vpack.c.b16 %v588, %v586
      %621 = vmatprep.subr.bf16.mxu0 %v590
      %622 = vmatpush1.bf16.msra.mxu0 %v589
      %623 = vmatprep.subr.bf16.mxu0 %v592
      %624 = vmatpush1.bf16.msra.mxu0 %v591
      %625 = vmatprep.subr.bf16.mxu0 %v594
      %626 = vmatpush1.bf16.msra.mxu0 %v593
      %627 = vmatprep.subr.bf16.mxu0 %v596
      %628 = vmatpush1.bf16.msra.mxu0 %v595
      %629 = vmatprep.subr.bf16.mxu0 %v598
      %630 = vmatpush1.bf16.msra.mxu0 %v597
      %631 = vmatprep.subr.bf16.mxu0 %v600
      %632 = vmatpush1.bf16.msra.mxu0 %v599
      %633 = vmatprep.subr.bf16.mxu0 %v602
      %634 = vmatpush1.bf16.msra.mxu0 %v601
      %635 = vmatprep.subr.bf16.mxu0 %v604
      %636 = vmatpush1.bf16.msra.mxu0 %v603
      %637 = vmatprep.subr.bf16.mxu0 0
      %638 = vmatpush1.bf16.msra.mxu0 0
      %639 = vmatprep.subr.bf16.mxu0 0
      %640 = vmatpush1.bf16.msra.mxu0 0
      %641 = vmatprep.subr.bf16.mxu0 0
      %642 = vmatpush1.bf16.msra.mxu0 0
      %643 = vmatprep.subr.bf16.mxu0 0
      %644 = vmatpush1.bf16.msra.mxu0 0
      %645 = vmatprep.subr.bf16.mxu0 0
      %646 = vmatpush1.bf16.msra.mxu0 0
      %647 = vmatprep.subr.bf16.mxu0 0
      %648 = vmatpush1.bf16.msra.mxu0 0
      %649 = vmatprep.subr.bf16.mxu0 0
      %650 = vmatpush1.bf16.msra.mxu0 0
      %651 = vmatprep.subr.bf16.mxu0 0
      %652 = vmatpush1.bf16.msra.mxu0 0
      %653 = vmatprep.mubr.bf16.mxu0 0
      %654 = vmatmul.mubr.bf16.gmra.mrb[0].mxu0 %v512
      %v655 = vpop.f32.mrb[0].mxu0
      %v656 = vadd.f32 %v534, %v655
      %v657 = vpop.f32.mrb[0].mxu0
      %v658 = vadd.f32 %v538, %v657
      %v659 = vpop.f32.mrb[0].mxu0
      %v660 = vadd.f32 %v534, %v659
      %v661 = vpop.f32.mrb[0].mxu0
      %v662 = vadd.f32 %v538, %v661
      %663 = vdwg.mxu0
      %v664 = vmul.f32 %v656, %v656
      %v665 = vmul.f32 %v658, %v658
      %v666 = vmul.f32 %v660, %v660
      %v667 = vmul.f32 %v662, %v662
      %v668 = vmul.f32 %v656, %v664
      %v669 = vmul.f32 %v658, %v665
      %v670 = vmul.f32 %v660, %v666
      %v671 = vmul.f32 %v662, %v667
      %v672 = vmul.f32 %v668, 0.044715
      %v673 = vmul.f32 %v669, 0.044715
      %v674 = vmul.f32 %v670, 0.044715
      %v675 = vmul.f32 %v671, 0.044715
      %v676 = vadd.f32 %v656, %v672
      %v677 = vadd.f32 %v658, %v673
      %v678 = vadd.f32 %v660, %v674
      %v679 = vadd.f32 %v662, %v675
      %v680 = vmul.f32 %v676, 0.7978846
      %v681 = vmul.f32 %v677, 0.7978846
      %v682 = vmul.f32 %v678, 0.7978846
      %v683 = vmul.f32 %v679, 0.7978846
      %v684 = vtanh.pop %v680
      %v685 = vtanh.pop %v681
      %v686 = vtanh.pop %v682
      %v687 = vtanh.pop %v683
      %v688 = vadd.f32 %v684, 1.0
      %v689 = vadd.f32 %v685, 1.0
      %v690 = vadd.f32 %v686, 1.0
      %v691 = vadd.f32 %v687, 1.0
      %v692 = vmul.f32 %v688, 0.5
      %v693 = vmul.f32 %v689, 0.5
      %v694 = vmul.f32 %v690, 0.5
      %v695 = vmul.f32 %v691, 0.5
      %v696 = vmul.f32 %v656, %v692
      %v697 = vmul.f32 %v658, %v693
      %v698 = vmul.f32 %v660, %v694
      %v699 = vmul.f32 %v662, %v695
      %v700 = vpack.c.bf16 %v698, %v696
      %v701 = vpack.c.bf16 %v699, %v697
      %v702 = vld [vmem:[%s6] sm:$0xf]
      %v703 = vld [vmem:[%s6 + $0x4] sm:$0xf]
      %v704 = vld [vmem:[%s6 + $0x8] sm:$0xf]
      %v705 = vld [vmem:[%s6 + $0xc] sm:$0xf]
      %v706 = vld [vmem:[%s6 + $0x10] sm:$0xf]
      %v707 = vld [vmem:[%s6 + $0x14] sm:$0xf]
      %v708 = vld [vmem:[%s6 + $0x18] sm:$0xf]
      %v709 = vld [vmem:[%s6 + $0x1c] sm:$0xf]
      %v710 = vld [vmem:[%s6 + $0x20] sm:$0xf]
      %v711 = vld [vmem:[%s6 + $0x24] sm:$0xf]
      %v712 = vld [vmem:[%s6 + $0x28] sm:$0xf]
      %v713 = vld [vmem:[%s6 + $0x2c] sm:$0xf]
      %v714 = vld [vmem:[%s6 + $0x30] sm:$0xf]
      %v715 = vld [vmem:[%s6 + $0x34] sm:$0xf]
      %v716 = vld [vmem:[%s6 + $0x38] sm:$0xf]
      %v717 = vld [vmem:[%s6 + $0x3c] sm:$0xf]
      %v718 = vld [vmem:[%s6 + $0x40] sm:$0xf]
      %v719 = vld [vmem:[%s6 + $0x44] sm:$0xf]
      %v720 = vld [vmem:[%s6 + $0x48] sm:$0xf]
      %v721 = vld [vmem:[%s6 + $0x4c] sm:$0xf]
      %v722 = vld [vmem:[%s6 + $0x50] sm:$0xf]
      %v723 = vld [vmem:[%s6 + $0x54] sm:$0xf]
      %v724 = vld [vmem:[%s6 + $0x58] sm:$0xf]
      %v725 = vld [vmem:[%s6 + $0x5c] sm:$0xf]
      %v726 = vld [vmem:[%s6 + $0x60] sm:$0xf]
      %v727 = vld [vmem:[%s6 + $0x64] sm:$0xf]
      %v728 = vld [vmem:[%s6 + $0x68] sm:$0xf]
      %v729 = vld [vmem:[%s6 + $0x6c] sm:$0xf]
      %v730 = vld [vmem:[%s6 + $0x70] sm:$0xf]
      %v731 = vld [vmem:[%s6 + $0x74] sm:$0xf]
      %v732 = vld [vmem:[%s6 + $0x78] sm:$0xf]
      %v733 = vld [vmem:[%s6 + $0x7c] sm:$0xf]
      %v766 = vunpack.c.l.b16 %v702
      %v767 = vunpack.c.l.b16 %v703
      %v768 = vunpack.c.l.b16 %v704
      %v769 = vunpack.c.l.b16 %v705
      %v770 = vunpack.c.l.b16 %v706
      %v771 = vunpack.c.l.b16 %v707
      %v772 = vunpack.c.l.b16 %v708
      %v773 = vunpack.c.l.b16 %v709
      %v774 = vunpack.c.l.b16 %v710
      %v775 = vunpack.c.l.b16 %v711
      %v776 = vunpack.c.l.b16 %v712
      %v777 = vunpack.c.l.b16 %v713
      %v778 = vunpack.c.l.b16 %v714
      %v779 = vunpack.c.l.b16 %v715
      %v780 = vunpack.c.l.b16 %v716
      %v781 = vunpack.c.l.b16 %v717
      %v782 = vunpack.c.l.b16 %v718
      %v783 = vunpack.c.l.b16 %v719
      %v784 = vunpack.c.l.b16 %v720
      %v785 = vunpack.c.l.b16 %v721
      %v786 = vunpack.c.l.b16 %v722
      %v787 = vunpack.c.l.b16 %v723
      %v788 = vunpack.c.l.b16 %v724
      %v789 = vunpack.c.l.b16 %v725
      %v790 = vunpack.c.l.b16 %v726
      %v791 = vunpack.c.l.b16 %v727
      %v792 = vunpack.c.l.b16 %v728
      %v793 = vunpack.c.l.b16 %v729
      %v794 = vunpack.c.l.b16 %v730
      %v795 = vunpack.c.l.b16 %v731
      %v796 = vunpack.c.l.b16 %v732
      %v797 = vunpack.c.l.b16 %v733
      %v798 = vpack.c.b16 %v767, %v766
      %v799 = vpack.c.b16 %v769, %v768
      %v800 = vpack.c.b16 %v771, %v770
      %v801 = vpack.c.b16 %v773, %v772
      %v802 = vpack.c.b16 %v775, %v774
      %v803 = vpack.c.b16 %v777, %v776
      %v804 = vpack.c.b16 %v779, %v778
      %v805 = vpack.c.b16 %v781, %v780
      %v806 = vpack.c.b16 %v783, %v782
      %v807 = vpack.c.b16 %v785, %v784
      %v808 = vpack.c.b16 %v787, %v786
      %v809 = vpack.c.b16 %v789, %v788
      %v810 = vpack.c.b16 %v791, %v790
      %v811 = vpack.c.b16 %v793, %v792
      %v812 = vpack.c.b16 %v795, %v794
      %v813 = vpack.c.b16 %v797, %v796
      %830 = vmatprep.subr.bf16.mxu0 0
      %831 = vmatpush1.bf16.msra.mxu0 %v798
      %832 = vmatprep.subr.bf16.mxu0 0
      %833 = vmatpush1.bf16.msra.mxu0 %v799
      %834 = vmatprep.subr.bf16.mxu0 0
      %835 = vmatpush1.bf16.msra.mxu0 %v800
      %836 = vmatprep.subr.bf16.mxu0 0
      %837 = vmatpush1.bf16.msra.mxu0 %v801
      %838 = vmatprep.subr.bf16.mxu0 0
      %839 = vmatpush1.bf16.msra.mxu0 %v802
      %840 = vmatprep.subr.bf16.mxu0 0
      %841 = vmatpush1.bf16.msra.mxu0 %v803
      %842 = vmatprep.subr.bf16.mxu0 0
      %843 = vmatpush1.bf16.msra.mxu0 %v804
      %844 = vmatprep.subr.bf16.mxu0 0
      %845 = vmatpush1.bf16.msra.mxu0 %v805
      %846 = vmatprep.subr.bf16.mxu0 0
      %847 = vmatpush1.bf16.msra.mxu0 %v806
      %848 = vmatprep.subr.bf16.mxu0 0
      %849 = vmatpush1.bf16.msra.mxu0 %v807
      %850 = vmatprep.subr.bf16.mxu0 0
      %851 = vmatpush1.bf16.msra.mxu0 %v808
      %852 = vmatprep.subr.bf16.mxu0 0
      %853 = vmatpush1.bf16.msra.mxu0 %v809
      %854 = vmatprep.subr.bf16.mxu0 0
      %855 = vmatpush1.bf16.msra.mxu0 %v810
      %856 = vmatprep.subr.bf16.mxu0 0
      %857 = vmatpush1.bf16.msra.mxu0 %v811
      %858 = vmatprep.subr.bf16.mxu0 0
      %859 = vmatpush1.bf16.msra.mxu0 %v812
      %860 = vmatprep.subr.bf16.mxu0 0
      %861 = vmatpush1.bf16.msra.mxu0 %v813
      %862 = vmatprep.mubr.bf16.mxu0 %v701
      %863 = vmatmul.mubr.bf16.gmra.mrb[0].mxu0 %v700
      %v864 = vpop.f32.mrb[0].mxu0
      %v865 = vadd.f32 0.0, %v864
      %v866 = vpop.f32.mrb[0].mxu0
      %v867 = vpop.f32.mrb[0].mxu0
      %v868 = vadd.f32 0.0, %v867
      %v869 = vpop.f32.mrb[0].mxu0
      %870 = vdwg.mxu0
      %v871 = vadd.f32 %v510, %v865
      %v872 = vadd.f32 %v511, %v868
      %v873 = vld [vmem:[%s7] sm:$0x1]
      %v875 = vlaneseq
      %v876 = vshrl.u32 %v875, 7
      %v877 = vsub.s32 0, %v876
      %v878 = vrot.slane %v873, %v877
      %v880 = vadd.f32 %v871, %v878
      %v881 = vadd.f32 %v872, %v878
      %v882 = vpack.c.bf16 %v881, %v880
      %v883 = vld [vmem:[%s8] sm:$0xf]
      %v884 = vld [vmem:[%s8 + $0x4] sm:$0xf]
      %v885 = vld [vmem:[%s8 + $0x8] sm:$0xf]
      %v886 = vld [vmem:[%s8 + $0xc] sm:$0xf]
      %v887 = vld [vmem:[%s8 + $0x10] sm:$0xf]
      %v888 = vld [vmem:[%s8 + $0x14] sm:$0xf]
      %v889 = vld [vmem:[%s8 + $0x18] sm:$0xf]
      %v890 = vld [vmem:[%s8 + $0x1c] sm:$0xf]
      %v891 = vld [vmem:[%s8 + $0x20] sm:$0xf]
      %v892 = vld [vmem:[%s8 + $0x24] sm:$0xf]
      %v893 = vld [vmem:[%s8 + $0x28] sm:$0xf]
      %v894 = vld [vmem:[%s8 + $0x2c] sm:$0xf]
      %v895 = vld [vmem:[%s8 + $0x30] sm:$0xf]
      %v896 = vld [vmem:[%s8 + $0x34] sm:$0xf]
      %v897 = vld [vmem:[%s8 + $0x38] sm:$0xf]
      %v898 = vld [vmem:[%s8 + $0x3c] sm:$0xf]
      %v899 = vld [vmem:[%s9] sm:$0x1]
      %v901 = vlaneseq
      %v902 = vshrl.u32 %v901, 7
      %v903 = vsub.s32 0, %v902
      %v904 = vrot.slane %v899, %v903
      %v922 = vunpack.c.l.b16 %v883
      %v923 = vunpack.c.l.b16 %v884
      %v924 = vunpack.c.l.b16 %v885
      %v925 = vunpack.c.l.b16 %v886
      %v926 = vunpack.c.l.b16 %v887
      %v927 = vunpack.c.l.b16 %v888
      %v928 = vunpack.c.l.b16 %v889
      %v929 = vunpack.c.l.b16 %v890
      %v930 = vunpack.c.l.b16 %v891
      %v931 = vunpack.c.l.b16 %v892
      %v932 = vunpack.c.l.b16 %v893
      %v933 = vunpack.c.l.b16 %v894
      %v934 = vunpack.c.l.b16 %v895
      %v935 = vunpack.c.l.b16 %v896
      %v936 = vunpack.c.l.b16 %v897
      %v937 = vunpack.c.l.b16 %v898
      %v938 = vpack.c.b16 %v923, %v922
      %v939 = vpack.c.b16 %v925, %v924
      %v940 = vpack.c.b16 %v927, %v926
      %v941 = vpack.c.b16 %v929, %v928
      %v942 = vpack.c.b16 %v931, %v930
      %v943 = vpack.c.b16 %v933, %v932
      %v944 = vpack.c.b16 %v935, %v934
      %v945 = vpack.c.b16 %v937, %v936
      %954 = vmatprep.subr.bf16.mxu0 0
      %955 = vmatpush1.bf16.msra.mxu0 %v938
      %956 = vmatprep.subr.bf16.mxu0 0
      %957 = vmatpush1.bf16.msra.mxu0 %v939
      %958 = vmatprep.subr.bf16.mxu0 0
      %959 = vmatpush1.bf16.msra.mxu0 %v940
      %960 = vmatprep.subr.bf16.mxu0 0
      %961 = vmatpush1.bf16.msra.mxu0 %v941
      %962 = vmatprep.subr.bf16.mxu0 0
      %963 = vmatpush1.bf16.msra.mxu0 %v942
      %964 = vmatprep.subr.bf16.mxu0 0
      %965 = vmatpush1.bf16.msra.mxu0 %v943
      %966 = vmatprep.subr.bf16.mxu0 0
      %967 = vmatpush1.bf16.msra.mxu0 %v944
      %968 = vmatprep.subr.bf16.mxu0 0
      %969 = vmatpush1.bf16.msra.mxu0 %v945
      %970 = vmatprep.subr.bf16.mxu0 0
      %971 = vmatpush1.bf16.msra.mxu0 0
      %972 = vmatprep.subr.bf16.mxu0 0
      %973 = vmatpush1.bf16.msra.mxu0 0
      %974 = vmatprep.subr.bf16.mxu0 0
      %975 = vmatpush1.bf16.msra.mxu0 0
      %976 = vmatprep.subr.bf16.mxu0 0
      %977 = vmatpush1.bf16.msra.mxu0 0
      %978 = vmatprep.subr.bf16.mxu0 0
      %979 = vmatpush1.bf16.msra.mxu0 0
      %980 = vmatprep.subr.bf16.mxu0 0
      %981 = vmatpush1.bf16.msra.mxu0 0
      %982 = vmatprep.subr.bf16.mxu0 0
      %983 = vmatpush1.bf16.msra.mxu0 0
      %984 = vmatprep.subr.bf16.mxu0 0
      %985 = vmatpush1.bf16.msra.mxu0 0
      %986 = vmatprep.mubr.bf16.mxu0 0
      %987 = vmatmul.mubr.bf16.gmra.mrb[0].mxu0 %v882
      %v988 = vpop.f32.mrb[0].mxu0
      %v989 = vadd.f32 %v904, %v988
      %v990 = vpop.f32.mrb[0].mxu0
      %v991 = vpop.f32.mrb[0].mxu0
      %v992 = vadd.f32 %v904, %v991
      %v993 = vpop.f32.mrb[0].mxu0
      %994 = vdwg.mxu0
      %v995 = vpack.c.bf16 %v992, %v989
      %v997 = vunpack.c.l.b16 %v995
      %v998 = vunpack.c.h.b16 %v995
      %v999 = vpack.c.b16 %v997, %v997
      %v1000 = vpack.c.b16 %v998, %v998
      %1003 = vst [vmem:[%s383] sm:$0xf] %v999
      %1004 = vst [vmem:[%s383 + $0x4] sm:$0xf] %v1000
      %s1005 = smul.u32 2, %s21
      %p1006 = scmp.lt.s32.totalorder %s1005, 3
      %s1007 = scalar_select %p1006, %s1005, 3
      %s1008 = smul.addr %s1007, 4
      %s1009 = scalar_lea.vmem %s10, %s1008
      // Predicated region
      $region61: #{ijepa_forward.3} parent=59 // pred_check
        %p1010 = pneg %p259
      $region62: #{ijepa_forward.3} parent=59 // pred_check_branch
        %1012 = sbr.rel (%p1010) target = $region64
      $region63: #{ijepa_forward.3} parent=59 // pred_region
        %s1013 = smul.u32 2, %s21
      $region64: #{ijepa_forward.3} parent=59 // pred_fallthru
        _
    $region60: #{ijepa_forward.3} parent=5 // pred_fallthru
      _
    %p1014 = scmp.le.s32.totalorder 2, %s16
    // Predicated region
    $region65: #{ijepa_forward.3} parent=5 // pred_check
      %p1015 = pneg %p1014
    $region66: #{ijepa_forward.3} parent=5 // pred_check_branch
      %1017 = sbr.rel (%p1015) target = $region68
    $region67: #{ijepa_forward.3} parent=5 // pred_region
      %s1018 = ssub.s32 %s16, 2
      // Predicated region
      $region69: #{ijepa_forward.3} parent=67 // pred_check
        %p1019 = pneg %p265
      $region70: #{ijepa_forward.3} parent=67 // pred_check_branch
        %1021 = sbr.rel (%p1019) target = $region72
      $region71: #{ijepa_forward.3} parent=67 // pred_region
        %s1022 = smul.u32 2, %s22
        %p1023 = scmp.lt.s32.totalorder %s1022, 3
        %s1024 = scalar_select %p1023, %s1022, 3
        %s1025 = smul.addr %s1024, 4
        %s1026 = scalar_lea.vmem %s10, %s1025
      $region72: #{ijepa_forward.3} parent=67 // pred_fallthru
        _
    $region68: #{ijepa_forward.3} parent=5 // pred_fallthru
      _
  $region6: #{ijepa_forward.3} parent=0 // loop_footer
    %s20 = sadd.s32 1, %s16
  $region7: #{ijepa_forward.3} parent=0 // loop_footer_branch
    %15 = sbr.rel target = $region3
  $region8: #{ijepa_forward.3} parent=0 // loop_exit
    _

// kernel: ijepa_forward.5
$region0: #{ijepa_forward.5}
  #allocation0 [shape = 'u32[]', space=smem, size = 0x4, offset = 0x4, fixed_abs, tag = 'smem constant byte address 0x4 - core index']
  #allocation1 [shape = 'u32[144,128]{1,0:T(1,128)}', space=vmem, size = 0x12000, scoped, tag = 'internal scratch']
  %s0 = inlined_call_operand.vmem [shape: bf16[32,128], index: 0, kind: input, shape index: {}]
  %s1 = inlined_call_operand.vmem [shape: bf16[32,128], index: 1, kind: input, shape index: {}]
  %s2 = inlined_call_operand.vmem [shape: bf16[128,128], index: 2, kind: input, shape index: {}]
  %s3 = inlined_call_operand.vmem [shape: f32[1,128], index: 3, kind: input, shape index: {}]
  %s4 = inlined_call_operand.vmem [shape: bf16[128,256], index: 4, kind: input, shape index: {}]
  %s5 = inlined_call_operand.vmem [shape: f32[1,256], index: 5, kind: input, shape index: {}]
  %s6 = inlined_call_operand.vmem [shape: bf16[256,128], index: 6, kind: input, shape index: {}]
  %s7 = inlined_call_operand.vmem [shape: f32[1,128], index: 7, kind: input, shape index: {}]
  %s8 = inlined_call_operand.vmem [shape: f32[32,128], index: 8, kind: output, shape index: {}]
  %s9 = sld [smem:[#allocation0]]
  $region65: #{ijepa_forward.5} parent=0
    _
  %s11 = ssub.s32 1, %s9
  %s12 = scalar_select 0, %s11, %s9
  loop: start=0, step=1, limit=4
  $region2: #{ijepa_forward.5} parent=0 // loop_pre_header
    _
  $region3: #{ijepa_forward.5} parent=0 // loop_header
    %s14 = sphi 0, %s18
    %p15 = scmp.ge.s32.totalorder %s14, 4
    %s24 = sphi 0, %s26
    %s27 = sphi 0, %s24
    %s28 = sphi 0, %s27
    %s44 = sphi 0, %s28
    %s50 = sphi 0, %s52
    %s53 = sphi 0, %s50
    %s54 = sphi 0, %s53
    %s70 = sphi 0, %s54
    %s74 = sphi 0, %s74
    %s76 = sphi 0, %s74
    %s77 = sphi 0, %s76
    %s91 = sphi 0, %s77
    %s95 = sphi 0, %s95
    %s97 = sphi 0, %s95
    %s98 = sphi 0, %s97
    %s112 = sphi 0, %s98
    %s116 = sphi 0, %s116
    %s118 = sphi 0, %s116
    %s119 = sphi 0, %s118
    %s133 = sphi 0, %s119
    %s137 = sphi 0, %s137
    %s139 = sphi 0, %s137
    %s140 = sphi 0, %s139
    %s154 = sphi 0, %s140
    %s158 = sphi 0, %s158
    %s160 = sphi 0, %s158
    %s161 = sphi 0, %s160
    %s175 = sphi 0, %s161
    %s179 = sphi 0, %s179
    %s181 = sphi 0, %s179
    %s182 = sphi 0, %s181
    %s196 = sphi 0, %s182
    %s202 = sphi 0, %s204
    %s205 = sphi 0, %s202
    %s206 = sphi 0, %s205
    %s222 = sphi 0, %s206
  $region4: #{ijepa_forward.5} parent=0 // loop_header_branch
    %17 = sbr.rel (%p15) target = $region8
  $region5: #{ijepa_forward.5} parent=0 // loop_body
    %s19 = ssub.s32 %s14, 1
    %s20 = ssub.s32 %s14, 2
    %s21 = sadd.s32 %s14, 1
    %s22 = ssub.s32 %s14, %s21
    %p23 = scmp.eq.s32.totalorder %s22, 0
    %s25 = sadd.s32 %s24, 1
    %s26 = scalar_select %p23, %s24, %s25
    %p29 = pneg %p23
    %p30 = scmp.eq.s32.totalorder %s14, 1
    %p31 = por %p29, %p30
    %p32 = scmp.ne.s32.totalorder %s24, %s27
    %p33 = scmp.eq.s32.totalorder %s14, 0
    %p34 = por %p32, %p33
    %p35 = scmp.ne.s32.totalorder %s24, %s27
    %p36 = scmp.eq.s32.totalorder %s19, 1
    %p37 = por %p35, %p36
    %p38 = scmp.ne.s32.totalorder %s27, %s28
    %p39 = scmp.eq.s32.totalorder %s19, 0
    %p40 = por %p38, %p39
    %p41 = scmp.ne.s32.totalorder %s27, %s28
    %p42 = scmp.eq.s32.totalorder %s20, 1
    %p43 = por %p41, %p42
    %p45 = scmp.ne.s32.totalorder %s28, %s44
    %p46 = scmp.eq.s32.totalorder %s20, 0
    %p47 = por %p45, %p46
    %s48 = ssub.s32 %s14, %s21
    %p49 = scmp.eq.s32.totalorder %s48, 0
    %s51 = sadd.s32 %s50, 1
    %s52 = scalar_select %p49, %s50, %s51
    %p55 = pneg %p49
    %p56 = scmp.eq.s32.totalorder %s14, 1
    %p57 = por %p55, %p56
    %p58 = scmp.ne.s32.totalorder %s50, %s53
    %p59 = scmp.eq.s32.totalorder %s14, 0
    %p60 = por %p58, %p59
    %p61 = scmp.ne.s32.totalorder %s50, %s53
    %p62 = scmp.eq.s32.totalorder %s19, 1
    %p63 = por %p61, %p62
    %p64 = scmp.ne.s32.totalorder %s53, %s54
    %p65 = scmp.eq.s32.totalorder %s19, 0
    %p66 = por %p64, %p65
    %p67 = scmp.ne.s32.totalorder %s53, %s54
    %p68 = scmp.eq.s32.totalorder %s20, 1
    %p69 = por %p67, %p68
    %p71 = scmp.ne.s32.totalorder %s54, %s70
    %p72 = scmp.eq.s32.totalorder %s20, 0
    %p73 = por %p71, %p72
    %s75 = sadd.s32 %s74, 1
    %p78 = scmp.eq.s32.totalorder %s14, 1
    %p79 = scmp.ne.s32.totalorder %s74, %s76
    %p80 = scmp.eq.s32.totalorder %s14, 0
    %p81 = por %p79, %p80
    %p82 = scmp.ne.s32.totalorder %s74, %s76
    %p83 = scmp.eq.s32.totalorder %s19, 1
    %p84 = por %p82, %p83
    %p85 = scmp.ne.s32.totalorder %s76, %s77
    %p86 = scmp.eq.s32.totalorder %s19, 0
    %p87 = por %p85, %p86
    %p88 = scmp.ne.s32.totalorder %s76, %s77
    %p89 = scmp.eq.s32.totalorder %s20, 1
    %p90 = por %p88, %p89
    %p92 = scmp.ne.s32.totalorder %s77, %s91
    %p93 = scmp.eq.s32.totalorder %s20, 0
    %p94 = por %p92, %p93
    %s96 = sadd.s32 %s95, 1
    %p99 = scmp.eq.s32.totalorder %s14, 1
    %p100 = scmp.ne.s32.totalorder %s95, %s97
    %p101 = scmp.eq.s32.totalorder %s14, 0
    %p102 = por %p100, %p101
    %p103 = scmp.ne.s32.totalorder %s95, %s97
    %p104 = scmp.eq.s32.totalorder %s19, 1
    %p105 = por %p103, %p104
    %p106 = scmp.ne.s32.totalorder %s97, %s98
    %p107 = scmp.eq.s32.totalorder %s19, 0
    %p108 = por %p106, %p107
    %p109 = scmp.ne.s32.totalorder %s97, %s98
    %p110 = scmp.eq.s32.totalorder %s20, 1
    %p111 = por %p109, %p110
    %p113 = scmp.ne.s32.totalorder %s98, %s112
    %p114 = scmp.eq.s32.totalorder %s20, 0
    %p115 = por %p113, %p114
    %s117 = sadd.s32 %s116, 1
    %p120 = scmp.eq.s32.totalorder %s14, 1
    %p121 = scmp.ne.s32.totalorder %s116, %s118
    %p122 = scmp.eq.s32.totalorder %s14, 0
    %p123 = por %p121, %p122
    %p124 = scmp.ne.s32.totalorder %s116, %s118
    %p125 = scmp.eq.s32.totalorder %s19, 1
    %p126 = por %p124, %p125
    %p127 = scmp.ne.s32.totalorder %s118, %s119
    %p128 = scmp.eq.s32.totalorder %s19, 0
    %p129 = por %p127, %p128
    %p130 = scmp.ne.s32.totalorder %s118, %s119
    %p131 = scmp.eq.s32.totalorder %s20, 1
    %p132 = por %p130, %p131
    %p134 = scmp.ne.s32.totalorder %s119, %s133
    %p135 = scmp.eq.s32.totalorder %s20, 0
    %p136 = por %p134, %p135
    %s138 = sadd.s32 %s137, 1
    %p141 = scmp.eq.s32.totalorder %s14, 1
    %p142 = scmp.ne.s32.totalorder %s137, %s139
    %p143 = scmp.eq.s32.totalorder %s14, 0
    %p144 = por %p142, %p143
    %p145 = scmp.ne.s32.totalorder %s137, %s139
    %p146 = scmp.eq.s32.totalorder %s19, 1
    %p147 = por %p145, %p146
    %p148 = scmp.ne.s32.totalorder %s139, %s140
    %p149 = scmp.eq.s32.totalorder %s19, 0
    %p150 = por %p148, %p149
    %p151 = scmp.ne.s32.totalorder %s139, %s140
    %p152 = scmp.eq.s32.totalorder %s20, 1
    %p153 = por %p151, %p152
    %p155 = scmp.ne.s32.totalorder %s140, %s154
    %p156 = scmp.eq.s32.totalorder %s20, 0
    %p157 = por %p155, %p156
    %s159 = sadd.s32 %s158, 1
    %p162 = scmp.eq.s32.totalorder %s14, 1
    %p163 = scmp.ne.s32.totalorder %s158, %s160
    %p164 = scmp.eq.s32.totalorder %s14, 0
    %p165 = por %p163, %p164
    %p166 = scmp.ne.s32.totalorder %s158, %s160
    %p167 = scmp.eq.s32.totalorder %s19, 1
    %p168 = por %p166, %p167
    %p169 = scmp.ne.s32.totalorder %s160, %s161
    %p170 = scmp.eq.s32.totalorder %s19, 0
    %p171 = por %p169, %p170
    %p172 = scmp.ne.s32.totalorder %s160, %s161
    %p173 = scmp.eq.s32.totalorder %s20, 1
    %p174 = por %p172, %p173
    %p176 = scmp.ne.s32.totalorder %s161, %s175
    %p177 = scmp.eq.s32.totalorder %s20, 0
    %p178 = por %p176, %p177
    %s180 = sadd.s32 %s179, 1
    %p183 = scmp.eq.s32.totalorder %s14, 1
    %p184 = scmp.ne.s32.totalorder %s179, %s181
    %p185 = scmp.eq.s32.totalorder %s14, 0
    %p186 = por %p184, %p185
    %p187 = scmp.ne.s32.totalorder %s179, %s181
    %p188 = scmp.eq.s32.totalorder %s19, 1
    %p189 = por %p187, %p188
    %p190 = scmp.ne.s32.totalorder %s181, %s182
    %p191 = scmp.eq.s32.totalorder %s19, 0
    %p192 = por %p190, %p191
    %p193 = scmp.ne.s32.totalorder %s181, %s182
    %p194 = scmp.eq.s32.totalorder %s20, 1
    %p195 = por %p193, %p194
    %p197 = scmp.ne.s32.totalorder %s182, %s196
    %p198 = scmp.eq.s32.totalorder %s20, 0
    %p199 = por %p197, %p198
    %s200 = ssub.s32 %s14, %s21
    %p201 = scmp.eq.s32.totalorder %s200, 0
    %s203 = sadd.s32 %s202, 1
    %s204 = scalar_select %p201, %s202, %s203
    %p207 = pneg %p201
    %p208 = scmp.eq.s32.totalorder %s14, 1
    %p209 = por %p207, %p208
    %p210 = scmp.ne.s32.totalorder %s202, %s205
    %p211 = scmp.eq.s32.totalorder %s14, 0
    %p212 = por %p210, %p211
    %p213 = scmp.ne.s32.totalorder %s202, %s205
    %p214 = scmp.eq.s32.totalorder %s19, 1
    %p215 = por %p213, %p214
    %p216 = scmp.ne.s32.totalorder %s205, %s206
    %p217 = scmp.eq.s32.totalorder %s19, 0
    %p218 = por %p216, %p217
    %p219 = scmp.ne.s32.totalorder %s205, %s206
    %p220 = scmp.eq.s32.totalorder %s20, 1
    %p221 = por %p219, %p220
    %p223 = scmp.ne.s32.totalorder %s206, %s222
    %p224 = scmp.eq.s32.totalorder %s20, 0
    %p225 = por %p223, %p224
    %p226 = scmp.le.s32.totalorder 1, %s14
    %p227 = scmp.lt.s32.totalorder %s14, 3
    %p228 = pnand %p226, %p227
    %p229 = pneg %p228
    // Predicated region
    $region9: #{ijepa_forward.5} parent=5 // pred_check
      _
    $region10: #{ijepa_forward.5} parent=5 // pred_check_branch
      %231 = sbr.rel (%p228) target = $region12
    $region11: #{ijepa_forward.5} parent=5 // pred_region
      %s232 = ssub.s32 %s14, 1
      // Predicated region
      $region13: #{ijepa_forward.5} parent=11 // pred_check
        %p233 = pneg %p87
      $region14: #{ijepa_forward.5} parent=11 // pred_check_branch
        %235 = sbr.rel (%p233) target = $region16
      $region15: #{ijepa_forward.5} parent=11 // pred_region
        _
      $region16: #{ijepa_forward.5} parent=11 // pred_fallthru
        _
      // Predicated region
      $region17: #{ijepa_forward.5} parent=11 // pred_check
        %p236 = pneg %p108
      $region18: #{ijepa_forward.5} parent=11 // pred_check_branch
        %238 = sbr.rel (%p236) target = $region20
      $region19: #{ijepa_forward.5} parent=11 // pred_region
        _
      $region20: #{ijepa_forward.5} parent=11 // pred_fallthru
        _
      // Predicated region
      $region21: #{ijepa_forward.5} parent=11 // pred_check
        %p239 = pneg %p129
      $region22: #{ijepa_forward.5} parent=11 // pred_check_branch
        %241 = sbr.rel (%p239) target = $region24
      $region23: #{ijepa_forward.5} parent=11 // pred_region
        _
      $region24: #{ijepa_forward.5} parent=11 // pred_fallthru
        _
      // Predicated region
      $region25: #{ijepa_forward.5} parent=11 // pred_check
        %p242 = pneg %p150
      $region26: #{ijepa_forward.5} parent=11 // pred_check_branch
        %244 = sbr.rel (%p242) target = $region28
      $region27: #{ijepa_forward.5} parent=11 // pred_region
        _
      $region28: #{ijepa_forward.5} parent=11 // pred_fallthru
        _
      // Predicated region
      $region29: #{ijepa_forward.5} parent=11 // pred_check
        %p245 = pneg %p171
      $region30: #{ijepa_forward.5} parent=11 // pred_check_branch
        %247 = sbr.rel (%p245) target = $region32
      $region31: #{ijepa_forward.5} parent=11 // pred_region
        _
      $region32: #{ijepa_forward.5} parent=11 // pred_fallthru
        _
      // Predicated region
      $region33: #{ijepa_forward.5} parent=11 // pred_check
        %p248 = pneg %p192
      $region34: #{ijepa_forward.5} parent=11 // pred_check_branch
        %250 = sbr.rel (%p248) target = $region36
      $region35: #{ijepa_forward.5} parent=11 // pred_region
        _
      $region36: #{ijepa_forward.5} parent=11 // pred_fallthru
        _
    $region12: #{ijepa_forward.5} parent=5 // pred_fallthru
      _
    %p251 = scmp.lt.s32.totalorder %s14, 2
    // Predicated region
    $region37: #{ijepa_forward.5} parent=5 // pred_check
      %p252 = pneg %p251
    $region38: #{ijepa_forward.5} parent=5 // pred_check_branch
      %254 = sbr.rel (%p252) target = $region40
    $region39: #{ijepa_forward.5} parent=5 // pred_region
      // Predicated region
      $region41: #{ijepa_forward.5} parent=39 // pred_check
        %p255 = pneg %p34
      $region42: #{ijepa_forward.5} parent=39 // pred_check_branch
        %257 = sbr.rel (%p255) target = $region44
      $region43: #{ijepa_forward.5} parent=39 // pred_region
        %s258 = smul.u32 2, %s14
        %p259 = scmp.lt.s32.totalorder %s258, 3
        %s260 = scalar_select %p259, %s258, 3
        %s261 = smul.addr %s260, 4
        %s262 = scalar_lea.vmem %s0, %s261
        %s263 = smul.u32 2, %s14
      $region44: #{ijepa_forward.5} parent=39 // pred_fallthru
        _
      // Predicated region
      $region45: #{ijepa_forward.5} parent=39 // pred_check
        %p264 = pneg %p60
      $region46: #{ijepa_forward.5} parent=39 // pred_check_branch
        %266 = sbr.rel (%p264) target = $region48
      $region47: #{ijepa_forward.5} parent=39 // pred_region
        %s267 = smul.u32 2, %s14
        %p268 = scmp.lt.s32.totalorder %s267, 3
        %s269 = scalar_select %p268, %s267, 3
        %s270 = smul.addr %s269, 4
        %s271 = scalar_lea.vmem %s1, %s270
        %s272 = smul.u32 2, %s14
      $region48: #{ijepa_forward.5} parent=39 // pred_fallthru
        _
    $region40: #{ijepa_forward.5} parent=5 // pred_fallthru
      _
    %p273 = scmp.le.s32.totalorder 1, %s14
    %p274 = scmp.lt.s32.totalorder %s14, 3
    %p275 = pnand %p273, %p274
    %p276 = pneg %p275
    // Predicated region
    $region49: #{ijepa_forward.5} parent=5 // pred_check
      _
    $region50: #{ijepa_forward.5} parent=5 // pred_check_branch
      %278 = sbr.rel (%p275) target = $region52
    $region51: #{ijepa_forward.5} parent=5 // pred_region
      %s279 = ssub.s32 %s14, 1
      %s280 = smul.u32 2, %s19
      %p281 = scmp.lt.s32.totalorder %s280, 3
      %s282 = scalar_select %p281, %s280, 3
      %s283 = smul.addr %s282, 4
      %s284 = scalar_lea.vmem %s0, %s283
      %p285 = pneg %p40
      %p286 = pneg %p37
      %s287 = smul.u32 2, %s19
      %p288 = scmp.lt.s32.totalorder %s287, 3
      %s289 = scalar_select %p288, %s287, 3
      %s290 = smul.addr %s289, 4
      %s291 = scalar_lea.vmem %s1, %s290
      %p292 = pneg %p66
      %p293 = pneg %p63
      %p294 = pneg %p87
      %p295 = pneg %p84
      %p296 = pneg %p108
      %p297 = pneg %p105
      %p298 = pneg %p129
      %p299 = pneg %p126
      %p300 = pneg %p150
      %p301 = pneg %p147
      %p302 = pneg %p171
      %p303 = pneg %p168
      %p304 = pneg %p192
      %p305 = pneg %p189
      %p306 = pneg %p218
      %p307 = pneg %p215
      %s308 = smul.u32 2, %s19
      %p309 = scmp.lt.s32.totalorder %s308, 3
      %s310 = scalar_select %p309, %s308, 3
      %s311 = smul.addr %s310, 8
      %s312 = scalar_lea.vmem %s8, %s311
      %s313 = smul.u32 2, %s19
      %p314 = scmp.lt.s32.totalorder %s313, 3
      %s315 = scalar_select %p314, %s313, 3
      %s316 = smul.addr %s315, 4
      %s317 = scalar_lea.vmem %s0, %s316
      %s318 = smul.u32 2, %s19
      %s319 = smul.u32 2, %s19
      %p320 = scmp.lt.s32.totalorder %s319, 3
      %s321 = scalar_select %p320, %s319, 3
      %s322 = smul.addr %s321, 4
      %s323 = scalar_lea.vmem %s1, %s322
      %s324 = smul.u32 2, %s19
      %s325 = smul.u32 2, %s19
      %p326 = scmp.lt.s32.totalorder %s325, 3
      %s327 = scalar_select %p326, %s325, 3
      %s328 = smul.addr %s327, 8
      %s329 = scalar_lea.vmem %s8, %s328
      %s330 = smul.u32 2, %s19
      %v332 = vld [vmem:[%s317] sm:$0xf]
      %v333 = vld [vmem:[%s317 + $0x4] sm:$0xf]
      %v334 = vld [vmem:[%s2] sm:$0xf]
      %v335 = vld [vmem:[%s2 + $0x4] sm:$0xf]
      %v336 = vld [vmem:[%s2 + $0x8] sm:$0xf]
      %v337 = vld [vmem:[%s2 + $0xc] sm:$0xf]
      %v338 = vld [vmem:[%s2 + $0x10] sm:$0xf]
      %v339 = vld [vmem:[%s2 + $0x14] sm:$0xf]
      %v340 = vld [vmem:[%s2 + $0x18] sm:$0xf]
      %v341 = vld [vmem:[%s2 + $0x1c] sm:$0xf]
      %v342 = vld [vmem:[%s2 + $0x20] sm:$0xf]
      %v343 = vld [vmem:[%s2 + $0x24] sm:$0xf]
      %v344 = vld [vmem:[%s2 + $0x28] sm:$0xf]
      %v345 = vld [vmem:[%s2 + $0x2c] sm:$0xf]
      %v346 = vld [vmem:[%s2 + $0x30] sm:$0xf]
      %v347 = vld [vmem:[%s2 + $0x34] sm:$0xf]
      %v348 = vld [vmem:[%s2 + $0x38] sm:$0xf]
      %v349 = vld [vmem:[%s2 + $0x3c] sm:$0xf]
      %v350 = vld [vmem:[%s3] sm:$0x1]
      %v352 = vlaneseq
      %v353 = vshrl.u32 %v352, 7
      %v354 = vsub.s32 0, %v353
      %v355 = vrot.slane %v350, %v354
      %v359 = vunpack.c.l.b16 %v332
      %v360 = vunpack.c.l.b16 %v333
      %v361 = vpack.c.b16 %v360, %v359
      %v379 = vunpack.c.l.b16 %v334
      %v380 = vunpack.c.l.b16 %v335
      %v381 = vunpack.c.l.b16 %v336
      %v382 = vunpack.c.l.b16 %v337
      %v383 = vunpack.c.l.b16 %v338
      %v384 = vunpack.c.l.b16 %v339
      %v385 = vunpack.c.l.b16 %v340
      %v386 = vunpack.c.l.b16 %v341
      %v387 = vunpack.c.l.b16 %v342
      %v388 = vunpack.c.l.b16 %v343
      %v389 = vunpack.c.l.b16 %v344
      %v390 = vunpack.c.l.b16 %v345
      %v391 = vunpack.c.l.b16 %v346
      %v392 = vunpack.c.l.b16 %v347
      %v393 = vunpack.c.l.b16 %v348
      %v394 = vunpack.c.l.b16 %v349
      %v395 = vpack.c.b16 %v380, %v379
      %v396 = vpack.c.b16 %v382, %v381
      %v397 = vpack.c.b16 %v384, %v383
      %v398 = vpack.c.b16 %v386, %v385
      %v399 = vpack.c.b16 %v388, %v387
      %v400 = vpack.c.b16 %v390, %v389
      %v401 = vpack.c.b16 %v392, %v391
      %v402 = vpack.c.b16 %v394, %v393
      %411 = vmatprep.subr.bf16.mxu0 0
      %412 = vmatpush1.bf16.msra.mxu0 %v395
      %413 = vmatprep.subr.bf16.mxu0 0
      %414 = vmatpush1.bf16.msra.mxu0 %v396
      %415 = vmatprep.subr.bf16.mxu0 0
      %416 = vmatpush1.bf16.msra.mxu0 %v397
      %417 = vmatprep.subr.bf16.mxu0 0
      %418 = vmatpush1.bf16.msra.mxu0 %v398
      %419 = vmatprep.subr.bf16.mxu0 0
      %420 = vmatpush1.bf16.msra.mxu0 %v399
      %421 = vmatprep.subr.bf16.mxu0 0
      %422 = vmatpush1.bf16.msra.mxu0 %v400
      %423 = vmatprep.subr.bf16.mxu0 0
      %424 = vmatpush1.bf16.msra.mxu0 %v401
      %425 = vmatprep.subr.bf16.mxu0 0
      %426 = vmatpush1.bf16.msra.mxu0 %v402
      %427 = vmatprep.subr.bf16.mxu0 0
      %428 = vmatpush1.bf16.msra.mxu0 0
      %429 = vmatprep.subr.bf16.mxu0 0
      %430 = vmatpush1.bf16.msra.mxu0 0
      %431 = vmatprep.subr.bf16.mxu0 0
      %432 = vmatpush1.bf16.msra.mxu0 0
      %433 = vmatprep.subr.bf16.mxu0 0
      %434 = vmatpush1.bf16.msra.mxu0 0
      %435 = vmatprep.subr.bf16.mxu0 0
      %436 = vmatpush1.bf16.msra.mxu0 0
      %437 = vmatprep.subr.bf16.mxu0 0
      %438 = vmatpush1.bf16.msra.mxu0 0
      %439 = vmatprep.subr.bf16.mxu0 0
      %440 = vmatpush1.bf16.msra.mxu0 0
      %441 = vmatprep.subr.bf16.mxu0 0
      %442 = vmatpush1.bf16.msra.mxu0 0
      %443 = vmatprep.mubr.bf16.mxu0 0
      %444 = vmatmul.mubr.bf16.gmra.mrb[0].mxu0 %v361
      %v445 = vpop.f32.mrb[0].mxu0
      %v446 = vadd.f32 %v355, %v445
      %v447 = vpop.f32.mrb[0].mxu0
      %v448 = vpop.f32.mrb[0].mxu0
      %v449 = vadd.f32 %v355, %v448
      %v450 = vpop.f32.mrb[0].mxu0
      %451 = vdwg.mxu0
      %v452 = vld [vmem:[%s323] sm:$0xf]
      %v453 = vld [vmem:[%s323 + $0x4] sm:$0xf]
      %v454 = vunpack.c.l.bf16 %v452
      %v455 = vunpack.c.l.bf16 %v453
      %v456 = vadd.f32 %v446, %v454
      %v457 = vadd.f32 %v449, %v455
      %v458 = vpack.c.bf16 %v457, %v456
      %v459 = vld [vmem:[%s4] sm:$0xff]
      %v460 = vld [vmem:[%s4 + $0x8] sm:$0xff]
      %v461 = vld [vmem:[%s4 + $0x10] sm:$0xff]
      %v462 = vld [vmem:[%s4 + $0x18] sm:$0xff]
      %v463 = vld [vmem:[%s4 + $0x20] sm:$0xff]
      %v464 = vld [vmem:[%s4 + $0x28] sm:$0xff]
      %v465 = vld [vmem:[%s4 + $0x30] sm:$0xff]
      %v466 = vld [vmem:[%s4 + $0x38] sm:$0xff]
      %v467 = vld [vmem:[%s4 + $0x40] sm:$0xff]
      %v468 = vld [vmem:[%s4 + $0x48] sm:$0xff]
      %v469 = vld [vmem:[%s4 + $0x50] sm:$0xff]
      %v470 = vld [vmem:[%s4 + $0x58] sm:$0xff]
      %v471 = vld [vmem:[%s4 + $0x60] sm:$0xff]
      %v472 = vld [vmem:[%s4 + $0x68] sm:$0xff]
      %v473 = vld [vmem:[%s4 + $0x70] sm:$0xff]
      %v474 = vld [vmem:[%s4 + $0x78] sm:$0xff]
      %v475 = vld [vmem:[%s5] sm:$0x3]
      %v477 = vlaneseq
      %v478 = vshrl.u32 %v477, 7
      %v479 = vsub.s32 0, %v478
      %v480 = vrot.slane %v475, %v479
      %v481 = vlaneseq
      %v482 = vshrl.u32 %v481, 7
      %v483 = vsub.s32 1, %v482
      %v484 = vrot.slane %v475, %v483
      %v503 = vunpack.c.l.b16 %v459
      %v504 = vunpack.c.h.b16 %v459
      %v505 = vunpack.c.l.b16 %v460
      %v506 = vunpack.c.h.b16 %v460
      %v507 = vunpack.c.l.b16 %v461
      %v508 = vunpack.c.h.b16 %v461
      %v509 = vunpack.c.l.b16 %v462
      %v510 = vunpack.c.h.b16 %v462
      %v511 = vunpack.c.l.b16 %v463
      %v512 = vunpack.c.h.b16 %v463
      %v513 = vunpack.c.l.b16 %v464
      %v514 = vunpack.c.h.b16 %v464
      %v515 = vunpack.c.l.b16 %v465
      %v516 = vunpack.c.h.b16 %v465
      %v517 = vunpack.c.l.b16 %v466
      %v518 = vunpack.c.h.b16 %v466
      %v519 = vunpack.c.l.b16 %v467
      %v520 = vunpack.c.h.b16 %v467
      %v521 = vunpack.c.l.b16 %v468
      %v522 = vunpack.c.h.b16 %v468
      %v523 = vunpack.c.l.b16 %v469
      %v524 = vunpack.c.h.b16 %v469
      %v525 = vunpack.c.l.b16 %v470
      %v526 = vunpack.c.h.b16 %v470
      %v527 = vunpack.c.l.b16 %v471
      %v528 = vunpack.c.h.b16 %v471
      %v529 = vunpack.c.l.b16 %v472
      %v530 = vunpack.c.h.b16 %v472
      %v531 = vunpack.c.l.b16 %v473
      %v532 = vunpack.c.h.b16 %v473
      %v533 = vunpack.c.l.b16 %v474
      %v534 = vunpack.c.h.b16 %v474
      %v535 = vpack.c.b16 %v505, %v503
      %v536 = vpack.c.b16 %v506, %v504
      %v537 = vpack.c.b16 %v509, %v507
      %v538 = vpack.c.b16 %v510, %v508
      %v539 = vpack.c.b16 %v513, %v511
      %v540 = vpack.c.b16 %v514, %v512
      %v541 = vpack.c.b16 %v517, %v515
      %v542 = vpack.c.b16 %v518, %v516
      %v543 = vpack.c.b16 %v521, %v519
      %v544 = vpack.c.b16 %v522, %v520
      %v545 = vpack.c.b16 %v525, %v523
      %v546 = vpack.c.b16 %v526, %v524
      %v547 = vpack.c.b16 %v529, %v527
      %v548 = vpack.c.b16 %v530, %v528
      %v549 = vpack.c.b16 %v533, %v531
      %v550 = vpack.c.b16 %v534, %v532
      %567 = vmatprep.subr.bf16.mxu0 %v536
      %568 = vmatpush1.bf16.msra.mxu0 %v535
      %569 = vmatprep.subr.bf16.mxu0 %v538
      %570 = vmatpush1.bf16.msra.mxu0 %v537
      %571 = vmatprep.subr.bf16.mxu0 %v540
      %572 = vmatpush1.bf16.msra.mxu0 %v539
      %573 = vmatprep.subr.bf16.mxu0 %v542
      %574 = vmatpush1.bf16.msra.mxu0 %v541
      %575 = vmatprep.subr.bf16.mxu0 %v544
      %576 = vmatpush1.bf16.msra.mxu0 %v543
      %577 = vmatprep.subr.bf16.mxu0 %v546
      %578 = vmatpush1.bf16.msra.mxu0 %v545
      %579 = vmatprep.subr.bf16.mxu0 %v548
      %580 = vmatpush1.bf16.msra.mxu0 %v547
      %581 = vmatprep.subr.bf16.mxu0 %v550
      %582 = vmatpush1.bf16.msra.mxu0 %v549
      %583 = vmatprep.subr.bf16.mxu0 0
      %584 = vmatpush1.bf16.msra.mxu0 0
      %585 = vmatprep.subr.bf16.mxu0 0
      %586 = vmatpush1.bf16.msra.mxu0 0
      %587 = vmatprep.subr.bf16.mxu0 0
      %588 = vmatpush1.bf16.msra.mxu0 0
      %589 = vmatprep.subr.bf16.mxu0 0
      %590 = vmatpush1.bf16.msra.mxu0 0
      %591 = vmatprep.subr.bf16.mxu0 0
      %592 = vmatpush1.bf16.msra.mxu0 0
      %593 = vmatprep.subr.bf16.mxu0 0
      %594 = vmatpush1.bf16.msra.mxu0 0
      %595 = vmatprep.subr.bf16.mxu0 0
      %596 = vmatpush1.bf16.msra.mxu0 0
      %597 = vmatprep.subr.bf16.mxu0 0
      %598 = vmatpush1.bf16.msra.mxu0 0
      %599 = vmatprep.mubr.bf16.mxu0 0
      %600 = vmatmul.mubr.bf16.gmra.mrb[0].mxu0 %v458
      %v601 = vpop.f32.mrb[0].mxu0
      %v602 = vadd.f32 %v480, %v601
      %v603 = vpop.f32.mrb[0].mxu0
      %v604 = vadd.f32 %v484, %v603
      %v605 = vpop.f32.mrb[0].mxu0
      %v606 = vadd.f32 %v480, %v605
      %v607 = vpop.f32.mrb[0].mxu0
      %v608 = vadd.f32 %v484, %v607
      %609 = vdwg.mxu0
      %v610 = vmul.f32 %v602, %v602
      %v611 = vmul.f32 %v604, %v604
      %v612 = vmul.f32 %v606, %v606
      %v613 = vmul.f32 %v608, %v608
      %v614 = vmul.f32 %v602, %v610
      %v615 = vmul.f32 %v604, %v611
      %v616 = vmul.f32 %v606, %v612
      %v617 = vmul.f32 %v608, %v613
      %v618 = vmul.f32 %v614, 0.044715
      %v619 = vmul.f32 %v615, 0.044715
      %v620 = vmul.f32 %v616, 0.044715
      %v621 = vmul.f32 %v617, 0.044715
      %v622 = vadd.f32 %v602, %v618
      %v623 = vadd.f32 %v604, %v619
      %v624 = vadd.f32 %v606, %v620
      %v625 = vadd.f32 %v608, %v621
      %v626 = vmul.f32 %v622, 0.7978846
      %v627 = vmul.f32 %v623, 0.7978846
      %v628 = vmul.f32 %v624, 0.7978846
      %v629 = vmul.f32 %v625, 0.7978846
      %v630 = vtanh.pop %v626
      %v631 = vtanh.pop %v627
      %v632 = vtanh.pop %v628
      %v633 = vtanh.pop %v629
      %v634 = vadd.f32 %v630, 1.0
      %v635 = vadd.f32 %v631, 1.0
      %v636 = vadd.f32 %v632, 1.0
      %v637 = vadd.f32 %v633, 1.0
      %v638 = vmul.f32 %v634, 0.5
      %v639 = vmul.f32 %v635, 0.5
      %v640 = vmul.f32 %v636, 0.5
      %v641 = vmul.f32 %v637, 0.5
      %v642 = vmul.f32 %v602, %v638
      %v643 = vmul.f32 %v604, %v639
      %v644 = vmul.f32 %v606, %v640
      %v645 = vmul.f32 %v608, %v641
      %v646 = vpack.c.bf16 %v644, %v642
      %v647 = vpack.c.bf16 %v645, %v643
      %v648 = vld [vmem:[%s6] sm:$0xf]
      %v649 = vld [vmem:[%s6 + $0x4] sm:$0xf]
      %v650 = vld [vmem:[%s6 + $0x8] sm:$0xf]
      %v651 = vld [vmem:[%s6 + $0xc] sm:$0xf]
      %v652 = vld [vmem:[%s6 + $0x10] sm:$0xf]
      %v653 = vld [vmem:[%s6 + $0x14] sm:$0xf]
      %v654 = vld [vmem:[%s6 + $0x18] sm:$0xf]
      %v655 = vld [vmem:[%s6 + $0x1c] sm:$0xf]
      %v656 = vld [vmem:[%s6 + $0x20] sm:$0xf]
      %v657 = vld [vmem:[%s6 + $0x24] sm:$0xf]
      %v658 = vld [vmem:[%s6 + $0x28] sm:$0xf]
      %v659 = vld [vmem:[%s6 + $0x2c] sm:$0xf]
      %v660 = vld [vmem:[%s6 + $0x30] sm:$0xf]
      %v661 = vld [vmem:[%s6 + $0x34] sm:$0xf]
      %v662 = vld [vmem:[%s6 + $0x38] sm:$0xf]
      %v663 = vld [vmem:[%s6 + $0x3c] sm:$0xf]
      %v664 = vld [vmem:[%s6 + $0x40] sm:$0xf]
      %v665 = vld [vmem:[%s6 + $0x44] sm:$0xf]
      %v666 = vld [vmem:[%s6 + $0x48] sm:$0xf]
      %v667 = vld [vmem:[%s6 + $0x4c] sm:$0xf]
      %v668 = vld [vmem:[%s6 + $0x50] sm:$0xf]
      %v669 = vld [vmem:[%s6 + $0x54] sm:$0xf]
      %v670 = vld [vmem:[%s6 + $0x58] sm:$0xf]
      %v671 = vld [vmem:[%s6 + $0x5c] sm:$0xf]
      %v672 = vld [vmem:[%s6 + $0x60] sm:$0xf]
      %v673 = vld [vmem:[%s6 + $0x64] sm:$0xf]
      %v674 = vld [vmem:[%s6 + $0x68] sm:$0xf]
      %v675 = vld [vmem:[%s6 + $0x6c] sm:$0xf]
      %v676 = vld [vmem:[%s6 + $0x70] sm:$0xf]
      %v677 = vld [vmem:[%s6 + $0x74] sm:$0xf]
      %v678 = vld [vmem:[%s6 + $0x78] sm:$0xf]
      %v679 = vld [vmem:[%s6 + $0x7c] sm:$0xf]
      %v712 = vunpack.c.l.b16 %v648
      %v713 = vunpack.c.l.b16 %v649
      %v714 = vunpack.c.l.b16 %v650
      %v715 = vunpack.c.l.b16 %v651
      %v716 = vunpack.c.l.b16 %v652
      %v717 = vunpack.c.l.b16 %v653
      %v718 = vunpack.c.l.b16 %v654
      %v719 = vunpack.c.l.b16 %v655
      %v720 = vunpack.c.l.b16 %v656
      %v721 = vunpack.c.l.b16 %v657
      %v722 = vunpack.c.l.b16 %v658
      %v723 = vunpack.c.l.b16 %v659
      %v724 = vunpack.c.l.b16 %v660
      %v725 = vunpack.c.l.b16 %v661
      %v726 = vunpack.c.l.b16 %v662
      %v727 = vunpack.c.l.b16 %v663
      %v728 = vunpack.c.l.b16 %v664
      %v729 = vunpack.c.l.b16 %v665
      %v730 = vunpack.c.l.b16 %v666
      %v731 = vunpack.c.l.b16 %v667
      %v732 = vunpack.c.l.b16 %v668
      %v733 = vunpack.c.l.b16 %v669
      %v734 = vunpack.c.l.b16 %v670
      %v735 = vunpack.c.l.b16 %v671
      %v736 = vunpack.c.l.b16 %v672
      %v737 = vunpack.c.l.b16 %v673
      %v738 = vunpack.c.l.b16 %v674
      %v739 = vunpack.c.l.b16 %v675
      %v740 = vunpack.c.l.b16 %v676
      %v741 = vunpack.c.l.b16 %v677
      %v742 = vunpack.c.l.b16 %v678
      %v743 = vunpack.c.l.b16 %v679
      %v744 = vpack.c.b16 %v713, %v712
      %v745 = vpack.c.b16 %v715, %v714
      %v746 = vpack.c.b16 %v717, %v716
      %v747 = vpack.c.b16 %v719, %v718
      %v748 = vpack.c.b16 %v721, %v720
      %v749 = vpack.c.b16 %v723, %v722
      %v750 = vpack.c.b16 %v725, %v724
      %v751 = vpack.c.b16 %v727, %v726
      %v752 = vpack.c.b16 %v729, %v728
      %v753 = vpack.c.b16 %v731, %v730
      %v754 = vpack.c.b16 %v733, %v732
      %v755 = vpack.c.b16 %v735, %v734
      %v756 = vpack.c.b16 %v737, %v736
      %v757 = vpack.c.b16 %v739, %v738
      %v758 = vpack.c.b16 %v741, %v740
      %v759 = vpack.c.b16 %v743, %v742
      %776 = vmatprep.subr.bf16.mxu0 0
      %777 = vmatpush1.bf16.msra.mxu0 %v744
      %778 = vmatprep.subr.bf16.mxu0 0
      %779 = vmatpush1.bf16.msra.mxu0 %v745
      %780 = vmatprep.subr.bf16.mxu0 0
      %781 = vmatpush1.bf16.msra.mxu0 %v746
      %782 = vmatprep.subr.bf16.mxu0 0
      %783 = vmatpush1.bf16.msra.mxu0 %v747
      %784 = vmatprep.subr.bf16.mxu0 0
      %785 = vmatpush1.bf16.msra.mxu0 %v748
      %786 = vmatprep.subr.bf16.mxu0 0
      %787 = vmatpush1.bf16.msra.mxu0 %v749
      %788 = vmatprep.subr.bf16.mxu0 0
      %789 = vmatpush1.bf16.msra.mxu0 %v750
      %790 = vmatprep.subr.bf16.mxu0 0
      %791 = vmatpush1.bf16.msra.mxu0 %v751
      %792 = vmatprep.subr.bf16.mxu0 0
      %793 = vmatpush1.bf16.msra.mxu0 %v752
      %794 = vmatprep.subr.bf16.mxu0 0
      %795 = vmatpush1.bf16.msra.mxu0 %v753
      %796 = vmatprep.subr.bf16.mxu0 0
      %797 = vmatpush1.bf16.msra.mxu0 %v754
      %798 = vmatprep.subr.bf16.mxu0 0
      %799 = vmatpush1.bf16.msra.mxu0 %v755
      %800 = vmatprep.subr.bf16.mxu0 0
      %801 = vmatpush1.bf16.msra.mxu0 %v756
      %802 = vmatprep.subr.bf16.mxu0 0
      %803 = vmatpush1.bf16.msra.mxu0 %v757
      %804 = vmatprep.subr.bf16.mxu0 0
      %805 = vmatpush1.bf16.msra.mxu0 %v758
      %806 = vmatprep.subr.bf16.mxu0 0
      %807 = vmatpush1.bf16.msra.mxu0 %v759
      %808 = vmatprep.mubr.bf16.mxu0 %v647
      %809 = vmatmul.mubr.bf16.gmra.mrb[0].mxu0 %v646
      %v810 = vpop.f32.mrb[0].mxu0
      %v811 = vadd.f32 0.0, %v810
      %v812 = vpop.f32.mrb[0].mxu0
      %v813 = vpop.f32.mrb[0].mxu0
      %v814 = vadd.f32 0.0, %v813
      %v815 = vpop.f32.mrb[0].mxu0
      %816 = vdwg.mxu0
      %v817 = vadd.f32 %v456, %v811
      %v818 = vadd.f32 %v457, %v814
      %v819 = vld [vmem:[%s7] sm:$0x1]
      %v821 = vlaneseq
      %v822 = vshrl.u32 %v821, 7
      %v823 = vsub.s32 0, %v822
      %v824 = vrot.slane %v819, %v823
      %v826 = vadd.f32 %v817, %v824
      %v827 = vadd.f32 %v818, %v824
      %828 = vadd.xlane.f32.xlu0 %v826
      %v829 = vpop.xlane.xlu0 %828
      %830 = vadd.xlane.f32.xlu0 %v827
      %v831 = vpop.xlane.xlu0 %830
      %v832 = vrcp.pop 128.0
      %v833 = vmul.f32 %v829, %v832
      %v834 = vmul.f32 %v831, %v832
      %v835 = vsub.f32 %v826, %v833
      %v836 = vsub.f32 %v827, %v834
      %v837 = vmul.f32 %v835, %v835
      %v838 = vmul.f32 %v836, %v836
      %839 = vadd.xlane.f32.xlu0 %v837
      %v840 = vpop.xlane.xlu0 %839
      %841 = vadd.xlane.f32.xlu0 %v838
      %v842 = vpop.xlane.xlu0 %841
      %v843 = vmul.f32 %v840, %v832
      %v844 = vmul.f32 %v842, %v832
      %v845 = vadd.f32 %v843, 1e-05
      %v846 = vadd.f32 %v844, 1e-05
      %v847 = vrsqrt.pop %v845
      %v848 = vrsqrt.pop %v846
      %v849 = vmul.f32 %v835, %v847
      %v850 = vmul.f32 %v836, %v848
      %851 = vst [vmem:[%s329] sm:$0xff] %v849
      %852 = vst [vmem:[%s329 + $0x8] sm:$0xff] %v850
      %s853 = smul.u32 2, %s19
      %p854 = scmp.lt.s32.totalorder %s853, 3
      %s855 = scalar_select %p854, %s853, 3
      %s856 = smul.addr %s855, 8
      %s857 = scalar_lea.vmem %s8, %s856
      // Predicated region
      $region53: #{ijepa_forward.5} parent=51 // pred_check
        %p858 = pneg %p215
      $region54: #{ijepa_forward.5} parent=51 // pred_check_branch
        %860 = sbr.rel (%p858) target = $region56
      $region55: #{ijepa_forward.5} parent=51 // pred_region
        %s861 = smul.u32 2, %s19
      $region56: #{ijepa_forward.5} parent=51 // pred_fallthru
        _
    $region52: #{ijepa_forward.5} parent=5 // pred_fallthru
      _
    %p862 = scmp.le.s32.totalorder 2, %s14
    // Predicated region
    $region57: #{ijepa_forward.5} parent=5 // pred_check
      %p863 = pneg %p862
    $region58: #{ijepa_forward.5} parent=5 // pred_check_branch
      %865 = sbr.rel (%p863) target = $region60
    $region59: #{ijepa_forward.5} parent=5 // pred_region
      %s866 = ssub.s32 %s14, 2
      // Predicated region
      $region61: #{ijepa_forward.5} parent=59 // pred_check
        %p867 = pneg %p221
      $region62: #{ijepa_forward.5} parent=59 // pred_check_branch
        %869 = sbr.rel (%p867) target = $region64
      $region63: #{ijepa_forward.5} parent=59 // pred_region
        %s870 = smul.u32 2, %s20
        %p871 = scmp.lt.s32.totalorder %s870, 3
        %s872 = scalar_select %p871, %s870, 3
        %s873 = smul.addr %s872, 8
        %s874 = scalar_lea.vmem %s8, %s873
      $region64: #{ijepa_forward.5} parent=59 // pred_fallthru
        _
    $region60: #{ijepa_forward.5} parent=5 // pred_fallthru
      _
  $region6: #{ijepa_forward.5} parent=0 // loop_footer
    %s18 = sadd.s32 1, %s14
  $region7: #{ijepa_forward.5} parent=0 // loop_footer_branch
    %13 = sbr.rel target = $region3
  $region8: #{ijepa_forward.5} parent=0 // loop_exit
    _

</llo_original>
